<compile_context>
chip_gen: v7x
topology: tpu7x:2x2x1
jax: 0.10.0
libtpu: 0.0.40
codegen_flags: <defaults>
</compile_context>

<pallas_src>
import functools

import jax
import jax.numpy as jnp
from jax.experimental import pallas as pl
from jax.experimental.pallas import tpu as pltpu


CFG = dict(
    vocab_size=100,
    type_vocab_size=2,
    max_position=32,
    hidden=32,
    num_heads=4,
    num_layers=2,
    ffn=64,
    num_classes=7,
)

_CLS_PAD = 128   # lane-dense classifier output width (sliced back to 7 outside)
_LN_EPS = 1e-12


# ---------------------------------------------------------------------------
# Fused Pallas kernel: embedding LN -> L encoder layers -> pooler -> classifier
# ---------------------------------------------------------------------------

def _bert_fused_kernel(x_ref, bias_ref, emb_ln_ref,
                       wqkv_ref, bqkv_ref, wo_ref, bo_ref, ln1_ref,
                       w1_ref, b1_ref, w2_ref, b2_ref, ln2_ref,
                       pool_w_ref, pool_b_ref, cls_w_ref, cls_b_ref,
                       out_ref, *, num_layers, num_heads, eps=_LN_EPS):
    H = x_ref.shape[-1]
    Dh = H // num_heads
    scale = 1.0 / float(Dh) ** 0.5

    def layer_norm(v, gb):
        gamma, beta = gb[0:1, :], gb[1:2, :]
        mu = jnp.mean(v, axis=-1, keepdims=True)
        c = v - mu
        var = jnp.mean(c * c, axis=-1, keepdims=True)
        return c * jax.lax.rsqrt(var + eps) * gamma + beta

    def matmul(a, w, b):
        return jnp.dot(a, w, preferred_element_type=jnp.float32) + b

    bias = bias_ref[...]                                    # (BS, BS) additive mask

    # --- embedding LayerNorm ---
    x = layer_norm(x_ref[...], emb_ln_ref[...])             # (BS, H)

    # --- encoder layers (static unroll; weights already resident in VMEM) ---
    for l in range(num_layers):
        qkv = matmul(x, wqkv_ref[l], bqkv_ref[l])           # (BS, 3H) fused QKV
        wo_l = wo_ref[l]                                    # (H, H)

        attn = jnp.zeros_like(x)
        for h in range(num_heads):                          # static per-head loop
            q = qkv[:, h * Dh:(h + 1) * Dh] * scale         # (BS, Dh) pre-scaled
            k = qkv[:, H + h * Dh:H + (h + 1) * Dh]
            v = qkv[:, 2 * H + h * Dh:2 * H + (h + 1) * Dh]
            # scores over all B*S keys; cross-batch pairs and padded keys are
            # removed by the additive bias (built once in the wrapper).
            s = jax.lax.dot_general(q, k, (((1,), (1,)), ((), ())),
                                    preferred_element_type=jnp.float32)
            s = s + bias
            s = s - jnp.max(s, axis=-1, keepdims=True)
            p = jnp.exp(s)
            p = p * pl.reciprocal(jnp.sum(p, axis=-1, keepdims=True), approx=True)
            ctx = jnp.dot(p, v, preferred_element_type=jnp.float32)   # (BS, Dh)
            # fold the output projection per head: ctx @ wo[h*Dh:(h+1)*Dh, :]
            attn = attn + jnp.dot(ctx, wo_l[h * Dh:(h + 1) * Dh, :],
                                  preferred_element_type=jnp.float32)
        attn = attn + bo_ref[l]

        # residual + LN1 (fused epilogue)
        x = layer_norm(x + attn, ln1_ref[l])

        # FFN
        # TODO(synk): PyTorch/HF BERT uses exact erf-GELU; tanh approximation
        # used here for guaranteed Mosaic lowering (tiny numeric difference).
        h1 = jax.nn.gelu(matmul(x, w1_ref[l], b1_ref[l]), approximate=True)
        h2 = matmul(h1, w2_ref[l], b2_ref[l])
        x = layer_norm(x + h2, ln2_ref[l])

    # --- pooler (tanh) + classifier, computed on all rows; wrapper picks CLS ---
    pooled = jnp.tanh(matmul(x, pool_w_ref[...], pool_b_ref[...]))
    # TODO(synk): nn.Dropout(p=dr_rate) is identity in eval mode; omitted.
    out_ref[...] = matmul(pooled, cls_w_ref[...], cls_b_ref[...])


def _full_block(arr):
    nd = arr.ndim
    return pl.BlockSpec(arr.shape, lambda i, _nd=nd: (0,) * _nd)


# ---------------------------------------------------------------------------
# Parameters (deterministic synthetic BERT) and forward wrapper
# ---------------------------------------------------------------------------

def init_params(key, cfg):
    std = 0.02
    ks = iter(jax.random.split(key, 64))
    nrm = lambda shape: (std * jax.random.normal(next(ks), shape)).astype(jnp.float32)
    H, F, L, NC = cfg["hidden"], cfg["ffn"], cfg["num_layers"], cfg["num_classes"]

    ones_zeros = lambda: jnp.stack([jnp.ones((H,), jnp.float32),
                                    jnp.zeros((H,), jnp.float32)], axis=0)   # (2, H)

    layers = dict(wqkv=[], bqkv=[], wo=[], bo=[], ln1=[],
                  w1=[], b1=[], w2=[], b2=[], ln2=[])
    for _ in range(L):
        wq, wk, wv = nrm((H, H)), nrm((H, H)), nrm((H, H))
        layers["wqkv"].append(jnp.concatenate([wq, wk, wv], axis=1))          # (H, 3H)
        layers["bqkv"].append(jnp.zeros((1, 3 * H), jnp.float32))
        layers["wo"].append(nrm((H, H)))
        layers["bo"].append(jnp.zeros((1, H), jnp.float32))
        layers["ln1"].append(ones_zeros())
        layers["w1"].append(nrm((H, F)))
        layers["b1"].append(jnp.zeros((1, F), jnp.float32))
        layers["w2"].append(nrm((F, H)))
        layers["b2"].append(jnp.zeros((1, H), jnp.float32))
        layers["ln2"].append(ones_zeros())

    cls_w = nrm((H, NC))
    cls_w_pad = jnp.zeros((H, _CLS_PAD), jnp.float32).at[:, :NC].set(cls_w)

    p = {
        "tok_emb": nrm((cfg["vocab_size"], H)),
        "pos_emb": nrm((cfg["max_position"], H)),
        "seg_emb": nrm((cfg["type_vocab_size"], H)),
        "emb_ln": ones_zeros(),
        "pooler_w": nrm((H, H)),
        "pooler_b": jnp.zeros((1, H), jnp.float32),
        "cls_w": cls_w_pad,                                  # (H, 128) lane-dense
        "cls_b": jnp.zeros((1, _CLS_PAD), jnp.float32),
    }
    for name, vals in layers.items():
        p[name] = jnp.stack(vals, axis=0)                    # leading layer axis
    return p


def _embed(params, token_ids, segment_ids):
    B, S = token_ids.shape
    return (jnp.take(params["tok_emb"], token_ids, axis=0)
            + jnp.take(params["seg_emb"], segment_ids, axis=0)
            + params["pos_emb"][None, :S, :]).astype(jnp.float32)       # (B, S, H)


def bert_classifier_forward(params, token_ids, valid_length, segment_ids, cfg):
    B, S = token_ids.shape
    H, nh, L, NC = cfg["hidden"], cfg["num_heads"], cfg["num_layers"], cfg["num_classes"]
    BS = B * S

    # --- attention mask exactly as the torch module (keys < valid_length) ---
    attention_mask = (jnp.arange(S)[None, :] < valid_length[:, None]).astype(jnp.float32)
    key_valid = attention_mask.reshape(BS)                    # (BS,)
    row_batch = jnp.arange(BS) // S
    same_batch = row_batch[:, None] == row_batch[None, :]
    # same batch & padded key -> -1e4 (as reference); different batch -> -1e9
    attn_bias = jnp.where(same_batch,
                          (1.0 - key_valid)[None, :] * (-1e4),
                          -1e9).astype(jnp.float32)           # (BS, BS)

    # --- embeddings (gather glue) ---
    x = _embed(params, token_ids, segment_ids).reshape(BS, H)

    args = [x, attn_bias, params["emb_ln"],
            params["wqkv"], params["bqkv"], params["wo"], params["bo"], params["ln1"],
            params["w1"], params["b1"], params["w2"], params["b2"], params["ln2"],
            params["pooler_w"], params["pooler_b"], params["cls_w"], params["cls_b"]]

    kernel = functools.partial(_bert_fused_kernel, num_layers=L, num_heads=nh)

    logits_full = pl.pallas_call(
        kernel,
        out_shape=jax.ShapeDtypeStruct((BS, _CLS_PAD), jnp.float32),
        grid=(1,),                                           # whole model = one step
        in_specs=[_full_block(a) for a in args],
        out_specs=pl.BlockSpec((BS, _CLS_PAD), lambda i: (0, 0)),
        compiler_params=pltpu.CompilerParams(
            dimension_semantics=("arbitrary",)),
    )(*args)

    # CLS token rows (0, S, 2S, ...) and the real (unpadded) class columns.
    return logits_full[::S, :NC]


# ---------------------------------------------------------------------------
# Pure-JAX reference (per-batch attention, same approximations) for validation
# ---------------------------------------------------------------------------

def bert_classifier_reference(params, token_ids, valid_length, segment_ids, cfg):
    B, S = token_ids.shape
    H, nh, L, NC = cfg["hidden"], cfg["num_heads"], cfg["num_layers"], cfg["num_classes"]
    Dh = H // nh
    scale = 1.0 / float(Dh) ** 0.5

    def ln(v, gb):
        gamma, beta = gb[0], gb[1]
        mu = v.mean(-1, keepdims=True)
        c = v - mu
        var = (c * c).mean(-1, keepdims=True)
        return c * jax.lax.rsqrt(var + _LN_EPS) * gamma + beta

    mask = (jnp.arange(S)[None, :] < valid_length[:, None]).astype(jnp.float32)  # (B,S)
    bias = ((1.0 - mask) * (-1e4))[:, None, None, :]                             # (B,1,1,S)

    x = _embed(params, token_ids, segment_ids)                                   # (B,S,H)
    x = ln(x, params["emb_ln"])
    for l in range(L):
        qkv = x @ params["wqkv"][l] + params["bqkv"][l]                          # (B,S,3H)
        q, k, v = qkv[..., :H], qkv[..., H:2 * H], qkv[..., 2 * H:]
        q = q.reshape(B, S, nh, Dh).transpose(0, 2, 1, 3)
        k = k.reshape(B, S, nh, Dh).transpose(0, 2, 1, 3)
        v = v.reshape(B, S, nh, Dh).transpose(0, 2, 1, 3)
        s = jnp.einsum("bhqd,bhkd->bhqk", q, k) * scale + bias
        p = jax.nn.softmax(s, axis=-1)
        ctx = jnp.einsum("bhqk,bhkd->bhqd", p, v)
        ctx = ctx.transpose(0, 2, 1, 3).reshape(B, S, H)
        attn = ctx @ params["wo"][l] + params["bo"][l]
        x = ln(x + attn, params["ln1"][l])
        h1 = jax.nn.gelu(x @ params["w1"][l] + params["b1"][l], approximate=True)
        x = ln(x + h1 @ params["w2"][l] + params["b2"][l], params["ln2"][l])

    pooled = jnp.tanh(x[:, 0, :] @ params["pooler_w"] + params["pooler_b"])
    return pooled @ params["cls_w"][:, :NC] + params["cls_b"][:, :NC]


# ---------------------------------------------------------------------------
# main
# ---------------------------------------------------------------------------

if __name__ == "__main__":
    key = jax.random.PRNGKey(0)
    kp, kt, ks = jax.random.split(key, 3)

    params = init_params(kp, CFG)

    B, S = 2, 8
    token_ids = jax.random.randint(kt, (B, S), 0, CFG["vocab_size"], dtype=jnp.int32)
    valid_length = jnp.array([8, 5], dtype=jnp.int32)
    segment_ids = jax.random.randint(ks, (B, S), 0, CFG["type_vocab_size"],
                                     dtype=jnp.int32)

    forward = jax.jit(functools.partial(bert_classifier_forward, cfg=CFG))
    logits = jax.block_until_ready(forward(params, token_ids, valid_length, segment_ids))

    assert logits.shape == (B, CFG["num_classes"])
    assert bool(jnp.all(jnp.isfinite(logits)))

    ref = bert_classifier_reference(params, token_ids, valid_length, segment_ids, CFG)
    err = float(jnp.max(jnp.abs(logits - ref)))
    assert err < 1e-2, f"kernel/reference mismatch: max abs err = {err}"

    print("KERNEL_OK")
</pallas_src>

<mosaic_0001>
module attributes {stable_mosaic.version = 11 : i64} {
  func.func @_bert_fused_kernel(%arg0: i32, %arg1: memref<16x32xf32, #tpu.memory_space<vmem>>, %arg2: memref<16x16xf32, #tpu.memory_space<vmem>>, %arg3: memref<2x32xf32, #tpu.memory_space<vmem>>, %arg4: memref<2x32x96xf32, #tpu.memory_space<vmem>>, %arg5: memref<2x1x96xf32, #tpu.memory_space<vmem>>, %arg6: memref<2x32x32xf32, #tpu.memory_space<vmem>>, %arg7: memref<2x1x32xf32, #tpu.memory_space<vmem>>, %arg8: memref<2x2x32xf32, #tpu.memory_space<vmem>>, %arg9: memref<2x32x64xf32, #tpu.memory_space<vmem>>, %arg10: memref<2x1x64xf32, #tpu.memory_space<vmem>>, %arg11: memref<2x64x32xf32, #tpu.memory_space<vmem>>, %arg12: memref<2x1x32xf32, #tpu.memory_space<vmem>>, %arg13: memref<2x2x32xf32, #tpu.memory_space<vmem>>, %arg14: memref<32x32xf32, #tpu.memory_space<vmem>>, %arg15: memref<1x32xf32, #tpu.memory_space<vmem>>, %arg16: memref<32x128xf32, #tpu.memory_space<vmem>>, %arg17: memref<1x128xf32, #tpu.memory_space<vmem>>, %arg18: memref<16x128xf32, #tpu.memory_space<vmem>>) attributes {dimension_semantics = [#tpu.dimension_semantics<arbitrary>], iteration_bounds = array<i64: 1>, scalar_prefetch = 0 : i64, scratch_operands = 0 : i64, tpu.core_type = #tpu.core_type<tc>, window_params = [{pipeline_mode = #tpu.pipeline_mode<synchronous>, transform_indices = @transform_0, window_bounds = array<i64: 16, 32>}, {pipeline_mode = #tpu.pipeline_mode<synchronous>, transform_indices = @transform_1, window_bounds = array<i64: 16, 16>}, {pipeline_mode = #tpu.pipeline_mode<synchronous>, transform_indices = @transform_2, window_bounds = array<i64: 2, 32>}, {pipeline_mode = #tpu.pipeline_mode<synchronous>, transform_indices = @transform_3, window_bounds = array<i64: 2, 32, 96>}, {pipeline_mode = #tpu.pipeline_mode<synchronous>, transform_indices = @transform_4, window_bounds = array<i64: 2, 1, 96>}, {pipeline_mode = #tpu.pipeline_mode<synchronous>, transform_indices = @transform_5, window_bounds = array<i64: 2, 32, 32>}, {pipeline_mode = #tpu.pipeline_mode<synchronous>, transform_indices = @transform_6, window_bounds = array<i64: 2, 1, 32>}, {pipeline_mode = #tpu.pipeline_mode<synchronous>, transform_indices = @transform_7, window_bounds = array<i64: 2, 2, 32>}, {pipeline_mode = #tpu.pipeline_mode<synchronous>, transform_indices = @transform_8, window_bounds = array<i64: 2, 32, 64>}, {pipeline_mode = #tpu.pipeline_mode<synchronous>, transform_indices = @transform_9, window_bounds = array<i64: 2, 1, 64>}, {pipeline_mode = #tpu.pipeline_mode<synchronous>, transform_indices = @transform_10, window_bounds = array<i64: 2, 64, 32>}, {pipeline_mode = #tpu.pipeline_mode<synchronous>, transform_indices = @transform_11, window_bounds = array<i64: 2, 1, 32>}, {pipeline_mode = #tpu.pipeline_mode<synchronous>, transform_indices = @transform_12, window_bounds = array<i64: 2, 2, 32>}, {pipeline_mode = #tpu.pipeline_mode<synchronous>, transform_indices = @transform_13, window_bounds = array<i64: 32, 32>}, {pipeline_mode = #tpu.pipeline_mode<synchronous>, transform_indices = @transform_14, window_bounds = array<i64: 1, 32>}, {pipeline_mode = #tpu.pipeline_mode<synchronous>, transform_indices = @transform_15, window_bounds = array<i64: 32, 128>}, {pipeline_mode = #tpu.pipeline_mode<synchronous>, transform_indices = @transform_16, window_bounds = array<i64: 1, 128>}, {pipeline_mode = #tpu.pipeline_mode<synchronous>, transform_indices = @transform_17, window_bounds = array<i64: 16, 128>}]} {
    %c0 = arith.constant 0 : index
    %c0_0 = arith.constant 0 : index
    %0 = vector.load %arg2[%c0, %c0_0] : memref<16x16xf32, #tpu.memory_space<vmem>>, vector<16x16xf32>
    %c0_1 = arith.constant 0 : index
    %c0_2 = arith.constant 0 : index
    %1 = vector.load %arg1[%c0_1, %c0_2] : memref<16x32xf32, #tpu.memory_space<vmem>>, vector<16x32xf32>
    %c0_3 = arith.constant 0 : index
    %c0_4 = arith.constant 0 : index
    %2 = vector.load %arg3[%c0_3, %c0_4] : memref<2x32xf32, #tpu.memory_space<vmem>>, vector<2x32xf32>
    %3 = vector.extract_strided_slice %2 {offsets = [0, 0], sizes = [1, 32], strides = [1, 1]} : vector<2x32xf32> to vector<1x32xf32>
    %4 = vector.extract_strided_slice %2 {offsets = [1, 0], sizes = [1, 32], strides = [1, 1]} : vector<2x32xf32> to vector<1x32xf32>
    %cst = arith.constant dense<0.000000e+00> : vector<16xf32>
    %5 = vector.multi_reduction <add>, %1, %cst [1] : vector<16x32xf32> to vector<16xf32>
    %6 = vector.shape_cast %5 : vector<16xf32> to vector<16x1xf32>
    %cst_5 = arith.constant 3.200000e+01 : f32
    %7 = vector.broadcast %cst_5 : f32 to vector<16x1xf32>
    %8 = arith.divf %6, %7 : vector<16x1xf32>
    %9 = vector.broadcast %8 : vector<16x1xf32> to vector<16x32xf32>
    %10 = arith.subf %1, %9 : vector<16x32xf32>
    %11 = arith.mulf %10, %10 : vector<16x32xf32>
    %cst_6 = arith.constant dense<0.000000e+00> : vector<16xf32>
    %12 = vector.multi_reduction <add>, %11, %cst_6 [1] : vector<16x32xf32> to vector<16xf32>
    %13 = vector.shape_cast %12 : vector<16xf32> to vector<16x1xf32>
    %cst_7 = arith.constant 3.200000e+01 : f32
    %14 = vector.broadcast %cst_7 : f32 to vector<16x1xf32>
    %15 = arith.divf %13, %14 : vector<16x1xf32>
    %cst_8 = arith.constant 9.99999996E-13 : f32
    %16 = vector.broadcast %cst_8 : f32 to vector<16x1xf32>
    %17 = arith.addf %15, %16 : vector<16x1xf32>
    %18 = math.rsqrt %17 : vector<16x1xf32>
    %19 = vector.broadcast %18 : vector<16x1xf32> to vector<16x32xf32>
    %20 = arith.mulf %10, %19 : vector<16x32xf32>
    %21 = vector.broadcast %3 : vector<1x32xf32> to vector<16x32xf32>
    %22 = arith.mulf %20, %21 : vector<16x32xf32>
    %23 = vector.broadcast %4 : vector<1x32xf32> to vector<16x32xf32>
    %24 = arith.addf %22, %23 : vector<16x32xf32>
    %c0_9 = arith.constant 0 : index
    %c0_10 = arith.constant 0 : index
    %c0_11 = arith.constant 0 : index
    %25 = vector.load %arg4[%c0_9, %c0_10, %c0_11] : memref<2x32x96xf32, #tpu.memory_space<vmem>>, vector<1x32x96xf32>
    %26 = vector.shape_cast %25 : vector<1x32x96xf32> to vector<32x96xf32>
    %c0_12 = arith.constant 0 : index
    %c0_13 = arith.constant 0 : index
    %c0_14 = arith.constant 0 : index
    %27 = vector.load %arg5[%c0_12, %c0_13, %c0_14] : memref<2x1x96xf32, #tpu.memory_space<vmem>>, vector<1x1x96xf32>
    %28 = vector.shape_cast %27 : vector<1x1x96xf32> to vector<1x96xf32>
    %cst_15 = arith.constant dense<0.000000e+00> : vector<16x96xf32>
    %29 = tpu.matmul %24, %26, %cst_15 {dimension_numbers = #tpu.dot_dimension_numbers<[1], [0], [0], [1], [0, 0, 1, 1], [], []>} : vector<16x32xf32>, vector<32x96xf32>, vector<16x96xf32> -> vector<16x96xf32>
    %30 = vector.broadcast %28 : vector<1x96xf32> to vector<16x96xf32>
    %31 = arith.addf %29, %30 : vector<16x96xf32>
    %c0_16 = arith.constant 0 : index
    %c0_17 = arith.constant 0 : index
    %c0_18 = arith.constant 0 : index
    %32 = vector.load %arg6[%c0_16, %c0_17, %c0_18] : memref<2x32x32xf32, #tpu.memory_space<vmem>>, vector<1x32x32xf32>
    %33 = vector.shape_cast %32 : vector<1x32x32xf32> to vector<32x32xf32>
    %cst_19 = arith.constant 0.000000e+00 : f32
    %34 = vector.broadcast %cst_19 : f32 to vector<16x32xf32>
    %35 = vector.extract_strided_slice %31 {offsets = [0, 0], sizes = [16, 8], strides = [1, 1]} : vector<16x96xf32> to vector<16x8xf32>
    %cst_20 = arith.constant 0.353553385 : f32
    %36 = vector.broadcast %cst_20 : f32 to vector<16x8xf32>
    %37 = arith.mulf %35, %36 : vector<16x8xf32>
    %38 = vector.extract_strided_slice %31 {offsets = [0, 32], sizes = [16, 8], strides = [1, 1]} : vector<16x96xf32> to vector<16x8xf32>
    %39 = vector.extract_strided_slice %31 {offsets = [0, 64], sizes = [16, 8], strides = [1, 1]} : vector<16x96xf32> to vector<16x8xf32>
    %cst_21 = arith.constant dense<0.000000e+00> : vector<16x16xf32>
    %40 = tpu.matmul %37, %38, %cst_21 {dimension_numbers = #tpu.dot_dimension_numbers<[1], [1], [0], [0], [0, 0, 1, 0], [], []>} : vector<16x8xf32>, vector<16x8xf32>, vector<16x16xf32> -> vector<16x16xf32>
    %41 = arith.addf %40, %0 : vector<16x16xf32>
    %cst_22 = arith.constant dense<0xFF800000> : vector<16xf32>
    %42 = vector.multi_reduction <maximumf>, %41, %cst_22 [1] : vector<16x16xf32> to vector<16xf32>
    %43 = vector.shape_cast %42 : vector<16xf32> to vector<16x1xf32>
    %44 = vector.broadcast %43 : vector<16x1xf32> to vector<16x16xf32>
    %45 = arith.subf %41, %44 : vector<16x16xf32>
    %46 = math.exp %45 : vector<16x16xf32>
    %cst_23 = arith.constant dense<0.000000e+00> : vector<16xf32>
    %47 = vector.multi_reduction <add>, %46, %cst_23 [1] : vector<16x16xf32> to vector<16xf32>
    %48 = vector.shape_cast %47 : vector<16xf32> to vector<16x1xf32>
    %49 = tpu.reciprocal %48 {approx = true} : vector<16x1xf32> -> vector<16x1xf32>
    %50 = vector.broadcast %49 : vector<16x1xf32> to vector<16x16xf32>
    %51 = arith.mulf %46, %50 : vector<16x16xf32>
    %cst_24 = arith.constant dense<0.000000e+00> : vector<16x8xf32>
    %52 = tpu.matmul %51, %39, %cst_24 {dimension_numbers = #tpu.dot_dimension_numbers<[1], [0], [0], [1], [0, 0, 1, 1], [], []>} : vector<16x16xf32>, vector<16x8xf32>, vector<16x8xf32> -> vector<16x8xf32>
    %53 = vector.extract_strided_slice %33 {offsets = [0, 0], sizes = [8, 32], strides = [1, 1]} : vector<32x32xf32> to vector<8x32xf32>
    %cst_25 = arith.constant dense<0.000000e+00> : vector<16x32xf32>
    %54 = tpu.matmul %52, %53, %cst_25 {dimension_numbers = #tpu.dot_dimension_numbers<[1], [0], [0], [1], [0, 0, 1, 1], [], []>} : vector<16x8xf32>, vector<8x32xf32>, vector<16x32xf32> -> vector<16x32xf32>
    %55 = arith.addf %34, %54 : vector<16x32xf32>
    %56 = vector.extract_strided_slice %31 {offsets = [0, 8], sizes = [16, 8], strides = [1, 1]} : vector<16x96xf32> to vector<16x8xf32>
    %cst_26 = arith.constant 0.353553385 : f32
    %57 = vector.broadcast %cst_26 : f32 to vector<16x8xf32>
    %58 = arith.mulf %56, %57 : vector<16x8xf32>
    %59 = vector.extract_strided_slice %31 {offsets = [0, 40], sizes = [16, 8], strides = [1, 1]} : vector<16x96xf32> to vector<16x8xf32>
    %60 = vector.extract_strided_slice %31 {offsets = [0, 72], sizes = [16, 8], strides = [1, 1]} : vector<16x96xf32> to vector<16x8xf32>
    %cst_27 = arith.constant dense<0.000000e+00> : vector<16x16xf32>
    %61 = tpu.matmul %58, %59, %cst_27 {dimension_numbers = #tpu.dot_dimension_numbers<[1], [1], [0], [0], [0, 0, 1, 0], [], []>} : vector<16x8xf32>, vector<16x8xf32>, vector<16x16xf32> -> vector<16x16xf32>
    %62 = arith.addf %61, %0 : vector<16x16xf32>
    %cst_28 = arith.constant dense<0xFF800000> : vector<16xf32>
    %63 = vector.multi_reduction <maximumf>, %62, %cst_28 [1] : vector<16x16xf32> to vector<16xf32>
    %64 = vector.shape_cast %63 : vector<16xf32> to vector<16x1xf32>
    %65 = vector.broadcast %64 : vector<16x1xf32> to vector<16x16xf32>
    %66 = arith.subf %62, %65 : vector<16x16xf32>
    %67 = math.exp %66 : vector<16x16xf32>
    %cst_29 = arith.constant dense<0.000000e+00> : vector<16xf32>
    %68 = vector.multi_reduction <add>, %67, %cst_29 [1] : vector<16x16xf32> to vector<16xf32>
    %69 = vector.shape_cast %68 : vector<16xf32> to vector<16x1xf32>
    %70 = tpu.reciprocal %69 {approx = true} : vector<16x1xf32> -> vector<16x1xf32>
    %71 = vector.broadcast %70 : vector<16x1xf32> to vector<16x16xf32>
    %72 = arith.mulf %67, %71 : vector<16x16xf32>
    %cst_30 = arith.constant dense<0.000000e+00> : vector<16x8xf32>
    %73 = tpu.matmul %72, %60, %cst_30 {dimension_numbers = #tpu.dot_dimension_numbers<[1], [0], [0], [1], [0, 0, 1, 1], [], []>} : vector<16x16xf32>, vector<16x8xf32>, vector<16x8xf32> -> vector<16x8xf32>
    %74 = vector.extract_strided_slice %33 {offsets = [8, 0], sizes = [8, 32], strides = [1, 1]} : vector<32x32xf32> to vector<8x32xf32>
    %cst_31 = arith.constant dense<0.000000e+00> : vector<16x32xf32>
    %75 = tpu.matmul %73, %74, %cst_31 {dimension_numbers = #tpu.dot_dimension_numbers<[1], [0], [0], [1], [0, 0, 1, 1], [], []>} : vector<16x8xf32>, vector<8x32xf32>, vector<16x32xf32> -> vector<16x32xf32>
    %76 = arith.addf %55, %75 : vector<16x32xf32>
    %77 = vector.extract_strided_slice %31 {offsets = [0, 16], sizes = [16, 8], strides = [1, 1]} : vector<16x96xf32> to vector<16x8xf32>
    %cst_32 = arith.constant 0.353553385 : f32
    %78 = vector.broadcast %cst_32 : f32 to vector<16x8xf32>
    %79 = arith.mulf %77, %78 : vector<16x8xf32>
    %80 = vector.extract_strided_slice %31 {offsets = [0, 48], sizes = [16, 8], strides = [1, 1]} : vector<16x96xf32> to vector<16x8xf32>
    %81 = vector.extract_strided_slice %31 {offsets = [0, 80], sizes = [16, 8], strides = [1, 1]} : vector<16x96xf32> to vector<16x8xf32>
    %cst_33 = arith.constant dense<0.000000e+00> : vector<16x16xf32>
    %82 = tpu.matmul %79, %80, %cst_33 {dimension_numbers = #tpu.dot_dimension_numbers<[1], [1], [0], [0], [0, 0, 1, 0], [], []>} : vector<16x8xf32>, vector<16x8xf32>, vector<16x16xf32> -> vector<16x16xf32>
    %83 = arith.addf %82, %0 : vector<16x16xf32>
    %cst_34 = arith.constant dense<0xFF800000> : vector<16xf32>
    %84 = vector.multi_reduction <maximumf>, %83, %cst_34 [1] : vector<16x16xf32> to vector<16xf32>
    %85 = vector.shape_cast %84 : vector<16xf32> to vector<16x1xf32>
    %86 = vector.broadcast %85 : vector<16x1xf32> to vector<16x16xf32>
    %87 = arith.subf %83, %86 : vector<16x16xf32>
    %88 = math.exp %87 : vector<16x16xf32>
    %cst_35 = arith.constant dense<0.000000e+00> : vector<16xf32>
    %89 = vector.multi_reduction <add>, %88, %cst_35 [1] : vector<16x16xf32> to vector<16xf32>
    %90 = vector.shape_cast %89 : vector<16xf32> to vector<16x1xf32>
    %91 = tpu.reciprocal %90 {approx = true} : vector<16x1xf32> -> vector<16x1xf32>
    %92 = vector.broadcast %91 : vector<16x1xf32> to vector<16x16xf32>
    %93 = arith.mulf %88, %92 : vector<16x16xf32>
    %cst_36 = arith.constant dense<0.000000e+00> : vector<16x8xf32>
    %94 = tpu.matmul %93, %81, %cst_36 {dimension_numbers = #tpu.dot_dimension_numbers<[1], [0], [0], [1], [0, 0, 1, 1], [], []>} : vector<16x16xf32>, vector<16x8xf32>, vector<16x8xf32> -> vector<16x8xf32>
    %95 = vector.extract_strided_slice %33 {offsets = [16, 0], sizes = [8, 32], strides = [1, 1]} : vector<32x32xf32> to vector<8x32xf32>
    %cst_37 = arith.constant dense<0.000000e+00> : vector<16x32xf32>
    %96 = tpu.matmul %94, %95, %cst_37 {dimension_numbers = #tpu.dot_dimension_numbers<[1], [0], [0], [1], [0, 0, 1, 1], [], []>} : vector<16x8xf32>, vector<8x32xf32>, vector<16x32xf32> -> vector<16x32xf32>
    %97 = arith.addf %76, %96 : vector<16x32xf32>
    %98 = vector.extract_strided_slice %31 {offsets = [0, 24], sizes = [16, 8], strides = [1, 1]} : vector<16x96xf32> to vector<16x8xf32>
    %cst_38 = arith.constant 0.353553385 : f32
    %99 = vector.broadcast %cst_38 : f32 to vector<16x8xf32>
    %100 = arith.mulf %98, %99 : vector<16x8xf32>
    %101 = vector.extract_strided_slice %31 {offsets = [0, 56], sizes = [16, 8], strides = [1, 1]} : vector<16x96xf32> to vector<16x8xf32>
    %102 = vector.extract_strided_slice %31 {offsets = [0, 88], sizes = [16, 8], strides = [1, 1]} : vector<16x96xf32> to vector<16x8xf32>
    %cst_39 = arith.constant dense<0.000000e+00> : vector<16x16xf32>
    %103 = tpu.matmul %100, %101, %cst_39 {dimension_numbers = #tpu.dot_dimension_numbers<[1], [1], [0], [0], [0, 0, 1, 0], [], []>} : vector<16x8xf32>, vector<16x8xf32>, vector<16x16xf32> -> vector<16x16xf32>
    %104 = arith.addf %103, %0 : vector<16x16xf32>
    %cst_40 = arith.constant dense<0xFF800000> : vector<16xf32>
    %105 = vector.multi_reduction <maximumf>, %104, %cst_40 [1] : vector<16x16xf32> to vector<16xf32>
    %106 = vector.shape_cast %105 : vector<16xf32> to vector<16x1xf32>
    %107 = vector.broadcast %106 : vector<16x1xf32> to vector<16x16xf32>
    %108 = arith.subf %104, %107 : vector<16x16xf32>
    %109 = math.exp %108 : vector<16x16xf32>
    %cst_41 = arith.constant dense<0.000000e+00> : vector<16xf32>
    %110 = vector.multi_reduction <add>, %109, %cst_41 [1] : vector<16x16xf32> to vector<16xf32>
    %111 = vector.shape_cast %110 : vector<16xf32> to vector<16x1xf32>
    %112 = tpu.reciprocal %111 {approx = true} : vector<16x1xf32> -> vector<16x1xf32>
    %113 = vector.broadcast %112 : vector<16x1xf32> to vector<16x16xf32>
    %114 = arith.mulf %109, %113 : vector<16x16xf32>
    %cst_42 = arith.constant dense<0.000000e+00> : vector<16x8xf32>
    %115 = tpu.matmul %114, %102, %cst_42 {dimension_numbers = #tpu.dot_dimension_numbers<[1], [0], [0], [1], [0, 0, 1, 1], [], []>} : vector<16x16xf32>, vector<16x8xf32>, vector<16x8xf32> -> vector<16x8xf32>
    %116 = vector.extract_strided_slice %33 {offsets = [24, 0], sizes = [8, 32], strides = [1, 1]} : vector<32x32xf32> to vector<8x32xf32>
    %cst_43 = arith.constant dense<0.000000e+00> : vector<16x32xf32>
    %117 = tpu.matmul %115, %116, %cst_43 {dimension_numbers = #tpu.dot_dimension_numbers<[1], [0], [0], [1], [0, 0, 1, 1], [], []>} : vector<16x8xf32>, vector<8x32xf32>, vector<16x32xf32> -> vector<16x32xf32>
    %118 = arith.addf %97, %117 : vector<16x32xf32>
    %c0_44 = arith.constant 0 : index
    %c0_45 = arith.constant 0 : index
    %c0_46 = arith.constant 0 : index
    %119 = vector.load %arg7[%c0_44, %c0_45, %c0_46] : memref<2x1x32xf32, #tpu.memory_space<vmem>>, vector<1x1x32xf32>
    %120 = vector.shape_cast %119 : vector<1x1x32xf32> to vector<1x32xf32>
    %121 = vector.broadcast %120 : vector<1x32xf32> to vector<16x32xf32>
    %122 = arith.addf %118, %121 : vector<16x32xf32>
    %123 = arith.addf %24, %122 : vector<16x32xf32>
    %c0_47 = arith.constant 0 : index
    %c0_48 = arith.constant 0 : index
    %c0_49 = arith.constant 0 : index
    %124 = vector.load %arg8[%c0_47, %c0_48, %c0_49] : memref<2x2x32xf32, #tpu.memory_space<vmem>>, vector<1x2x32xf32>
    %125 = vector.shape_cast %124 : vector<1x2x32xf32> to vector<2x32xf32>
    %126 = vector.extract_strided_slice %125 {offsets = [0, 0], sizes = [1, 32], strides = [1, 1]} : vector<2x32xf32> to vector<1x32xf32>
    %127 = vector.extract_strided_slice %125 {offsets = [1, 0], sizes = [1, 32], strides = [1, 1]} : vector<2x32xf32> to vector<1x32xf32>
    %cst_50 = arith.constant dense<0.000000e+00> : vector<16xf32>
    %128 = vector.multi_reduction <add>, %123, %cst_50 [1] : vector<16x32xf32> to vector<16xf32>
    %129 = vector.shape_cast %128 : vector<16xf32> to vector<16x1xf32>
    %cst_51 = arith.constant 3.200000e+01 : f32
    %130 = vector.broadcast %cst_51 : f32 to vector<16x1xf32>
    %131 = arith.divf %129, %130 : vector<16x1xf32>
    %132 = vector.broadcast %131 : vector<16x1xf32> to vector<16x32xf32>
    %133 = arith.subf %123, %132 : vector<16x32xf32>
    %134 = arith.mulf %133, %133 : vector<16x32xf32>
    %cst_52 = arith.constant dense<0.000000e+00> : vector<16xf32>
    %135 = vector.multi_reduction <add>, %134, %cst_52 [1] : vector<16x32xf32> to vector<16xf32>
    %136 = vector.shape_cast %135 : vector<16xf32> to vector<16x1xf32>
    %cst_53 = arith.constant 3.200000e+01 : f32
    %137 = vector.broadcast %cst_53 : f32 to vector<16x1xf32>
    %138 = arith.divf %136, %137 : vector<16x1xf32>
    %cst_54 = arith.constant 9.99999996E-13 : f32
    %139 = vector.broadcast %cst_54 : f32 to vector<16x1xf32>
    %140 = arith.addf %138, %139 : vector<16x1xf32>
    %141 = math.rsqrt %140 : vector<16x1xf32>
    %142 = vector.broadcast %141 : vector<16x1xf32> to vector<16x32xf32>
    %143 = arith.mulf %133, %142 : vector<16x32xf32>
    %144 = vector.broadcast %126 : vector<1x32xf32> to vector<16x32xf32>
    %145 = arith.mulf %143, %144 : vector<16x32xf32>
    %146 = vector.broadcast %127 : vector<1x32xf32> to vector<16x32xf32>
    %147 = arith.addf %145, %146 : vector<16x32xf32>
    %c0_55 = arith.constant 0 : index
    %c0_56 = arith.constant 0 : index
    %c0_57 = arith.constant 0 : index
    %148 = vector.load %arg9[%c0_55, %c0_56, %c0_57] : memref<2x32x64xf32, #tpu.memory_space<vmem>>, vector<1x32x64xf32>
    %149 = vector.shape_cast %148 : vector<1x32x64xf32> to vector<32x64xf32>
    %c0_58 = arith.constant 0 : index
    %c0_59 = arith.constant 0 : index
    %c0_60 = arith.constant 0 : index
    %150 = vector.load %arg10[%c0_58, %c0_59, %c0_60] : memref<2x1x64xf32, #tpu.memory_space<vmem>>, vector<1x1x64xf32>
    %151 = vector.shape_cast %150 : vector<1x1x64xf32> to vector<1x64xf32>
    %cst_61 = arith.constant dense<0.000000e+00> : vector<16x64xf32>
    %152 = tpu.matmul %147, %149, %cst_61 {dimension_numbers = #tpu.dot_dimension_numbers<[1], [0], [0], [1], [0, 0, 1, 1], [], []>} : vector<16x32xf32>, vector<32x64xf32>, vector<16x64xf32> -> vector<16x64xf32>
    %153 = vector.broadcast %151 : vector<1x64xf32> to vector<16x64xf32>
    %154 = arith.addf %152, %153 : vector<16x64xf32>
    %155 = arith.mulf %154, %154 : vector<16x64xf32>
    %156 = arith.mulf %154, %155 : vector<16x64xf32>
    %cst_62 = arith.constant 4.471500e-02 : f32
    %157 = vector.broadcast %cst_62 : f32 to vector<16x64xf32>
    %158 = arith.mulf %157, %156 : vector<16x64xf32>
    %159 = arith.addf %154, %158 : vector<16x64xf32>
    %cst_63 = arith.constant 0.797884583 : f32
    %160 = vector.broadcast %cst_63 : f32 to vector<16x64xf32>
    %161 = arith.mulf %160, %159 : vector<16x64xf32>
    %162 = math.tanh %161 : vector<16x64xf32>
    %cst_64 = arith.constant 1.000000e+00 : f32
    %163 = vector.broadcast %cst_64 : f32 to vector<16x64xf32>
    %164 = arith.addf %163, %162 : vector<16x64xf32>
    %cst_65 = arith.constant 5.000000e-01 : f32
    %165 = vector.broadcast %cst_65 : f32 to vector<16x64xf32>
    %166 = arith.mulf %165, %164 : vector<16x64xf32>
    %167 = arith.mulf %154, %166 : vector<16x64xf32>
    %c0_66 = arith.constant 0 : index
    %c0_67 = arith.constant 0 : index
    %c0_68 = arith.constant 0 : index
    %168 = vector.load %arg11[%c0_66, %c0_67, %c0_68] : memref<2x64x32xf32, #tpu.memory_space<vmem>>, vector<1x64x32xf32>
    %169 = vector.shape_cast %168 : vector<1x64x32xf32> to vector<64x32xf32>
    %c0_69 = arith.constant 0 : index
    %c0_70 = arith.constant 0 : index
    %c0_71 = arith.constant 0 : index
    %170 = vector.load %arg12[%c0_69, %c0_70, %c0_71] : memref<2x1x32xf32, #tpu.memory_space<vmem>>, vector<1x1x32xf32>
    %171 = vector.shape_cast %170 : vector<1x1x32xf32> to vector<1x32xf32>
    %cst_72 = arith.constant dense<0.000000e+00> : vector<16x32xf32>
    %172 = tpu.matmul %167, %169, %cst_72 {dimension_numbers = #tpu.dot_dimension_numbers<[1], [0], [0], [1], [0, 0, 1, 1], [], []>} : vector<16x64xf32>, vector<64x32xf32>, vector<16x32xf32> -> vector<16x32xf32>
    %173 = vector.broadcast %171 : vector<1x32xf32> to vector<16x32xf32>
    %174 = arith.addf %172, %173 : vector<16x32xf32>
    %175 = arith.addf %147, %174 : vector<16x32xf32>
    %c0_73 = arith.constant 0 : index
    %c0_74 = arith.constant 0 : index
    %c0_75 = arith.constant 0 : index
    %176 = vector.load %arg13[%c0_73, %c0_74, %c0_75] : memref<2x2x32xf32, #tpu.memory_space<vmem>>, vector<1x2x32xf32>
    %177 = vector.shape_cast %176 : vector<1x2x32xf32> to vector<2x32xf32>
    %178 = vector.extract_strided_slice %177 {offsets = [0, 0], sizes = [1, 32], strides = [1, 1]} : vector<2x32xf32> to vector<1x32xf32>
    %179 = vector.extract_strided_slice %177 {offsets = [1, 0], sizes = [1, 32], strides = [1, 1]} : vector<2x32xf32> to vector<1x32xf32>
    %cst_76 = arith.constant dense<0.000000e+00> : vector<16xf32>
    %180 = vector.multi_reduction <add>, %175, %cst_76 [1] : vector<16x32xf32> to vector<16xf32>
    %181 = vector.shape_cast %180 : vector<16xf32> to vector<16x1xf32>
    %cst_77 = arith.constant 3.200000e+01 : f32
    %182 = vector.broadcast %cst_77 : f32 to vector<16x1xf32>
    %183 = arith.divf %181, %182 : vector<16x1xf32>
    %184 = vector.broadcast %183 : vector<16x1xf32> to vector<16x32xf32>
    %185 = arith.subf %175, %184 : vector<16x32xf32>
    %186 = arith.mulf %185, %185 : vector<16x32xf32>
    %cst_78 = arith.constant dense<0.000000e+00> : vector<16xf32>
    %187 = vector.multi_reduction <add>, %186, %cst_78 [1] : vector<16x32xf32> to vector<16xf32>
    %188 = vector.shape_cast %187 : vector<16xf32> to vector<16x1xf32>
    %cst_79 = arith.constant 3.200000e+01 : f32
    %189 = vector.broadcast %cst_79 : f32 to vector<16x1xf32>
    %190 = arith.divf %188, %189 : vector<16x1xf32>
    %cst_80 = arith.constant 9.99999996E-13 : f32
    %191 = vector.broadcast %cst_80 : f32 to vector<16x1xf32>
    %192 = arith.addf %190, %191 : vector<16x1xf32>
    %193 = math.rsqrt %192 : vector<16x1xf32>
    %194 = vector.broadcast %193 : vector<16x1xf32> to vector<16x32xf32>
    %195 = arith.mulf %185, %194 : vector<16x32xf32>
    %196 = vector.broadcast %178 : vector<1x32xf32> to vector<16x32xf32>
    %197 = arith.mulf %195, %196 : vector<16x32xf32>
    %198 = vector.broadcast %179 : vector<1x32xf32> to vector<16x32xf32>
    %199 = arith.addf %197, %198 : vector<16x32xf32>
    %c1 = arith.constant 1 : index
    %c0_81 = arith.constant 0 : index
    %c0_82 = arith.constant 0 : index
    %200 = vector.load %arg4[%c1, %c0_81, %c0_82] : memref<2x32x96xf32, #tpu.memory_space<vmem>>, vector<1x32x96xf32>
    %201 = vector.shape_cast %200 : vector<1x32x96xf32> to vector<32x96xf32>
    %c1_83 = arith.constant 1 : index
    %c0_84 = arith.constant 0 : index
    %c0_85 = arith.constant 0 : index
    %202 = vector.load %arg5[%c1_83, %c0_84, %c0_85] : memref<2x1x96xf32, #tpu.memory_space<vmem>>, vector<1x1x96xf32>
    %203 = vector.shape_cast %202 : vector<1x1x96xf32> to vector<1x96xf32>
    %cst_86 = arith.constant dense<0.000000e+00> : vector<16x96xf32>
    %204 = tpu.matmul %199, %201, %cst_86 {dimension_numbers = #tpu.dot_dimension_numbers<[1], [0], [0], [1], [0, 0, 1, 1], [], []>} : vector<16x32xf32>, vector<32x96xf32>, vector<16x96xf32> -> vector<16x96xf32>
    %205 = vector.broadcast %203 : vector<1x96xf32> to vector<16x96xf32>
    %206 = arith.addf %204, %205 : vector<16x96xf32>
    %c1_87 = arith.constant 1 : index
    %c0_88 = arith.constant 0 : index
    %c0_89 = arith.constant 0 : index
    %207 = vector.load %arg6[%c1_87, %c0_88, %c0_89] : memref<2x32x32xf32, #tpu.memory_space<vmem>>, vector<1x32x32xf32>
    %208 = vector.shape_cast %207 : vector<1x32x32xf32> to vector<32x32xf32>
    %cst_90 = arith.constant 0.000000e+00 : f32
    %209 = vector.broadcast %cst_90 : f32 to vector<16x32xf32>
    %210 = vector.extract_strided_slice %206 {offsets = [0, 0], sizes = [16, 8], strides = [1, 1]} : vector<16x96xf32> to vector<16x8xf32>
    %cst_91 = arith.constant 0.353553385 : f32
    %211 = vector.broadcast %cst_91 : f32 to vector<16x8xf32>
    %212 = arith.mulf %210, %211 : vector<16x8xf32>
    %213 = vector.extract_strided_slice %206 {offsets = [0, 32], sizes = [16, 8], strides = [1, 1]} : vector<16x96xf32> to vector<16x8xf32>
    %214 = vector.extract_strided_slice %206 {offsets = [0, 64], sizes = [16, 8], strides = [1, 1]} : vector<16x96xf32> to vector<16x8xf32>
    %cst_92 = arith.constant dense<0.000000e+00> : vector<16x16xf32>
    %215 = tpu.matmul %212, %213, %cst_92 {dimension_numbers = #tpu.dot_dimension_numbers<[1], [1], [0], [0], [0, 0, 1, 0], [], []>} : vector<16x8xf32>, vector<16x8xf32>, vector<16x16xf32> -> vector<16x16xf32>
    %216 = arith.addf %215, %0 : vector<16x16xf32>
    %cst_93 = arith.constant dense<0xFF800000> : vector<16xf32>
    %217 = vector.multi_reduction <maximumf>, %216, %cst_93 [1] : vector<16x16xf32> to vector<16xf32>
    %218 = vector.shape_cast %217 : vector<16xf32> to vector<16x1xf32>
    %219 = vector.broadcast %218 : vector<16x1xf32> to vector<16x16xf32>
    %220 = arith.subf %216, %219 : vector<16x16xf32>
    %221 = math.exp %220 : vector<16x16xf32>
    %cst_94 = arith.constant dense<0.000000e+00> : vector<16xf32>
    %222 = vector.multi_reduction <add>, %221, %cst_94 [1] : vector<16x16xf32> to vector<16xf32>
    %223 = vector.shape_cast %222 : vector<16xf32> to vector<16x1xf32>
    %224 = tpu.reciprocal %223 {approx = true} : vector<16x1xf32> -> vector<16x1xf32>
    %225 = vector.broadcast %224 : vector<16x1xf32> to vector<16x16xf32>
    %226 = arith.mulf %221, %225 : vector<16x16xf32>
    %cst_95 = arith.constant dense<0.000000e+00> : vector<16x8xf32>
    %227 = tpu.matmul %226, %214, %cst_95 {dimension_numbers = #tpu.dot_dimension_numbers<[1], [0], [0], [1], [0, 0, 1, 1], [], []>} : vector<16x16xf32>, vector<16x8xf32>, vector<16x8xf32> -> vector<16x8xf32>
    %228 = vector.extract_strided_slice %208 {offsets = [0, 0], sizes = [8, 32], strides = [1, 1]} : vector<32x32xf32> to vector<8x32xf32>
    %cst_96 = arith.constant dense<0.000000e+00> : vector<16x32xf32>
    %229 = tpu.matmul %227, %228, %cst_96 {dimension_numbers = #tpu.dot_dimension_numbers<[1], [0], [0], [1], [0, 0, 1, 1], [], []>} : vector<16x8xf32>, vector<8x32xf32>, vector<16x32xf32> -> vector<16x32xf32>
    %230 = arith.addf %209, %229 : vector<16x32xf32>
    %231 = vector.extract_strided_slice %206 {offsets = [0, 8], sizes = [16, 8], strides = [1, 1]} : vector<16x96xf32> to vector<16x8xf32>
    %cst_97 = arith.constant 0.353553385 : f32
    %232 = vector.broadcast %cst_97 : f32 to vector<16x8xf32>
    %233 = arith.mulf %231, %232 : vector<16x8xf32>
    %234 = vector.extract_strided_slice %206 {offsets = [0, 40], sizes = [16, 8], strides = [1, 1]} : vector<16x96xf32> to vector<16x8xf32>
    %235 = vector.extract_strided_slice %206 {offsets = [0, 72], sizes = [16, 8], strides = [1, 1]} : vector<16x96xf32> to vector<16x8xf32>
    %cst_98 = arith.constant dense<0.000000e+00> : vector<16x16xf32>
    %236 = tpu.matmul %233, %234, %cst_98 {dimension_numbers = #tpu.dot_dimension_numbers<[1], [1], [0], [0], [0, 0, 1, 0], [], []>} : vector<16x8xf32>, vector<16x8xf32>, vector<16x16xf32> -> vector<16x16xf32>
    %237 = arith.addf %236, %0 : vector<16x16xf32>
    %cst_99 = arith.constant dense<0xFF800000> : vector<16xf32>
    %238 = vector.multi_reduction <maximumf>, %237, %cst_99 [1] : vector<16x16xf32> to vector<16xf32>
    %239 = vector.shape_cast %238 : vector<16xf32> to vector<16x1xf32>
    %240 = vector.broadcast %239 : vector<16x1xf32> to vector<16x16xf32>
    %241 = arith.subf %237, %240 : vector<16x16xf32>
    %242 = math.exp %241 : vector<16x16xf32>
    %cst_100 = arith.constant dense<0.000000e+00> : vector<16xf32>
    %243 = vector.multi_reduction <add>, %242, %cst_100 [1] : vector<16x16xf32> to vector<16xf32>
    %244 = vector.shape_cast %243 : vector<16xf32> to vector<16x1xf32>
    %245 = tpu.reciprocal %244 {approx = true} : vector<16x1xf32> -> vector<16x1xf32>
    %246 = vector.broadcast %245 : vector<16x1xf32> to vector<16x16xf32>
    %247 = arith.mulf %242, %246 : vector<16x16xf32>
    %cst_101 = arith.constant dense<0.000000e+00> : vector<16x8xf32>
    %248 = tpu.matmul %247, %235, %cst_101 {dimension_numbers = #tpu.dot_dimension_numbers<[1], [0], [0], [1], [0, 0, 1, 1], [], []>} : vector<16x16xf32>, vector<16x8xf32>, vector<16x8xf32> -> vector<16x8xf32>
    %249 = vector.extract_strided_slice %208 {offsets = [8, 0], sizes = [8, 32], strides = [1, 1]} : vector<32x32xf32> to vector<8x32xf32>
    %cst_102 = arith.constant dense<0.000000e+00> : vector<16x32xf32>
    %250 = tpu.matmul %248, %249, %cst_102 {dimension_numbers = #tpu.dot_dimension_numbers<[1], [0], [0], [1], [0, 0, 1, 1], [], []>} : vector<16x8xf32>, vector<8x32xf32>, vector<16x32xf32> -> vector<16x32xf32>
    %251 = arith.addf %230, %250 : vector<16x32xf32>
    %252 = vector.extract_strided_slice %206 {offsets = [0, 16], sizes = [16, 8], strides = [1, 1]} : vector<16x96xf32> to vector<16x8xf32>
    %cst_103 = arith.constant 0.353553385 : f32
    %253 = vector.broadcast %cst_103 : f32 to vector<16x8xf32>
    %254 = arith.mulf %252, %253 : vector<16x8xf32>
    %255 = vector.extract_strided_slice %206 {offsets = [0, 48], sizes = [16, 8], strides = [1, 1]} : vector<16x96xf32> to vector<16x8xf32>
    %256 = vector.extract_strided_slice %206 {offsets = [0, 80], sizes = [16, 8], strides = [1, 1]} : vector<16x96xf32> to vector<16x8xf32>
    %cst_104 = arith.constant dense<0.000000e+00> : vector<16x16xf32>
    %257 = tpu.matmul %254, %255, %cst_104 {dimension_numbers = #tpu.dot_dimension_numbers<[1], [1], [0], [0], [0, 0, 1, 0], [], []>} : vector<16x8xf32>, vector<16x8xf32>, vector<16x16xf32> -> vector<16x16xf32>
    %258 = arith.addf %257, %0 : vector<16x16xf32>
    %cst_105 = arith.constant dense<0xFF800000> : vector<16xf32>
    %259 = vector.multi_reduction <maximumf>, %258, %cst_105 [1] : vector<16x16xf32> to vector<16xf32>
    %260 = vector.shape_cast %259 : vector<16xf32> to vector<16x1xf32>
    %261 = vector.broadcast %260 : vector<16x1xf32> to vector<16x16xf32>
    %262 = arith.subf %258, %261 : vector<16x16xf32>
    %263 = math.exp %262 : vector<16x16xf32>
    %cst_106 = arith.constant dense<0.000000e+00> : vector<16xf32>
    %264 = vector.multi_reduction <add>, %263, %cst_106 [1] : vector<16x16xf32> to vector<16xf32>
    %265 = vector.shape_cast %264 : vector<16xf32> to vector<16x1xf32>
    %266 = tpu.reciprocal %265 {approx = true} : vector<16x1xf32> -> vector<16x1xf32>
    %267 = vector.broadcast %266 : vector<16x1xf32> to vector<16x16xf32>
    %268 = arith.mulf %263, %267 : vector<16x16xf32>
    %cst_107 = arith.constant dense<0.000000e+00> : vector<16x8xf32>
    %269 = tpu.matmul %268, %256, %cst_107 {dimension_numbers = #tpu.dot_dimension_numbers<[1], [0], [0], [1], [0, 0, 1, 1], [], []>} : vector<16x16xf32>, vector<16x8xf32>, vector<16x8xf32> -> vector<16x8xf32>
    %270 = vector.extract_strided_slice %208 {offsets = [16, 0], sizes = [8, 32], strides = [1, 1]} : vector<32x32xf32> to vector<8x32xf32>
    %cst_108 = arith.constant dense<0.000000e+00> : vector<16x32xf32>
    %271 = tpu.matmul %269, %270, %cst_108 {dimension_numbers = #tpu.dot_dimension_numbers<[1], [0], [0], [1], [0, 0, 1, 1], [], []>} : vector<16x8xf32>, vector<8x32xf32>, vector<16x32xf32> -> vector<16x32xf32>
    %272 = arith.addf %251, %271 : vector<16x32xf32>
    %273 = vector.extract_strided_slice %206 {offsets = [0, 24], sizes = [16, 8], strides = [1, 1]} : vector<16x96xf32> to vector<16x8xf32>
    %cst_109 = arith.constant 0.353553385 : f32
    %274 = vector.broadcast %cst_109 : f32 to vector<16x8xf32>
    %275 = arith.mulf %273, %274 : vector<16x8xf32>
    %276 = vector.extract_strided_slice %206 {offsets = [0, 56], sizes = [16, 8], strides = [1, 1]} : vector<16x96xf32> to vector<16x8xf32>
    %277 = vector.extract_strided_slice %206 {offsets = [0, 88], sizes = [16, 8], strides = [1, 1]} : vector<16x96xf32> to vector<16x8xf32>
    %cst_110 = arith.constant dense<0.000000e+00> : vector<16x16xf32>
    %278 = tpu.matmul %275, %276, %cst_110 {dimension_numbers = #tpu.dot_dimension_numbers<[1], [1], [0], [0], [0, 0, 1, 0], [], []>} : vector<16x8xf32>, vector<16x8xf32>, vector<16x16xf32> -> vector<16x16xf32>
    %279 = arith.addf %278, %0 : vector<16x16xf32>
    %cst_111 = arith.constant dense<0xFF800000> : vector<16xf32>
    %280 = vector.multi_reduction <maximumf>, %279, %cst_111 [1] : vector<16x16xf32> to vector<16xf32>
    %281 = vector.shape_cast %280 : vector<16xf32> to vector<16x1xf32>
    %282 = vector.broadcast %281 : vector<16x1xf32> to vector<16x16xf32>
    %283 = arith.subf %279, %282 : vector<16x16xf32>
    %284 = math.exp %283 : vector<16x16xf32>
    %cst_112 = arith.constant dense<0.000000e+00> : vector<16xf32>
    %285 = vector.multi_reduction <add>, %284, %cst_112 [1] : vector<16x16xf32> to vector<16xf32>
    %286 = vector.shape_cast %285 : vector<16xf32> to vector<16x1xf32>
    %287 = tpu.reciprocal %286 {approx = true} : vector<16x1xf32> -> vector<16x1xf32>
    %288 = vector.broadcast %287 : vector<16x1xf32> to vector<16x16xf32>
    %289 = arith.mulf %284, %288 : vector<16x16xf32>
    %cst_113 = arith.constant dense<0.000000e+00> : vector<16x8xf32>
    %290 = tpu.matmul %289, %277, %cst_113 {dimension_numbers = #tpu.dot_dimension_numbers<[1], [0], [0], [1], [0, 0, 1, 1], [], []>} : vector<16x16xf32>, vector<16x8xf32>, vector<16x8xf32> -> vector<16x8xf32>
    %291 = vector.extract_strided_slice %208 {offsets = [24, 0], sizes = [8, 32], strides = [1, 1]} : vector<32x32xf32> to vector<8x32xf32>
    %cst_114 = arith.constant dense<0.000000e+00> : vector<16x32xf32>
    %292 = tpu.matmul %290, %291, %cst_114 {dimension_numbers = #tpu.dot_dimension_numbers<[1], [0], [0], [1], [0, 0, 1, 1], [], []>} : vector<16x8xf32>, vector<8x32xf32>, vector<16x32xf32> -> vector<16x32xf32>
    %293 = arith.addf %272, %292 : vector<16x32xf32>
    %c1_115 = arith.constant 1 : index
    %c0_116 = arith.constant 0 : index
    %c0_117 = arith.constant 0 : index
    %294 = vector.load %arg7[%c1_115, %c0_116, %c0_117] : memref<2x1x32xf32, #tpu.memory_space<vmem>>, vector<1x1x32xf32>
    %295 = vector.shape_cast %294 : vector<1x1x32xf32> to vector<1x32xf32>
    %296 = vector.broadcast %295 : vector<1x32xf32> to vector<16x32xf32>
    %297 = arith.addf %293, %296 : vector<16x32xf32>
    %298 = arith.addf %199, %297 : vector<16x32xf32>
    %c1_118 = arith.constant 1 : index
    %c0_119 = arith.constant 0 : index
    %c0_120 = arith.constant 0 : index
    %299 = vector.load %arg8[%c1_118, %c0_119, %c0_120] : memref<2x2x32xf32, #tpu.memory_space<vmem>>, vector<1x2x32xf32>
    %300 = vector.shape_cast %299 : vector<1x2x32xf32> to vector<2x32xf32>
    %301 = vector.extract_strided_slice %300 {offsets = [0, 0], sizes = [1, 32], strides = [1, 1]} : vector<2x32xf32> to vector<1x32xf32>
    %302 = vector.extract_strided_slice %300 {offsets = [1, 0], sizes = [1, 32], strides = [1, 1]} : vector<2x32xf32> to vector<1x32xf32>
    %cst_121 = arith.constant dense<0.000000e+00> : vector<16xf32>
    %303 = vector.multi_reduction <add>, %298, %cst_121 [1] : vector<16x32xf32> to vector<16xf32>
    %304 = vector.shape_cast %303 : vector<16xf32> to vector<16x1xf32>
    %cst_122 = arith.constant 3.200000e+01 : f32
    %305 = vector.broadcast %cst_122 : f32 to vector<16x1xf32>
    %306 = arith.divf %304, %305 : vector<16x1xf32>
    %307 = vector.broadcast %306 : vector<16x1xf32> to vector<16x32xf32>
    %308 = arith.subf %298, %307 : vector<16x32xf32>
    %309 = arith.mulf %308, %308 : vector<16x32xf32>
    %cst_123 = arith.constant dense<0.000000e+00> : vector<16xf32>
    %310 = vector.multi_reduction <add>, %309, %cst_123 [1] : vector<16x32xf32> to vector<16xf32>
    %311 = vector.shape_cast %310 : vector<16xf32> to vector<16x1xf32>
    %cst_124 = arith.constant 3.200000e+01 : f32
    %312 = vector.broadcast %cst_124 : f32 to vector<16x1xf32>
    %313 = arith.divf %311, %312 : vector<16x1xf32>
    %cst_125 = arith.constant 9.99999996E-13 : f32
    %314 = vector.broadcast %cst_125 : f32 to vector<16x1xf32>
    %315 = arith.addf %313, %314 : vector<16x1xf32>
    %316 = math.rsqrt %315 : vector<16x1xf32>
    %317 = vector.broadcast %316 : vector<16x1xf32> to vector<16x32xf32>
    %318 = arith.mulf %308, %317 : vector<16x32xf32>
    %319 = vector.broadcast %301 : vector<1x32xf32> to vector<16x32xf32>
    %320 = arith.mulf %318, %319 : vector<16x32xf32>
    %321 = vector.broadcast %302 : vector<1x32xf32> to vector<16x32xf32>
    %322 = arith.addf %320, %321 : vector<16x32xf32>
    %c1_126 = arith.constant 1 : index
    %c0_127 = arith.constant 0 : index
    %c0_128 = arith.constant 0 : index
    %323 = vector.load %arg9[%c1_126, %c0_127, %c0_128] : memref<2x32x64xf32, #tpu.memory_space<vmem>>, vector<1x32x64xf32>
    %324 = vector.shape_cast %323 : vector<1x32x64xf32> to vector<32x64xf32>
    %c1_129 = arith.constant 1 : index
    %c0_130 = arith.constant 0 : index
    %c0_131 = arith.constant 0 : index
    %325 = vector.load %arg10[%c1_129, %c0_130, %c0_131] : memref<2x1x64xf32, #tpu.memory_space<vmem>>, vector<1x1x64xf32>
    %326 = vector.shape_cast %325 : vector<1x1x64xf32> to vector<1x64xf32>
    %cst_132 = arith.constant dense<0.000000e+00> : vector<16x64xf32>
    %327 = tpu.matmul %322, %324, %cst_132 {dimension_numbers = #tpu.dot_dimension_numbers<[1], [0], [0], [1], [0, 0, 1, 1], [], []>} : vector<16x32xf32>, vector<32x64xf32>, vector<16x64xf32> -> vector<16x64xf32>
    %328 = vector.broadcast %326 : vector<1x64xf32> to vector<16x64xf32>
    %329 = arith.addf %327, %328 : vector<16x64xf32>
    %330 = arith.mulf %329, %329 : vector<16x64xf32>
    %331 = arith.mulf %329, %330 : vector<16x64xf32>
    %cst_133 = arith.constant 4.471500e-02 : f32
    %332 = vector.broadcast %cst_133 : f32 to vector<16x64xf32>
    %333 = arith.mulf %332, %331 : vector<16x64xf32>
    %334 = arith.addf %329, %333 : vector<16x64xf32>
    %cst_134 = arith.constant 0.797884583 : f32
    %335 = vector.broadcast %cst_134 : f32 to vector<16x64xf32>
    %336 = arith.mulf %335, %334 : vector<16x64xf32>
    %337 = math.tanh %336 : vector<16x64xf32>
    %cst_135 = arith.constant 1.000000e+00 : f32
    %338 = vector.broadcast %cst_135 : f32 to vector<16x64xf32>
    %339 = arith.addf %338, %337 : vector<16x64xf32>
    %cst_136 = arith.constant 5.000000e-01 : f32
    %340 = vector.broadcast %cst_136 : f32 to vector<16x64xf32>
    %341 = arith.mulf %340, %339 : vector<16x64xf32>
    %342 = arith.mulf %329, %341 : vector<16x64xf32>
    %c1_137 = arith.constant 1 : index
    %c0_138 = arith.constant 0 : index
    %c0_139 = arith.constant 0 : index
    %343 = vector.load %arg11[%c1_137, %c0_138, %c0_139] : memref<2x64x32xf32, #tpu.memory_space<vmem>>, vector<1x64x32xf32>
    %344 = vector.shape_cast %343 : vector<1x64x32xf32> to vector<64x32xf32>
    %c1_140 = arith.constant 1 : index
    %c0_141 = arith.constant 0 : index
    %c0_142 = arith.constant 0 : index
    %345 = vector.load %arg12[%c1_140, %c0_141, %c0_142] : memref<2x1x32xf32, #tpu.memory_space<vmem>>, vector<1x1x32xf32>
    %346 = vector.shape_cast %345 : vector<1x1x32xf32> to vector<1x32xf32>
    %cst_143 = arith.constant dense<0.000000e+00> : vector<16x32xf32>
    %347 = tpu.matmul %342, %344, %cst_143 {dimension_numbers = #tpu.dot_dimension_numbers<[1], [0], [0], [1], [0, 0, 1, 1], [], []>} : vector<16x64xf32>, vector<64x32xf32>, vector<16x32xf32> -> vector<16x32xf32>
    %348 = vector.broadcast %346 : vector<1x32xf32> to vector<16x32xf32>
    %349 = arith.addf %347, %348 : vector<16x32xf32>
    %350 = arith.addf %322, %349 : vector<16x32xf32>
    %c1_144 = arith.constant 1 : index
    %c0_145 = arith.constant 0 : index
    %c0_146 = arith.constant 0 : index
    %351 = vector.load %arg13[%c1_144, %c0_145, %c0_146] : memref<2x2x32xf32, #tpu.memory_space<vmem>>, vector<1x2x32xf32>
    %352 = vector.shape_cast %351 : vector<1x2x32xf32> to vector<2x32xf32>
    %353 = vector.extract_strided_slice %352 {offsets = [0, 0], sizes = [1, 32], strides = [1, 1]} : vector<2x32xf32> to vector<1x32xf32>
    %354 = vector.extract_strided_slice %352 {offsets = [1, 0], sizes = [1, 32], strides = [1, 1]} : vector<2x32xf32> to vector<1x32xf32>
    %cst_147 = arith.constant dense<0.000000e+00> : vector<16xf32>
    %355 = vector.multi_reduction <add>, %350, %cst_147 [1] : vector<16x32xf32> to vector<16xf32>
    %356 = vector.shape_cast %355 : vector<16xf32> to vector<16x1xf32>
    %cst_148 = arith.constant 3.200000e+01 : f32
    %357 = vector.broadcast %cst_148 : f32 to vector<16x1xf32>
    %358 = arith.divf %356, %357 : vector<16x1xf32>
    %359 = vector.broadcast %358 : vector<16x1xf32> to vector<16x32xf32>
    %360 = arith.subf %350, %359 : vector<16x32xf32>
    %361 = arith.mulf %360, %360 : vector<16x32xf32>
    %cst_149 = arith.constant dense<0.000000e+00> : vector<16xf32>
    %362 = vector.multi_reduction <add>, %361, %cst_149 [1] : vector<16x32xf32> to vector<16xf32>
    %363 = vector.shape_cast %362 : vector<16xf32> to vector<16x1xf32>
    %cst_150 = arith.constant 3.200000e+01 : f32
    %364 = vector.broadcast %cst_150 : f32 to vector<16x1xf32>
    %365 = arith.divf %363, %364 : vector<16x1xf32>
    %cst_151 = arith.constant 9.99999996E-13 : f32
    %366 = vector.broadcast %cst_151 : f32 to vector<16x1xf32>
    %367 = arith.addf %365, %366 : vector<16x1xf32>
    %368 = math.rsqrt %367 : vector<16x1xf32>
    %369 = vector.broadcast %368 : vector<16x1xf32> to vector<16x32xf32>
    %370 = arith.mulf %360, %369 : vector<16x32xf32>
    %371 = vector.broadcast %353 : vector<1x32xf32> to vector<16x32xf32>
    %372 = arith.mulf %370, %371 : vector<16x32xf32>
    %373 = vector.broadcast %354 : vector<1x32xf32> to vector<16x32xf32>
    %374 = arith.addf %372, %373 : vector<16x32xf32>
    %c0_152 = arith.constant 0 : index
    %c0_153 = arith.constant 0 : index
    %375 = vector.load %arg14[%c0_152, %c0_153] : memref<32x32xf32, #tpu.memory_space<vmem>>, vector<32x32xf32>
    %c0_154 = arith.constant 0 : index
    %c0_155 = arith.constant 0 : index
    %376 = vector.load %arg15[%c0_154, %c0_155] : memref<1x32xf32, #tpu.memory_space<vmem>>, vector<1x32xf32>
    %cst_156 = arith.constant dense<0.000000e+00> : vector<16x32xf32>
    %377 = tpu.matmul %374, %375, %cst_156 {dimension_numbers = #tpu.dot_dimension_numbers<[1], [0], [0], [1], [0, 0, 1, 1], [], []>} : vector<16x32xf32>, vector<32x32xf32>, vector<16x32xf32> -> vector<16x32xf32>
    %378 = vector.broadcast %376 : vector<1x32xf32> to vector<16x32xf32>
    %379 = arith.addf %377, %378 : vector<16x32xf32>
    %380 = math.tanh %379 : vector<16x32xf32>
    %c0_157 = arith.constant 0 : index
    %c0_158 = arith.constant 0 : index
    %381 = vector.load %arg16[%c0_157, %c0_158] : memref<32x128xf32, #tpu.memory_space<vmem>>, vector<32x128xf32>
    %c0_159 = arith.constant 0 : index
    %c0_160 = arith.constant 0 : index
    %382 = vector.load %arg17[%c0_159, %c0_160] : memref<1x128xf32, #tpu.memory_space<vmem>>, vector<1x128xf32>
    %cst_161 = arith.constant dense<0.000000e+00> : vector<16x128xf32>
    %383 = tpu.matmul %380, %381, %cst_161 {dimension_numbers = #tpu.dot_dimension_numbers<[1], [0], [0], [1], [0, 0, 1, 1], [], []>} : vector<16x32xf32>, vector<32x128xf32>, vector<16x128xf32> -> vector<16x128xf32>
    %384 = vector.broadcast %382 : vector<1x128xf32> to vector<16x128xf32>
    %385 = arith.addf %383, %384 : vector<16x128xf32>
    %c0_162 = arith.constant 0 : index
    %c0_163 = arith.constant 0 : index
    %386 = vector.load %arg18[%c0_162, %c0_163] : memref<16x128xf32, #tpu.memory_space<vmem>>, vector<16x128xf32>
    tpu.vector_store %arg18[%c0_162, %c0_163], %385 {strides = array<i32>} : memref<16x128xf32, #tpu.memory_space<vmem>>, vector<16x128xf32>,
    return
  }
  func.func @transform_0(%arg0: i32) -> (i32, i32) {
    %c0_i32 = arith.constant 0 : i32
    %c0_i32_0 = arith.constant 0 : i32
    %c0_i32_1 = arith.constant 0 : i32
    return %c0_i32, %c0_i32_0 : i32, i32
  }
  func.func @transform_1(%arg0: i32) -> (i32, i32) {
    %c0_i32 = arith.constant 0 : i32
    %c0_i32_0 = arith.constant 0 : i32
    %c0_i32_1 = arith.constant 0 : i32
    return %c0_i32, %c0_i32_0 : i32, i32
  }
  func.func @transform_2(%arg0: i32) -> (i32, i32) {
    %c0_i32 = arith.constant 0 : i32
    %c0_i32_0 = arith.constant 0 : i32
    %c0_i32_1 = arith.constant 0 : i32
    return %c0_i32, %c0_i32_0 : i32, i32
  }
  func.func @transform_3(%arg0: i32) -> (i32, i32, i32) {
    %c0_i32 = arith.constant 0 : i32
    %c0_i32_0 = arith.constant 0 : i32
    %c0_i32_1 = arith.constant 0 : i32
    %c0_i32_2 = arith.constant 0 : i32
    return %c0_i32, %c0_i32_0, %c0_i32_1 : i32, i32, i32
  }
  func.func @transform_4(%arg0: i32) -> (i32, i32, i32) {
    %c0_i32 = arith.constant 0 : i32
    %c0_i32_0 = arith.constant 0 : i32
    %c0_i32_1 = arith.constant 0 : i32
    %c0_i32_2 = arith.constant 0 : i32
    return %c0_i32, %c0_i32_0, %c0_i32_1 : i32, i32, i32
  }
  func.func @transform_5(%arg0: i32) -> (i32, i32, i32) {
    %c0_i32 = arith.constant 0 : i32
    %c0_i32_0 = arith.constant 0 : i32
    %c0_i32_1 = arith.constant 0 : i32
    %c0_i32_2 = arith.constant 0 : i32
    return %c0_i32, %c0_i32_0, %c0_i32_1 : i32, i32, i32
  }
  func.func @transform_6(%arg0: i32) -> (i32, i32, i32) {
    %c0_i32 = arith.constant 0 : i32
    %c0_i32_0 = arith.constant 0 : i32
    %c0_i32_1 = arith.constant 0 : i32
    %c0_i32_2 = arith.constant 0 : i32
    return %c0_i32, %c0_i32_0, %c0_i32_1 : i32, i32, i32
  }
  func.func @transform_7(%arg0: i32) -> (i32, i32, i32) {
    %c0_i32 = arith.constant 0 : i32
    %c0_i32_0 = arith.constant 0 : i32
    %c0_i32_1 = arith.constant 0 : i32
    %c0_i32_2 = arith.constant 0 : i32
    return %c0_i32, %c0_i32_0, %c0_i32_1 : i32, i32, i32
  }
  func.func @transform_8(%arg0: i32) -> (i32, i32, i32) {
    %c0_i32 = arith.constant 0 : i32
    %c0_i32_0 = arith.constant 0 : i32
    %c0_i32_1 = arith.constant 0 : i32
    %c0_i32_2 = arith.constant 0 : i32
    return %c0_i32, %c0_i32_0, %c0_i32_1 : i32, i32, i32
  }
  func.func @transform_9(%arg0: i32) -> (i32, i32, i32) {
    %c0_i32 = arith.constant 0 : i32
    %c0_i32_0 = arith.constant 0 : i32
    %c0_i32_1 = arith.constant 0 : i32
    %c0_i32_2 = arith.constant 0 : i32
    return %c0_i32, %c0_i32_0, %c0_i32_1 : i32, i32, i32
  }
  func.func @transform_10(%arg0: i32) -> (i32, i32, i32) {
    %c0_i32 = arith.constant 0 : i32
    %c0_i32_0 = arith.constant 0 : i32
    %c0_i32_1 = arith.constant 0 : i32
    %c0_i32_2 = arith.constant 0 : i32
    return %c0_i32, %c0_i32_0, %c0_i32_1 : i32, i32, i32
  }
  func.func @transform_11(%arg0: i32) -> (i32, i32, i32) {
    %c0_i32 = arith.constant 0 : i32
    %c0_i32_0 = arith.constant 0 : i32
    %c0_i32_1 = arith.constant 0 : i32
    %c0_i32_2 = arith.constant 0 : i32
    return %c0_i32, %c0_i32_0, %c0_i32_1 : i32, i32, i32
  }
  func.func @transform_12(%arg0: i32) -> (i32, i32, i32) {
    %c0_i32 = arith.constant 0 : i32
    %c0_i32_0 = arith.constant 0 : i32
    %c0_i32_1 = arith.constant 0 : i32
    %c0_i32_2 = arith.constant 0 : i32
    return %c0_i32, %c0_i32_0, %c0_i32_1 : i32, i32, i32
  }
  func.func @transform_13(%arg0: i32) -> (i32, i32) {
    %c0_i32 = arith.constant 0 : i32
    %c0_i32_0 = arith.constant 0 : i32
    %c0_i32_1 = arith.constant 0 : i32
    return %c0_i32, %c0_i32_0 : i32, i32
  }
  func.func @transform_14(%arg0: i32) -> (i32, i32) {
    %c0_i32 = arith.constant 0 : i32
    %c0_i32_0 = arith.constant 0 : i32
    %c0_i32_1 = arith.constant 0 : i32
    return %c0_i32, %c0_i32_0 : i32, i32
  }
  func.func @transform_15(%arg0: i32) -> (i32, i32) {
    %c0_i32 = arith.constant 0 : i32
    %c0_i32_0 = arith.constant 0 : i32
    %c0_i32_1 = arith.constant 0 : i32
    return %c0_i32, %c0_i32_0 : i32, i32
  }
  func.func @transform_16(%arg0: i32) -> (i32, i32) {
    %c0_i32 = arith.constant 0 : i32
    %c0_i32_0 = arith.constant 0 : i32
    %c0_i32_1 = arith.constant 0 : i32
    return %c0_i32, %c0_i32_0 : i32, i32
  }
  func.func @transform_17(%arg0: i32) -> (i32, i32) {
    %c0_i32 = arith.constant 0 : i32
    %c0_i32_0 = arith.constant 0 : i32
    %c0_i32_1 = arith.constant 0 : i32
    return %c0_i32, %c0_i32_0 : i32, i32
  }
}

</mosaic_0001>

<llo_original>
// kernel: bert_classifier_forward.1
$region0: #{bert_classifier_forward.1}
  #allocation0 [shape = 'u32[]', space=smem, size = 0x4, offset = 0x4, fixed_abs, tag = 'smem constant byte address 0x4 - core index']
  #allocation1 [shape = 'u32[144,128]{1,0:T(1,128)}', space=vmem, size = 0x12000, scoped, tag = 'internal scratch']
  %s0 = inlined_call_operand.vmem [shape: f32[16,32], index: 0, kind: input, shape index: {}]
  %s1 = inlined_call_operand.vmem [shape: f32[16,16], index: 1, kind: input, shape index: {}]
  %s2 = inlined_call_operand.vmem [shape: f32[2,32], index: 2, kind: input, shape index: {}]
  %s3 = inlined_call_operand.vmem [shape: f32[2,32,96], index: 3, kind: input, shape index: {}]
  %s4 = inlined_call_operand.vmem [shape: f32[2,1,96], index: 4, kind: input, shape index: {}]
  %s5 = inlined_call_operand.vmem [shape: f32[2,32,32], index: 5, kind: input, shape index: {}]
  %s6 = inlined_call_operand.vmem [shape: f32[2,1,32], index: 6, kind: input, shape index: {}]
  %s7 = inlined_call_operand.vmem [shape: f32[2,2,32], index: 7, kind: input, shape index: {}]
  %s8 = inlined_call_operand.vmem [shape: f32[2,32,64], index: 8, kind: input, shape index: {}]
  %s9 = inlined_call_operand.vmem [shape: f32[2,1,64], index: 9, kind: input, shape index: {}]
  %s10 = inlined_call_operand.vmem [shape: f32[2,64,32], index: 10, kind: input, shape index: {}]
  %s11 = inlined_call_operand.vmem [shape: f32[2,1,32], index: 11, kind: input, shape index: {}]
  %s12 = inlined_call_operand.vmem [shape: f32[2,2,32], index: 12, kind: input, shape index: {}]
  %s13 = inlined_call_operand.vmem [shape: f32[32,32], index: 13, kind: input, shape index: {}]
  %s14 = inlined_call_operand.vmem [shape: f32[1,32], index: 14, kind: input, shape index: {}]
  %s15 = inlined_call_operand.vmem [shape: f32[32,128], index: 15, kind: input, shape index: {}]
  %s16 = inlined_call_operand.vmem [shape: f32[1,128], index: 16, kind: input, shape index: {}]
  %s17 = inlined_call_operand.vmem [shape: f32[16,128], index: 17, kind: output, shape index: {}]
  %s18 = sld [smem:[#allocation0]]
  $region78: #{bert_classifier_forward.1} parent=0
    _
  %s20 = ssub.s32 1, %s18
  %s21 = scalar_select 0, %s20, %s18
  // Predicated region
  $region2: #{bert_classifier_forward.1} parent=0 // pred_check
    _
  $region3: #{bert_classifier_forward.1} parent=0 // pred_check_branch
    %23 = sbr.rel (0) target = $region5
  $region4: #{bert_classifier_forward.1} parent=0 // pred_region
    _
  $region5: #{bert_classifier_forward.1} parent=0 // pred_fallthru
    _
  // Predicated region
  $region6: #{bert_classifier_forward.1} parent=0 // pred_check
    _
  $region7: #{bert_classifier_forward.1} parent=0 // pred_check_branch
    %25 = sbr.rel (0) target = $region9
  $region8: #{bert_classifier_forward.1} parent=0 // pred_region
    _
  $region9: #{bert_classifier_forward.1} parent=0 // pred_fallthru
    _
  // Predicated region
  $region10: #{bert_classifier_forward.1} parent=0 // pred_check
    _
  $region11: #{bert_classifier_forward.1} parent=0 // pred_check_branch
    %27 = sbr.rel (0) target = $region13
  $region12: #{bert_classifier_forward.1} parent=0 // pred_region
    _
  $region13: #{bert_classifier_forward.1} parent=0 // pred_fallthru
    _
  // Predicated region
  $region14: #{bert_classifier_forward.1} parent=0 // pred_check
    _
  $region15: #{bert_classifier_forward.1} parent=0 // pred_check_branch
    %29 = sbr.rel (0) target = $region17
  $region16: #{bert_classifier_forward.1} parent=0 // pred_region
    _
  $region17: #{bert_classifier_forward.1} parent=0 // pred_fallthru
    _
  // Predicated region
  $region18: #{bert_classifier_forward.1} parent=0 // pred_check
    _
  $region19: #{bert_classifier_forward.1} parent=0 // pred_check_branch
    %31 = sbr.rel (0) target = $region21
  $region20: #{bert_classifier_forward.1} parent=0 // pred_region
    _
  $region21: #{bert_classifier_forward.1} parent=0 // pred_fallthru
    _
  // Predicated region
  $region22: #{bert_classifier_forward.1} parent=0 // pred_check
    _
  $region23: #{bert_classifier_forward.1} parent=0 // pred_check_branch
    %33 = sbr.rel (0) target = $region25
  $region24: #{bert_classifier_forward.1} parent=0 // pred_region
    _
  $region25: #{bert_classifier_forward.1} parent=0 // pred_fallthru
    _
  // Predicated region
  $region26: #{bert_classifier_forward.1} parent=0 // pred_check
    _
  $region27: #{bert_classifier_forward.1} parent=0 // pred_check_branch
    %35 = sbr.rel (0) target = $region29
  $region28: #{bert_classifier_forward.1} parent=0 // pred_region
    _
  $region29: #{bert_classifier_forward.1} parent=0 // pred_fallthru
    _
  // Predicated region
  $region30: #{bert_classifier_forward.1} parent=0 // pred_check
    _
  $region31: #{bert_classifier_forward.1} parent=0 // pred_check_branch
    %37 = sbr.rel (0) target = $region33
  $region32: #{bert_classifier_forward.1} parent=0 // pred_region
    _
  $region33: #{bert_classifier_forward.1} parent=0 // pred_fallthru
    _
  // Predicated region
  $region34: #{bert_classifier_forward.1} parent=0 // pred_check
    _
  $region35: #{bert_classifier_forward.1} parent=0 // pred_check_branch
    %39 = sbr.rel (0) target = $region37
  $region36: #{bert_classifier_forward.1} parent=0 // pred_region
    _
  $region37: #{bert_classifier_forward.1} parent=0 // pred_fallthru
    _
  // Predicated region
  $region38: #{bert_classifier_forward.1} parent=0 // pred_check
    _
  $region39: #{bert_classifier_forward.1} parent=0 // pred_check_branch
    %41 = sbr.rel (0) target = $region41
  $region40: #{bert_classifier_forward.1} parent=0 // pred_region
    _
  $region41: #{bert_classifier_forward.1} parent=0 // pred_fallthru
    _
  // Predicated region
  $region42: #{bert_classifier_forward.1} parent=0 // pred_check
    _
  $region43: #{bert_classifier_forward.1} parent=0 // pred_check_branch
    %43 = sbr.rel (0) target = $region45
  $region44: #{bert_classifier_forward.1} parent=0 // pred_region
    _
  $region45: #{bert_classifier_forward.1} parent=0 // pred_fallthru
    _
  // Predicated region
  $region46: #{bert_classifier_forward.1} parent=0 // pred_check
    _
  $region47: #{bert_classifier_forward.1} parent=0 // pred_check_branch
    %45 = sbr.rel (0) target = $region49
  $region48: #{bert_classifier_forward.1} parent=0 // pred_region
    _
  $region49: #{bert_classifier_forward.1} parent=0 // pred_fallthru
    _
  // Predicated region
  $region50: #{bert_classifier_forward.1} parent=0 // pred_check
    _
  $region51: #{bert_classifier_forward.1} parent=0 // pred_check_branch
    %47 = sbr.rel (0) target = $region53
  $region52: #{bert_classifier_forward.1} parent=0 // pred_region
    _
  $region53: #{bert_classifier_forward.1} parent=0 // pred_fallthru
    _
  // Predicated region
  $region54: #{bert_classifier_forward.1} parent=0 // pred_check
    _
  $region55: #{bert_classifier_forward.1} parent=0 // pred_check_branch
    %49 = sbr.rel (0) target = $region57
  $region56: #{bert_classifier_forward.1} parent=0 // pred_region
    _
  $region57: #{bert_classifier_forward.1} parent=0 // pred_fallthru
    _
  // Predicated region
  $region58: #{bert_classifier_forward.1} parent=0 // pred_check
    _
  $region59: #{bert_classifier_forward.1} parent=0 // pred_check_branch
    %51 = sbr.rel (0) target = $region61
  $region60: #{bert_classifier_forward.1} parent=0 // pred_region
    _
  $region61: #{bert_classifier_forward.1} parent=0 // pred_fallthru
    _
  // Predicated region
  $region62: #{bert_classifier_forward.1} parent=0 // pred_check
    _
  $region63: #{bert_classifier_forward.1} parent=0 // pred_check_branch
    %53 = sbr.rel (0) target = $region65
  $region64: #{bert_classifier_forward.1} parent=0 // pred_region
    _
  $region65: #{bert_classifier_forward.1} parent=0 // pred_fallthru
    _
  // Predicated region
  $region66: #{bert_classifier_forward.1} parent=0 // pred_check
    _
  $region67: #{bert_classifier_forward.1} parent=0 // pred_check_branch
    %55 = sbr.rel (0) target = $region69
  $region68: #{bert_classifier_forward.1} parent=0 // pred_region
    _
  $region69: #{bert_classifier_forward.1} parent=0 // pred_fallthru
    _
  %v56 = vld [vmem:[%s1] sm:$0xff]
  %v57 = vld [vmem:[%s1 + $0x8] sm:$0xff]
  %v58 = vld [vmem:[%s0] sm:$0xff]
  %v59 = vld [vmem:[%s0 + $0x8] sm:$0xff]
  %v60 = vld [vmem:[%s2] sm:$0x3]
  %vm61 = vcmask 261120
  %v62 = vsel %vm61, %v58, 0.0
  %63 = vadd.xlane.f32.xlu0 %v62
  %v64 = vpop.xlane.xlu0 %63
  %v65 = vsel %vm61, %v59, 0.0
  %66 = vadd.xlane.f32.xlu0 %v65
  %v67 = vpop.xlane.xlu0 %66
  %v68 = vrcp.pop 32.0
  %v69 = vmul.f32 %v64, %v68
  %v70 = vmul.f32 %v67, %v68
  %v71 = vsub.f32 %v58, %v69
  %v72 = vsub.f32 %v59, %v70
  %v73 = vmul.f32 %v71, %v71
  %v74 = vmul.f32 %v72, %v72
  %v75 = vsel %vm61, %v73, 0.0
  %76 = vadd.xlane.f32.xlu0 %v75
  %v77 = vpop.xlane.xlu0 %76
  %v78 = vsel %vm61, %v74, 0.0
  %79 = vadd.xlane.f32.xlu0 %v78
  %v80 = vpop.xlane.xlu0 %79
  %v81 = vmul.f32 %v77, %v68
  %v82 = vmul.f32 %v80, %v68
  %v83 = vadd.f32 %v81, 1e-12
  %v84 = vadd.f32 %v82, 1e-12
  %v85 = vrsqrt.pop %v83
  %v86 = vrsqrt.pop %v84
  %v87 = vmul.f32 %v71, %v85
  %v88 = vmul.f32 %v72, %v86
  %v89 = vlaneseq
  %v90 = vshrl.u32 %v89, 7
  %v91 = vsub.s32 0, %v90
  %v92 = vrot.slane %v60, %v91
  %v93 = vmul.f32 %v87, %v92
  %v94 = vmul.f32 %v88, %v92
  %v95 = vlaneseq
  %v96 = vshrl.u32 %v95, 7
  %v97 = vsub.s32 1, %v96
  %v98 = vrot.slane %v60, %v97
  %v99 = vadd.f32 %v93, %v98
  %v100 = vadd.f32 %v94, %v98
  %v101 = vld [vmem:[%s3] sm:$0xff]
  %v102 = vld [vmem:[%s3 + $0x8] sm:$0xff]
  %v103 = vld [vmem:[%s3 + $0x10] sm:$0xff]
  %v104 = vld [vmem:[%s3 + $0x18] sm:$0xff]
  %v105 = vld [vmem:[%s4] sm:$0x1]
  %v107 = vlaneseq
  %v108 = vshrl.u32 %v107, 7
  %v109 = vsub.s32 0, %v108
  %v110 = vrot.slane %v105, %v109
  %v113 = vsel %vm61, %v99, 0
  %v116 = vsel %vm61, %v100, 0
  %118 = vmatprep.subr.mxu0 0.0
  %119 = vmatpush1.msra.mxu0 %v101
  %120 = vmatprep.subr.mxu0 0.0
  %121 = vmatpush1.msra.mxu0 %v102
  %122 = vmatprep.subr.mxu0 0.0
  %123 = vmatpush1.msra.mxu0 %v103
  %124 = vmatprep.subr.mxu0 0.0
  %125 = vmatpush1.msra.mxu0 %v104
  %126 = vmatprep.subr.mxu0 0.0
  %127 = vmatpush1.msra.mxu0 0.0
  %128 = vmatprep.subr.mxu0 0.0
  %129 = vmatpush1.msra.mxu0 0.0
  %130 = vmatprep.subr.mxu0 0.0
  %131 = vmatpush1.msra.mxu0 0.0
  %132 = vmatprep.subr.mxu0 0.0
  %133 = vmatpush1.msra.mxu0 0.0
  %134 = vmatprep.subr.mxu0 0.0
  %135 = vmatpush1.msra.mxu0 0.0
  %136 = vmatprep.subr.mxu0 0.0
  %137 = vmatpush1.msra.mxu0 0.0
  %138 = vmatprep.subr.mxu0 0.0
  %139 = vmatpush1.msra.mxu0 0.0
  %140 = vmatprep.subr.mxu0 0.0
  %141 = vmatpush1.msra.mxu0 0.0
  %142 = vmatprep.subr.mxu0 0.0
  %143 = vmatpush1.msra.mxu0 0.0
  %144 = vmatprep.subr.mxu0 0.0
  %145 = vmatpush1.msra.mxu0 0.0
  %146 = vmatprep.subr.mxu0 0.0
  %147 = vmatpush1.msra.mxu0 0.0
  %148 = vmatprep.subr.mxu0 0.0
  %149 = vmatpush1.msra.mxu0 0.0
  %150 = vmatprep.subr.mxu0 0.0
  %151 = vmatpush1.msra.mxu0 0.0
  %152 = vmatprep.subr.mxu0 0.0
  %153 = vmatpush1.msra.mxu0 0.0
  %154 = vmatprep.subr.mxu0 0.0
  %155 = vmatpush1.msra.mxu0 0.0
  %156 = vmatprep.subr.mxu0 0.0
  %157 = vmatpush1.msra.mxu0 0.0
  %158 = vmatprep.subr.mxu0 0.0
  %159 = vmatpush1.msra.mxu0 0.0
  %160 = vmatprep.subr.mxu0 0.0
  %161 = vmatpush1.msra.mxu0 0.0
  %162 = vmatprep.subr.mxu0 0.0
  %163 = vmatpush1.msra.mxu0 0.0
  %164 = vmatprep.subr.mxu0 0.0
  %165 = vmatpush1.msra.mxu0 0.0
  %166 = vmatprep.subr.mxu0 0.0
  %167 = vmatpush1.msra.mxu0 0.0
  %168 = vmatprep.subr.mxu0 0.0
  %169 = vmatpush1.msra.mxu0 0.0
  %170 = vmatprep.subr.mxu0 0.0
  %171 = vmatpush1.msra.mxu0 0.0
  %172 = vmatprep.subr.mxu0 0.0
  %173 = vmatpush1.msra.mxu0 0.0
  %174 = vmatprep.subr.mxu0 0.0
  %175 = vmatpush1.msra.mxu0 0.0
  %176 = vmatprep.subr.mxu0 0.0
  %177 = vmatpush1.msra.mxu0 0.0
  %178 = vmatprep.subr.mxu0 0.0
  %179 = vmatpush1.msra.mxu0 0.0
  %180 = vmatprep.subr.mxu0 0.0
  %181 = vmatpush1.msra.mxu0 0.0
  %182 = vmatprep.mubr.f32.mxu0 0.0
  %183 = vmatmul.mubr.f32.gmra.mrb[0].mxu0 %v113
  %v184 = vpop.f32.mrb[0].mxu0
  %v185 = vadd.f32 %v110, %v184
  %v186 = vpop.f32.mrb[0].mxu0
  %187 = vmatprep.mubr.f32.mxu0 0.0
  %188 = vmatmul.mubr.f32.gmra.mrb[0].mxu0 %v116
  %v189 = vpop.f32.mrb[0].mxu0
  %v190 = vadd.f32 %v110, %v189
  %v191 = vpop.f32.mrb[0].mxu0
  %192 = vdwg.mxu0
  %v193 = vld [vmem:[%s5] sm:$0xff]
  %v194 = vld [vmem:[%s5 + $0x8] sm:$0xff]
  %v195 = vld [vmem:[%s5 + $0x10] sm:$0xff]
  %v196 = vld [vmem:[%s5 + $0x18] sm:$0xff]
  %v197 = vmul.f32 %v185, 0.35355338
  %v198 = vmul.f32 %v190, 0.35355338
  %201 = vrot.lane.b32.xlu0 %v185, 96
  %v202 = vpop.permute.xlu0 %201
  %203 = vrot.lane.b32.xlu0 %v190, 96
  %v204 = vpop.permute.xlu0 %203
  %vm205 = vcmask 64512
  %v207 = vsel %vm205, %v197, 0
  %v210 = vsel %vm205, %v198, 0
  %v212 = vsel %vm205, %v202, 0
  %v214 = vsel %vm205, %v204, 0
  %216 = vmatprep.subr.mxu0 0.0
  %217 = vmatpush1.xpose.msra.mxu0 %v212
  %218 = vmatprep.subr.mxu0 0.0
  %219 = vmatpush1.xpose.msra.mxu0 %v214
  %220 = vmatprep.subr.mxu0 0.0
  %221 = vmatpush1.xpose.msra.mxu0 0.0
  %222 = vmatprep.subr.mxu0 0.0
  %223 = vmatpush1.xpose.msra.mxu0 0.0
  %224 = vmatprep.subr.mxu0 0.0
  %225 = vmatpush1.xpose.msra.mxu0 0.0
  %226 = vmatprep.subr.mxu0 0.0
  %227 = vmatpush1.xpose.msra.mxu0 0.0
  %228 = vmatprep.subr.mxu0 0.0
  %229 = vmatpush1.xpose.msra.mxu0 0.0
  %230 = vmatprep.subr.mxu0 0.0
  %231 = vmatpush1.xpose.msra.mxu0 0.0
  %232 = vmatprep.subr.mxu0 0.0
  %233 = vmatpush1.xpose.msra.mxu0 0.0
  %234 = vmatprep.subr.mxu0 0.0
  %235 = vmatpush1.xpose.msra.mxu0 0.0
  %236 = vmatprep.subr.mxu0 0.0
  %237 = vmatpush1.xpose.msra.mxu0 0.0
  %238 = vmatprep.subr.mxu0 0.0
  %239 = vmatpush1.xpose.msra.mxu0 0.0
  %240 = vmatprep.subr.mxu0 0.0
  %241 = vmatpush1.xpose.msra.mxu0 0.0
  %242 = vmatprep.subr.mxu0 0.0
  %243 = vmatpush1.xpose.msra.mxu0 0.0
  %244 = vmatprep.subr.mxu0 0.0
  %245 = vmatpush1.xpose.msra.mxu0 0.0
  %246 = vmatprep.subr.mxu0 0.0
  %247 = vmatpush1.xpose.msra.mxu0 0.0
  %248 = vmatprep.subr.mxu0 0.0
  %249 = vmatpush1.xpose.msra.mxu0 0.0
  %250 = vmatprep.subr.mxu0 0.0
  %251 = vmatpush1.xpose.msra.mxu0 0.0
  %252 = vmatprep.subr.mxu0 0.0
  %253 = vmatpush1.xpose.msra.mxu0 0.0
  %254 = vmatprep.subr.mxu0 0.0
  %255 = vmatpush1.xpose.msra.mxu0 0.0
  %256 = vmatprep.subr.mxu0 0.0
  %257 = vmatpush1.xpose.msra.mxu0 0.0
  %258 = vmatprep.subr.mxu0 0.0
  %259 = vmatpush1.xpose.msra.mxu0 0.0
  %260 = vmatprep.subr.mxu0 0.0
  %261 = vmatpush1.xpose.msra.mxu0 0.0
  %262 = vmatprep.subr.mxu0 0.0
  %263 = vmatpush1.xpose.msra.mxu0 0.0
  %264 = vmatprep.subr.mxu0 0.0
  %265 = vmatpush1.xpose.msra.mxu0 0.0
  %266 = vmatprep.subr.mxu0 0.0
  %267 = vmatpush1.xpose.msra.mxu0 0.0
  %268 = vmatprep.subr.mxu0 0.0
  %269 = vmatpush1.xpose.msra.mxu0 0.0
  %270 = vmatprep.subr.mxu0 0.0
  %271 = vmatpush1.xpose.msra.mxu0 0.0
  %272 = vmatprep.subr.mxu0 0.0
  %273 = vmatpush1.xpose.msra.mxu0 0.0
  %274 = vmatprep.subr.mxu0 0.0
  %275 = vmatpush1.xpose.msra.mxu0 0.0
  %276 = vmatprep.subr.mxu0 0.0
  %277 = vmatpush1.xpose.msra.mxu0 0.0
  %278 = vmatprep.subr.mxu0 0.0
  %279 = vmatpush1.xpose.msra.mxu0 0.0
  %280 = vmatprep.mubr.f32.mxu0 0.0
  %281 = vmatmul.mubr.f32.gmra.mrb[0].mxu0 %v207
  %v282 = vpop.f32.mrb[0].mxu0
  %v283 = vadd.f32 %v56, %v282
  %v284 = vpop.f32.mrb[0].mxu0
  %285 = vmatprep.mubr.f32.mxu0 0.0
  %286 = vmatmul.mubr.f32.gmra.mrb[0].mxu0 %v210
  %v287 = vpop.f32.mrb[0].mxu0
  %v288 = vadd.f32 %v57, %v287
  %v289 = vpop.f32.mrb[0].mxu0
  %290 = vdwg.mxu0
  %vm291 = vcmask 130048
  %v292 = vsel %vm291, %v283, -inf
  %293 = vmax.xlane.f32.xlu0 %v292
  %v294 = vpop.xlane.xlu0 %293
  %v295 = vsel %vm291, %v288, -inf
  %296 = vmax.xlane.f32.xlu0 %v295
  %v297 = vpop.xlane.xlu0 %296
  %v298 = vsub.f32 %v283, %v294
  %v299 = vsub.f32 %v288, %v297
  %v300 = vmul.f32 %v298, 1.442695
  %v301 = vpow.pop %v300
  %v302 = vmul.f32 %v299, 1.442695
  %v303 = vpow.pop %v302
  %v304 = vsel %vm291, %v301, 0.0
  %305 = vadd.xlane.f32.xlu0 %v304
  %v306 = vpop.xlane.xlu0 %305
  %v307 = vsel %vm291, %v303, 0.0
  %308 = vadd.xlane.f32.xlu0 %v307
  %v309 = vpop.xlane.xlu0 %308
  %v310 = vrcp.pop %v306
  %v311 = vrcp.pop %v309
  %v312 = vmul.f32 %v301, %v310
  %v313 = vmul.f32 %v303, %v311
  %314 = vrot.lane.b32.xlu0 %v185, 64
  %v315 = vpop.permute.xlu0 %314
  %316 = vrot.lane.b32.xlu0 %v190, 64
  %v317 = vpop.permute.xlu0 %316
  %v321 = vsel %vm291, %v312, 0
  %v324 = vsel %vm291, %v313, 0
  %326 = vmatprep.subr.mxu0 0.0
  %327 = vmatpush1.msra.mxu0 %v315
  %328 = vmatprep.subr.mxu0 0.0
  %329 = vmatpush1.msra.mxu0 %v317
  %330 = vmatprep.subr.mxu0 0.0
  %331 = vmatpush1.msra.mxu0 0.0
  %332 = vmatprep.subr.mxu0 0.0
  %333 = vmatpush1.msra.mxu0 0.0
  %334 = vmatprep.subr.mxu0 0.0
  %335 = vmatpush1.msra.mxu0 0.0
  %336 = vmatprep.subr.mxu0 0.0
  %337 = vmatpush1.msra.mxu0 0.0
  %338 = vmatprep.subr.mxu0 0.0
  %339 = vmatpush1.msra.mxu0 0.0
  %340 = vmatprep.subr.mxu0 0.0
  %341 = vmatpush1.msra.mxu0 0.0
  %342 = vmatprep.subr.mxu0 0.0
  %343 = vmatpush1.msra.mxu0 0.0
  %344 = vmatprep.subr.mxu0 0.0
  %345 = vmatpush1.msra.mxu0 0.0
  %346 = vmatprep.subr.mxu0 0.0
  %347 = vmatpush1.msra.mxu0 0.0
  %348 = vmatprep.subr.mxu0 0.0
  %349 = vmatpush1.msra.mxu0 0.0
  %350 = vmatprep.subr.mxu0 0.0
  %351 = vmatpush1.msra.mxu0 0.0
  %352 = vmatprep.subr.mxu0 0.0
  %353 = vmatpush1.msra.mxu0 0.0
  %354 = vmatprep.subr.mxu0 0.0
  %355 = vmatpush1.msra.mxu0 0.0
  %356 = vmatprep.subr.mxu0 0.0
  %357 = vmatpush1.msra.mxu0 0.0
  %358 = vmatprep.subr.mxu0 0.0
  %359 = vmatpush1.msra.mxu0 0.0
  %360 = vmatprep.subr.mxu0 0.0
  %361 = vmatpush1.msra.mxu0 0.0
  %362 = vmatprep.subr.mxu0 0.0
  %363 = vmatpush1.msra.mxu0 0.0
  %364 = vmatprep.subr.mxu0 0.0
  %365 = vmatpush1.msra.mxu0 0.0
  %366 = vmatprep.subr.mxu0 0.0
  %367 = vmatpush1.msra.mxu0 0.0
  %368 = vmatprep.subr.mxu0 0.0
  %369 = vmatpush1.msra.mxu0 0.0
  %370 = vmatprep.subr.mxu0 0.0
  %371 = vmatpush1.msra.mxu0 0.0
  %372 = vmatprep.subr.mxu0 0.0
  %373 = vmatpush1.msra.mxu0 0.0
  %374 = vmatprep.subr.mxu0 0.0
  %375 = vmatpush1.msra.mxu0 0.0
  %376 = vmatprep.subr.mxu0 0.0
  %377 = vmatpush1.msra.mxu0 0.0
  %378 = vmatprep.subr.mxu0 0.0
  %379 = vmatpush1.msra.mxu0 0.0
  %380 = vmatprep.subr.mxu0 0.0
  %381 = vmatpush1.msra.mxu0 0.0
  %382 = vmatprep.subr.mxu0 0.0
  %383 = vmatpush1.msra.mxu0 0.0
  %384 = vmatprep.subr.mxu0 0.0
  %385 = vmatpush1.msra.mxu0 0.0
  %386 = vmatprep.subr.mxu0 0.0
  %387 = vmatpush1.msra.mxu0 0.0
  %388 = vmatprep.subr.mxu0 0.0
  %389 = vmatpush1.msra.mxu0 0.0
  %390 = vmatprep.mubr.f32.mxu0 0.0
  %391 = vmatmul.mubr.f32.gmra.mrb[0].mxu0 %v321
  %v392 = vpop.f32.mrb[0].mxu0
  %v393 = vadd.f32 0.0, %v392
  %v394 = vpop.f32.mrb[0].mxu0
  %395 = vmatprep.mubr.f32.mxu0 0.0
  %396 = vmatmul.mubr.f32.gmra.mrb[0].mxu0 %v324
  %v397 = vpop.f32.mrb[0].mxu0
  %v398 = vadd.f32 0.0, %v397
  %v399 = vpop.f32.mrb[0].mxu0
  %400 = vdwg.mxu0
  %401 = vrot.lane.b32.xlu0 %v197, 120
  %v402 = vpop.permute.xlu0 %401
  %403 = vrot.lane.b32.xlu0 %v198, 120
  %v404 = vpop.permute.xlu0 %403
  %405 = vrot.lane.b32.xlu0 %v185, 88
  %v406 = vpop.permute.xlu0 %405
  %407 = vrot.lane.b32.xlu0 %v190, 88
  %v408 = vpop.permute.xlu0 %407
  %v409 = vsel %vm205, %v402, 0
  %v411 = vsel %vm205, %v404, 0
  %v413 = vsel %vm205, %v406, 0
  %v415 = vsel %vm205, %v408, 0
  %417 = vmatprep.subr.mxu0 0.0
  %418 = vmatpush1.xpose.msra.mxu0 %v413
  %419 = vmatprep.subr.mxu0 0.0
  %420 = vmatpush1.xpose.msra.mxu0 %v415
  %421 = vmatprep.subr.mxu0 0.0
  %422 = vmatpush1.xpose.msra.mxu0 0.0
  %423 = vmatprep.subr.mxu0 0.0
  %424 = vmatpush1.xpose.msra.mxu0 0.0
  %425 = vmatprep.subr.mxu0 0.0
  %426 = vmatpush1.xpose.msra.mxu0 0.0
  %427 = vmatprep.subr.mxu0 0.0
  %428 = vmatpush1.xpose.msra.mxu0 0.0
  %429 = vmatprep.subr.mxu0 0.0
  %430 = vmatpush1.xpose.msra.mxu0 0.0
  %431 = vmatprep.subr.mxu0 0.0
  %432 = vmatpush1.xpose.msra.mxu0 0.0
  %433 = vmatprep.subr.mxu0 0.0
  %434 = vmatpush1.xpose.msra.mxu0 0.0
  %435 = vmatprep.subr.mxu0 0.0
  %436 = vmatpush1.xpose.msra.mxu0 0.0
  %437 = vmatprep.subr.mxu0 0.0
  %438 = vmatpush1.xpose.msra.mxu0 0.0
  %439 = vmatprep.subr.mxu0 0.0
  %440 = vmatpush1.xpose.msra.mxu0 0.0
  %441 = vmatprep.subr.mxu0 0.0
  %442 = vmatpush1.xpose.msra.mxu0 0.0
  %443 = vmatprep.subr.mxu0 0.0
  %444 = vmatpush1.xpose.msra.mxu0 0.0
  %445 = vmatprep.subr.mxu0 0.0
  %446 = vmatpush1.xpose.msra.mxu0 0.0
  %447 = vmatprep.subr.mxu0 0.0
  %448 = vmatpush1.xpose.msra.mxu0 0.0
  %449 = vmatprep.subr.mxu0 0.0
  %450 = vmatpush1.xpose.msra.mxu0 0.0
  %451 = vmatprep.subr.mxu0 0.0
  %452 = vmatpush1.xpose.msra.mxu0 0.0
  %453 = vmatprep.subr.mxu0 0.0
  %454 = vmatpush1.xpose.msra.mxu0 0.0
  %455 = vmatprep.subr.mxu0 0.0
  %456 = vmatpush1.xpose.msra.mxu0 0.0
  %457 = vmatprep.subr.mxu0 0.0
  %458 = vmatpush1.xpose.msra.mxu0 0.0
  %459 = vmatprep.subr.mxu0 0.0
  %460 = vmatpush1.xpose.msra.mxu0 0.0
  %461 = vmatprep.subr.mxu0 0.0
  %462 = vmatpush1.xpose.msra.mxu0 0.0
  %463 = vmatprep.subr.mxu0 0.0
  %464 = vmatpush1.xpose.msra.mxu0 0.0
  %465 = vmatprep.subr.mxu0 0.0
  %466 = vmatpush1.xpose.msra.mxu0 0.0
  %467 = vmatprep.subr.mxu0 0.0
  %468 = vmatpush1.xpose.msra.mxu0 0.0
  %469 = vmatprep.subr.mxu0 0.0
  %470 = vmatpush1.xpose.msra.mxu0 0.0
  %471 = vmatprep.subr.mxu0 0.0
  %472 = vmatpush1.xpose.msra.mxu0 0.0
  %473 = vmatprep.subr.mxu0 0.0
  %474 = vmatpush1.xpose.msra.mxu0 0.0
  %475 = vmatprep.subr.mxu0 0.0
  %476 = vmatpush1.xpose.msra.mxu0 0.0
  %477 = vmatprep.subr.mxu0 0.0
  %478 = vmatpush1.xpose.msra.mxu0 0.0
  %479 = vmatprep.subr.mxu0 0.0
  %480 = vmatpush1.xpose.msra.mxu0 0.0
  %481 = vmatprep.mubr.f32.mxu0 0.0
  %482 = vmatmul.mubr.f32.gmra.mrb[0].mxu0 %v409
  %v483 = vpop.f32.mrb[0].mxu0
  %v484 = vadd.f32 %v56, %v483
  %v485 = vpop.f32.mrb[0].mxu0
  %486 = vmatprep.mubr.f32.mxu0 0.0
  %487 = vmatmul.mubr.f32.gmra.mrb[0].mxu0 %v411
  %v488 = vpop.f32.mrb[0].mxu0
  %v489 = vadd.f32 %v57, %v488
  %v490 = vpop.f32.mrb[0].mxu0
  %491 = vdwg.mxu0
  %v492 = vsel %vm291, %v484, -inf
  %493 = vmax.xlane.f32.xlu0 %v492
  %v494 = vpop.xlane.xlu0 %493
  %v495 = vsel %vm291, %v489, -inf
  %496 = vmax.xlane.f32.xlu0 %v495
  %v497 = vpop.xlane.xlu0 %496
  %v498 = vsub.f32 %v484, %v494
  %v499 = vsub.f32 %v489, %v497
  %v500 = vmul.f32 %v498, 1.442695
  %v501 = vpow.pop %v500
  %v502 = vmul.f32 %v499, 1.442695
  %v503 = vpow.pop %v502
  %v504 = vsel %vm291, %v501, 0.0
  %505 = vadd.xlane.f32.xlu0 %v504
  %v506 = vpop.xlane.xlu0 %505
  %v507 = vsel %vm291, %v503, 0.0
  %508 = vadd.xlane.f32.xlu0 %v507
  %v509 = vpop.xlane.xlu0 %508
  %v510 = vrcp.pop %v506
  %v511 = vrcp.pop %v509
  %v512 = vmul.f32 %v501, %v510
  %v513 = vmul.f32 %v503, %v511
  %514 = vrot.lane.b32.xlu0 %v185, 56
  %v515 = vpop.permute.xlu0 %514
  %516 = vrot.lane.b32.xlu0 %v190, 56
  %v517 = vpop.permute.xlu0 %516
  %v521 = vsel %vm291, %v512, 0
  %v524 = vsel %vm291, %v513, 0
  %526 = vmatprep.subr.mxu0 0.0
  %527 = vmatpush1.msra.mxu0 %v515
  %528 = vmatprep.subr.mxu0 0.0
  %529 = vmatpush1.msra.mxu0 %v517
  %530 = vmatprep.subr.mxu0 0.0
  %531 = vmatpush1.msra.mxu0 0.0
  %532 = vmatprep.subr.mxu0 0.0
  %533 = vmatpush1.msra.mxu0 0.0
  %534 = vmatprep.subr.mxu0 0.0
  %535 = vmatpush1.msra.mxu0 0.0
  %536 = vmatprep.subr.mxu0 0.0
  %537 = vmatpush1.msra.mxu0 0.0
  %538 = vmatprep.subr.mxu0 0.0
  %539 = vmatpush1.msra.mxu0 0.0
  %540 = vmatprep.subr.mxu0 0.0
  %541 = vmatpush1.msra.mxu0 0.0
  %542 = vmatprep.subr.mxu0 0.0
  %543 = vmatpush1.msra.mxu0 0.0
  %544 = vmatprep.subr.mxu0 0.0
  %545 = vmatpush1.msra.mxu0 0.0
  %546 = vmatprep.subr.mxu0 0.0
  %547 = vmatpush1.msra.mxu0 0.0
  %548 = vmatprep.subr.mxu0 0.0
  %549 = vmatpush1.msra.mxu0 0.0
  %550 = vmatprep.subr.mxu0 0.0
  %551 = vmatpush1.msra.mxu0 0.0
  %552 = vmatprep.subr.mxu0 0.0
  %553 = vmatpush1.msra.mxu0 0.0
  %554 = vmatprep.subr.mxu0 0.0
  %555 = vmatpush1.msra.mxu0 0.0
  %556 = vmatprep.subr.mxu0 0.0
  %557 = vmatpush1.msra.mxu0 0.0
  %558 = vmatprep.subr.mxu0 0.0
  %559 = vmatpush1.msra.mxu0 0.0
  %560 = vmatprep.subr.mxu0 0.0
  %561 = vmatpush1.msra.mxu0 0.0
  %562 = vmatprep.subr.mxu0 0.0
  %563 = vmatpush1.msra.mxu0 0.0
  %564 = vmatprep.subr.mxu0 0.0
  %565 = vmatpush1.msra.mxu0 0.0
  %566 = vmatprep.subr.mxu0 0.0
  %567 = vmatpush1.msra.mxu0 0.0
  %568 = vmatprep.subr.mxu0 0.0
  %569 = vmatpush1.msra.mxu0 0.0
  %570 = vmatprep.subr.mxu0 0.0
  %571 = vmatpush1.msra.mxu0 0.0
  %572 = vmatprep.subr.mxu0 0.0
  %573 = vmatpush1.msra.mxu0 0.0
  %574 = vmatprep.subr.mxu0 0.0
  %575 = vmatpush1.msra.mxu0 0.0
  %576 = vmatprep.subr.mxu0 0.0
  %577 = vmatpush1.msra.mxu0 0.0
  %578 = vmatprep.subr.mxu0 0.0
  %579 = vmatpush1.msra.mxu0 0.0
  %580 = vmatprep.subr.mxu0 0.0
  %581 = vmatpush1.msra.mxu0 0.0
  %582 = vmatprep.subr.mxu0 0.0
  %583 = vmatpush1.msra.mxu0 0.0
  %584 = vmatprep.subr.mxu0 0.0
  %585 = vmatpush1.msra.mxu0 0.0
  %586 = vmatprep.subr.mxu0 0.0
  %587 = vmatpush1.msra.mxu0 0.0
  %588 = vmatprep.subr.mxu0 0.0
  %589 = vmatpush1.msra.mxu0 0.0
  %590 = vmatprep.mubr.f32.mxu0 0.0
  %591 = vmatmul.mubr.f32.gmra.mrb[0].mxu0 %v521
  %v592 = vpop.f32.mrb[0].mxu0
  %v593 = vadd.f32 0.0, %v592
  %v594 = vpop.f32.mrb[0].mxu0
  %595 = vmatprep.mubr.f32.mxu0 0.0
  %596 = vmatmul.mubr.f32.gmra.mrb[0].mxu0 %v524
  %v597 = vpop.f32.mrb[0].mxu0
  %v598 = vadd.f32 0.0, %v597
  %v599 = vpop.f32.mrb[0].mxu0
  %600 = vdwg.mxu0
  %v602 = vsel %vm205, %v593, 0
  %v605 = vsel %vm205, %v598, 0
  %607 = vmatprep.subr.mxu0 0.0
  %608 = vmatpush1.msra.mxu0 %v194
  %609 = vmatprep.subr.mxu0 0.0
  %610 = vmatpush1.msra.mxu0 0.0
  %611 = vmatprep.subr.mxu0 0.0
  %612 = vmatpush1.msra.mxu0 0.0
  %613 = vmatprep.subr.mxu0 0.0
  %614 = vmatpush1.msra.mxu0 0.0
  %615 = vmatprep.subr.mxu0 0.0
  %616 = vmatpush1.msra.mxu0 0.0
  %617 = vmatprep.subr.mxu0 0.0
  %618 = vmatpush1.msra.mxu0 0.0
  %619 = vmatprep.subr.mxu0 0.0
  %620 = vmatpush1.msra.mxu0 0.0
  %621 = vmatprep.subr.mxu0 0.0
  %622 = vmatpush1.msra.mxu0 0.0
  %623 = vmatprep.subr.mxu0 0.0
  %624 = vmatpush1.msra.mxu0 0.0
  %625 = vmatprep.subr.mxu0 0.0
  %626 = vmatpush1.msra.mxu0 0.0
  %627 = vmatprep.subr.mxu0 0.0
  %628 = vmatpush1.msra.mxu0 0.0
  %629 = vmatprep.subr.mxu0 0.0
  %630 = vmatpush1.msra.mxu0 0.0
  %631 = vmatprep.subr.mxu0 0.0
  %632 = vmatpush1.msra.mxu0 0.0
  %633 = vmatprep.subr.mxu0 0.0
  %634 = vmatpush1.msra.mxu0 0.0
  %635 = vmatprep.subr.mxu0 0.0
  %636 = vmatpush1.msra.mxu0 0.0
  %637 = vmatprep.subr.mxu0 0.0
  %638 = vmatpush1.msra.mxu0 0.0
  %639 = vmatprep.subr.mxu0 0.0
  %640 = vmatpush1.msra.mxu0 0.0
  %641 = vmatprep.subr.mxu0 0.0
  %642 = vmatpush1.msra.mxu0 0.0
  %643 = vmatprep.subr.mxu0 0.0
  %644 = vmatpush1.msra.mxu0 0.0
  %645 = vmatprep.subr.mxu0 0.0
  %646 = vmatpush1.msra.mxu0 0.0
  %647 = vmatprep.subr.mxu0 0.0
  %648 = vmatpush1.msra.mxu0 0.0
  %649 = vmatprep.subr.mxu0 0.0
  %650 = vmatpush1.msra.mxu0 0.0
  %651 = vmatprep.subr.mxu0 0.0
  %652 = vmatpush1.msra.mxu0 0.0
  %653 = vmatprep.subr.mxu0 0.0
  %654 = vmatpush1.msra.mxu0 0.0
  %655 = vmatprep.subr.mxu0 0.0
  %656 = vmatpush1.msra.mxu0 0.0
  %657 = vmatprep.subr.mxu0 0.0
  %658 = vmatpush1.msra.mxu0 0.0
  %659 = vmatprep.subr.mxu0 0.0
  %660 = vmatpush1.msra.mxu0 0.0
  %661 = vmatprep.subr.mxu0 0.0
  %662 = vmatpush1.msra.mxu0 0.0
  %663 = vmatprep.subr.mxu0 0.0
  %664 = vmatpush1.msra.mxu0 0.0
  %665 = vmatprep.subr.mxu0 0.0
  %666 = vmatpush1.msra.mxu0 0.0
  %667 = vmatprep.subr.mxu0 0.0
  %668 = vmatpush1.msra.mxu0 0.0
  %669 = vmatprep.subr.mxu0 0.0
  %670 = vmatpush1.msra.mxu0 0.0
  %671 = vmatprep.mubr.f32.mxu0 0.0
  %672 = vmatmul.mubr.f32.gmra.mrb[0].mxu0 %v602
  %v673 = vpop.f32.mrb[0].mxu0
  %v674 = vadd.f32 0.0, %v673
  %v675 = vpop.f32.mrb[0].mxu0
  %676 = vmatprep.mubr.f32.mxu0 0.0
  %677 = vmatmul.mubr.f32.gmra.mrb[0].mxu0 %v605
  %v678 = vpop.f32.mrb[0].mxu0
  %v679 = vadd.f32 0.0, %v678
  %v680 = vpop.f32.mrb[0].mxu0
  %681 = vdwg.mxu0
  %v683 = vsel %vm205, %v393, 0
  %v686 = vsel %vm205, %v398, 0
  %688 = vmatprep.subr.mxu0 0.0
  %689 = vmatpush1.msra.mxu0 %v193
  %690 = vmatprep.subr.mxu0 0.0
  %691 = vmatpush1.msra.mxu0 0.0
  %692 = vmatprep.subr.mxu0 0.0
  %693 = vmatpush1.msra.mxu0 0.0
  %694 = vmatprep.subr.mxu0 0.0
  %695 = vmatpush1.msra.mxu0 0.0
  %696 = vmatprep.subr.mxu0 0.0
  %697 = vmatpush1.msra.mxu0 0.0
  %698 = vmatprep.subr.mxu0 0.0
  %699 = vmatpush1.msra.mxu0 0.0
  %700 = vmatprep.subr.mxu0 0.0
  %701 = vmatpush1.msra.mxu0 0.0
  %702 = vmatprep.subr.mxu0 0.0
  %703 = vmatpush1.msra.mxu0 0.0
  %704 = vmatprep.subr.mxu0 0.0
  %705 = vmatpush1.msra.mxu0 0.0
  %706 = vmatprep.subr.mxu0 0.0
  %707 = vmatpush1.msra.mxu0 0.0
  %708 = vmatprep.subr.mxu0 0.0
  %709 = vmatpush1.msra.mxu0 0.0
  %710 = vmatprep.subr.mxu0 0.0
  %711 = vmatpush1.msra.mxu0 0.0
  %712 = vmatprep.subr.mxu0 0.0
  %713 = vmatpush1.msra.mxu0 0.0
  %714 = vmatprep.subr.mxu0 0.0
  %715 = vmatpush1.msra.mxu0 0.0
  %716 = vmatprep.subr.mxu0 0.0
  %717 = vmatpush1.msra.mxu0 0.0
  %718 = vmatprep.subr.mxu0 0.0
  %719 = vmatpush1.msra.mxu0 0.0
  %720 = vmatprep.subr.mxu0 0.0
  %721 = vmatpush1.msra.mxu0 0.0
  %722 = vmatprep.subr.mxu0 0.0
  %723 = vmatpush1.msra.mxu0 0.0
  %724 = vmatprep.subr.mxu0 0.0
  %725 = vmatpush1.msra.mxu0 0.0
  %726 = vmatprep.subr.mxu0 0.0
  %727 = vmatpush1.msra.mxu0 0.0
  %728 = vmatprep.subr.mxu0 0.0
  %729 = vmatpush1.msra.mxu0 0.0
  %730 = vmatprep.subr.mxu0 0.0
  %731 = vmatpush1.msra.mxu0 0.0
  %732 = vmatprep.subr.mxu0 0.0
  %733 = vmatpush1.msra.mxu0 0.0
  %734 = vmatprep.subr.mxu0 0.0
  %735 = vmatpush1.msra.mxu0 0.0
  %736 = vmatprep.subr.mxu0 0.0
  %737 = vmatpush1.msra.mxu0 0.0
  %738 = vmatprep.subr.mxu0 0.0
  %739 = vmatpush1.msra.mxu0 0.0
  %740 = vmatprep.subr.mxu0 0.0
  %741 = vmatpush1.msra.mxu0 0.0
  %742 = vmatprep.subr.mxu0 0.0
  %743 = vmatpush1.msra.mxu0 0.0
  %744 = vmatprep.subr.mxu0 0.0
  %745 = vmatpush1.msra.mxu0 0.0
  %746 = vmatprep.subr.mxu0 0.0
  %747 = vmatpush1.msra.mxu0 0.0
  %748 = vmatprep.subr.mxu0 0.0
  %749 = vmatpush1.msra.mxu0 0.0
  %750 = vmatprep.subr.mxu0 0.0
  %751 = vmatpush1.msra.mxu0 0.0
  %752 = vmatprep.mubr.f32.mxu0 0.0
  %753 = vmatmul.mubr.f32.gmra.mrb[0].mxu0 %v683
  %v754 = vpop.f32.mrb[0].mxu0
  %v755 = vadd.f32 %v674, %v754
  %v756 = vpop.f32.mrb[0].mxu0
  %757 = vmatprep.mubr.f32.mxu0 0.0
  %758 = vmatmul.mubr.f32.gmra.mrb[0].mxu0 %v686
  %v759 = vpop.f32.mrb[0].mxu0
  %v760 = vadd.f32 %v679, %v759
  %v761 = vpop.f32.mrb[0].mxu0
  %762 = vdwg.mxu0
  %763 = vrot.lane.b32.xlu0 %v197, 112
  %v764 = vpop.permute.xlu0 %763
  %765 = vrot.lane.b32.xlu0 %v198, 112
  %v766 = vpop.permute.xlu0 %765
  %767 = vrot.lane.b32.xlu0 %v185, 80
  %v768 = vpop.permute.xlu0 %767
  %769 = vrot.lane.b32.xlu0 %v190, 80
  %v770 = vpop.permute.xlu0 %769
  %v771 = vsel %vm205, %v764, 0
  %v773 = vsel %vm205, %v766, 0
  %v775 = vsel %vm205, %v768, 0
  %v777 = vsel %vm205, %v770, 0
  %779 = vmatprep.subr.mxu0 0.0
  %780 = vmatpush1.xpose.msra.mxu0 %v775
  %781 = vmatprep.subr.mxu0 0.0
  %782 = vmatpush1.xpose.msra.mxu0 %v777
  %783 = vmatprep.subr.mxu0 0.0
  %784 = vmatpush1.xpose.msra.mxu0 0.0
  %785 = vmatprep.subr.mxu0 0.0
  %786 = vmatpush1.xpose.msra.mxu0 0.0
  %787 = vmatprep.subr.mxu0 0.0
  %788 = vmatpush1.xpose.msra.mxu0 0.0
  %789 = vmatprep.subr.mxu0 0.0
  %790 = vmatpush1.xpose.msra.mxu0 0.0
  %791 = vmatprep.subr.mxu0 0.0
  %792 = vmatpush1.xpose.msra.mxu0 0.0
  %793 = vmatprep.subr.mxu0 0.0
  %794 = vmatpush1.xpose.msra.mxu0 0.0
  %795 = vmatprep.subr.mxu0 0.0
  %796 = vmatpush1.xpose.msra.mxu0 0.0
  %797 = vmatprep.subr.mxu0 0.0
  %798 = vmatpush1.xpose.msra.mxu0 0.0
  %799 = vmatprep.subr.mxu0 0.0
  %800 = vmatpush1.xpose.msra.mxu0 0.0
  %801 = vmatprep.subr.mxu0 0.0
  %802 = vmatpush1.xpose.msra.mxu0 0.0
  %803 = vmatprep.subr.mxu0 0.0
  %804 = vmatpush1.xpose.msra.mxu0 0.0
  %805 = vmatprep.subr.mxu0 0.0
  %806 = vmatpush1.xpose.msra.mxu0 0.0
  %807 = vmatprep.subr.mxu0 0.0
  %808 = vmatpush1.xpose.msra.mxu0 0.0
  %809 = vmatprep.subr.mxu0 0.0
  %810 = vmatpush1.xpose.msra.mxu0 0.0
  %811 = vmatprep.subr.mxu0 0.0
  %812 = vmatpush1.xpose.msra.mxu0 0.0
  %813 = vmatprep.subr.mxu0 0.0
  %814 = vmatpush1.xpose.msra.mxu0 0.0
  %815 = vmatprep.subr.mxu0 0.0
  %816 = vmatpush1.xpose.msra.mxu0 0.0
  %817 = vmatprep.subr.mxu0 0.0
  %818 = vmatpush1.xpose.msra.mxu0 0.0
  %819 = vmatprep.subr.mxu0 0.0
  %820 = vmatpush1.xpose.msra.mxu0 0.0
  %821 = vmatprep.subr.mxu0 0.0
  %822 = vmatpush1.xpose.msra.mxu0 0.0
  %823 = vmatprep.subr.mxu0 0.0
  %824 = vmatpush1.xpose.msra.mxu0 0.0
  %825 = vmatprep.subr.mxu0 0.0
  %826 = vmatpush1.xpose.msra.mxu0 0.0
  %827 = vmatprep.subr.mxu0 0.0
  %828 = vmatpush1.xpose.msra.mxu0 0.0
  %829 = vmatprep.subr.mxu0 0.0
  %830 = vmatpush1.xpose.msra.mxu0 0.0
  %831 = vmatprep.subr.mxu0 0.0
  %832 = vmatpush1.xpose.msra.mxu0 0.0
  %833 = vmatprep.subr.mxu0 0.0
  %834 = vmatpush1.xpose.msra.mxu0 0.0
  %835 = vmatprep.subr.mxu0 0.0
  %836 = vmatpush1.xpose.msra.mxu0 0.0
  %837 = vmatprep.subr.mxu0 0.0
  %838 = vmatpush1.xpose.msra.mxu0 0.0
  %839 = vmatprep.subr.mxu0 0.0
  %840 = vmatpush1.xpose.msra.mxu0 0.0
  %841 = vmatprep.subr.mxu0 0.0
  %842 = vmatpush1.xpose.msra.mxu0 0.0
  %843 = vmatprep.mubr.f32.mxu0 0.0
  %844 = vmatmul.mubr.f32.gmra.mrb[0].mxu0 %v771
  %v845 = vpop.f32.mrb[0].mxu0
  %v846 = vadd.f32 %v56, %v845
  %v847 = vpop.f32.mrb[0].mxu0
  %848 = vmatprep.mubr.f32.mxu0 0.0
  %849 = vmatmul.mubr.f32.gmra.mrb[0].mxu0 %v773
  %v850 = vpop.f32.mrb[0].mxu0
  %v851 = vadd.f32 %v57, %v850
  %v852 = vpop.f32.mrb[0].mxu0
  %853 = vdwg.mxu0
  %v854 = vsel %vm291, %v846, -inf
  %855 = vmax.xlane.f32.xlu0 %v854
  %v856 = vpop.xlane.xlu0 %855
  %v857 = vsel %vm291, %v851, -inf
  %858 = vmax.xlane.f32.xlu0 %v857
  %v859 = vpop.xlane.xlu0 %858
  %v860 = vsub.f32 %v846, %v856
  %v861 = vsub.f32 %v851, %v859
  %v862 = vmul.f32 %v860, 1.442695
  %v863 = vpow.pop %v862
  %v864 = vmul.f32 %v861, 1.442695
  %v865 = vpow.pop %v864
  %v866 = vsel %vm291, %v863, 0.0
  %867 = vadd.xlane.f32.xlu0 %v866
  %v868 = vpop.xlane.xlu0 %867
  %v869 = vsel %vm291, %v865, 0.0
  %870 = vadd.xlane.f32.xlu0 %v869
  %v871 = vpop.xlane.xlu0 %870
  %v872 = vrcp.pop %v868
  %v873 = vrcp.pop %v871
  %v874 = vmul.f32 %v863, %v872
  %v875 = vmul.f32 %v865, %v873
  %876 = vrot.lane.b32.xlu0 %v185, 48
  %v877 = vpop.permute.xlu0 %876
  %878 = vrot.lane.b32.xlu0 %v190, 48
  %v879 = vpop.permute.xlu0 %878
  %v883 = vsel %vm291, %v874, 0
  %v886 = vsel %vm291, %v875, 0
  %888 = vmatprep.subr.mxu0 0.0
  %889 = vmatpush1.msra.mxu0 %v877
  %890 = vmatprep.subr.mxu0 0.0
  %891 = vmatpush1.msra.mxu0 %v879
  %892 = vmatprep.subr.mxu0 0.0
  %893 = vmatpush1.msra.mxu0 0.0
  %894 = vmatprep.subr.mxu0 0.0
  %895 = vmatpush1.msra.mxu0 0.0
  %896 = vmatprep.subr.mxu0 0.0
  %897 = vmatpush1.msra.mxu0 0.0
  %898 = vmatprep.subr.mxu0 0.0
  %899 = vmatpush1.msra.mxu0 0.0
  %900 = vmatprep.subr.mxu0 0.0
  %901 = vmatpush1.msra.mxu0 0.0
  %902 = vmatprep.subr.mxu0 0.0
  %903 = vmatpush1.msra.mxu0 0.0
  %904 = vmatprep.subr.mxu0 0.0
  %905 = vmatpush1.msra.mxu0 0.0
  %906 = vmatprep.subr.mxu0 0.0
  %907 = vmatpush1.msra.mxu0 0.0
  %908 = vmatprep.subr.mxu0 0.0
  %909 = vmatpush1.msra.mxu0 0.0
  %910 = vmatprep.subr.mxu0 0.0
  %911 = vmatpush1.msra.mxu0 0.0
  %912 = vmatprep.subr.mxu0 0.0
  %913 = vmatpush1.msra.mxu0 0.0
  %914 = vmatprep.subr.mxu0 0.0
  %915 = vmatpush1.msra.mxu0 0.0
  %916 = vmatprep.subr.mxu0 0.0
  %917 = vmatpush1.msra.mxu0 0.0
  %918 = vmatprep.subr.mxu0 0.0
  %919 = vmatpush1.msra.mxu0 0.0
  %920 = vmatprep.subr.mxu0 0.0
  %921 = vmatpush1.msra.mxu0 0.0
  %922 = vmatprep.subr.mxu0 0.0
  %923 = vmatpush1.msra.mxu0 0.0
  %924 = vmatprep.subr.mxu0 0.0
  %925 = vmatpush1.msra.mxu0 0.0
  %926 = vmatprep.subr.mxu0 0.0
  %927 = vmatpush1.msra.mxu0 0.0
  %928 = vmatprep.subr.mxu0 0.0
  %929 = vmatpush1.msra.mxu0 0.0
  %930 = vmatprep.subr.mxu0 0.0
  %931 = vmatpush1.msra.mxu0 0.0
  %932 = vmatprep.subr.mxu0 0.0
  %933 = vmatpush1.msra.mxu0 0.0
  %934 = vmatprep.subr.mxu0 0.0
  %935 = vmatpush1.msra.mxu0 0.0
  %936 = vmatprep.subr.mxu0 0.0
  %937 = vmatpush1.msra.mxu0 0.0
  %938 = vmatprep.subr.mxu0 0.0
  %939 = vmatpush1.msra.mxu0 0.0
  %940 = vmatprep.subr.mxu0 0.0
  %941 = vmatpush1.msra.mxu0 0.0
  %942 = vmatprep.subr.mxu0 0.0
  %943 = vmatpush1.msra.mxu0 0.0
  %944 = vmatprep.subr.mxu0 0.0
  %945 = vmatpush1.msra.mxu0 0.0
  %946 = vmatprep.subr.mxu0 0.0
  %947 = vmatpush1.msra.mxu0 0.0
  %948 = vmatprep.subr.mxu0 0.0
  %949 = vmatpush1.msra.mxu0 0.0
  %950 = vmatprep.subr.mxu0 0.0
  %951 = vmatpush1.msra.mxu0 0.0
  %952 = vmatprep.mubr.f32.mxu0 0.0
  %953 = vmatmul.mubr.f32.gmra.mrb[0].mxu0 %v883
  %v954 = vpop.f32.mrb[0].mxu0
  %v955 = vadd.f32 0.0, %v954
  %v956 = vpop.f32.mrb[0].mxu0
  %957 = vmatprep.mubr.f32.mxu0 0.0
  %958 = vmatmul.mubr.f32.gmra.mrb[0].mxu0 %v886
  %v959 = vpop.f32.mrb[0].mxu0
  %v960 = vadd.f32 0.0, %v959
  %v961 = vpop.f32.mrb[0].mxu0
  %962 = vdwg.mxu0
  %v964 = vsel %vm205, %v955, 0
  %v967 = vsel %vm205, %v960, 0
  %969 = vmatprep.subr.mxu0 0.0
  %970 = vmatpush1.msra.mxu0 %v195
  %971 = vmatprep.subr.mxu0 0.0
  %972 = vmatpush1.msra.mxu0 0.0
  %973 = vmatprep.subr.mxu0 0.0
  %974 = vmatpush1.msra.mxu0 0.0
  %975 = vmatprep.subr.mxu0 0.0
  %976 = vmatpush1.msra.mxu0 0.0
  %977 = vmatprep.subr.mxu0 0.0
  %978 = vmatpush1.msra.mxu0 0.0
  %979 = vmatprep.subr.mxu0 0.0
  %980 = vmatpush1.msra.mxu0 0.0
  %981 = vmatprep.subr.mxu0 0.0
  %982 = vmatpush1.msra.mxu0 0.0
  %983 = vmatprep.subr.mxu0 0.0
  %984 = vmatpush1.msra.mxu0 0.0
  %985 = vmatprep.subr.mxu0 0.0
  %986 = vmatpush1.msra.mxu0 0.0
  %987 = vmatprep.subr.mxu0 0.0
  %988 = vmatpush1.msra.mxu0 0.0
  %989 = vmatprep.subr.mxu0 0.0
  %990 = vmatpush1.msra.mxu0 0.0
  %991 = vmatprep.subr.mxu0 0.0
  %992 = vmatpush1.msra.mxu0 0.0
  %993 = vmatprep.subr.mxu0 0.0
  %994 = vmatpush1.msra.mxu0 0.0
  %995 = vmatprep.subr.mxu0 0.0
  %996 = vmatpush1.msra.mxu0 0.0
  %997 = vmatprep.subr.mxu0 0.0
  %998 = vmatpush1.msra.mxu0 0.0
  %999 = vmatprep.subr.mxu0 0.0
  %1000 = vmatpush1.msra.mxu0 0.0
  %1001 = vmatprep.subr.mxu0 0.0
  %1002 = vmatpush1.msra.mxu0 0.0
  %1003 = vmatprep.subr.mxu0 0.0
  %1004 = vmatpush1.msra.mxu0 0.0
  %1005 = vmatprep.subr.mxu0 0.0
  %1006 = vmatpush1.msra.mxu0 0.0
  %1007 = vmatprep.subr.mxu0 0.0
  %1008 = vmatpush1.msra.mxu0 0.0
  %1009 = vmatprep.subr.mxu0 0.0
  %1010 = vmatpush1.msra.mxu0 0.0
  %1011 = vmatprep.subr.mxu0 0.0
  %1012 = vmatpush1.msra.mxu0 0.0
  %1013 = vmatprep.subr.mxu0 0.0
  %1014 = vmatpush1.msra.mxu0 0.0
  %1015 = vmatprep.subr.mxu0 0.0
  %1016 = vmatpush1.msra.mxu0 0.0
  %1017 = vmatprep.subr.mxu0 0.0
  %1018 = vmatpush1.msra.mxu0 0.0
  %1019 = vmatprep.subr.mxu0 0.0
  %1020 = vmatpush1.msra.mxu0 0.0
  %1021 = vmatprep.subr.mxu0 0.0
  %1022 = vmatpush1.msra.mxu0 0.0
  %1023 = vmatprep.subr.mxu0 0.0
  %1024 = vmatpush1.msra.mxu0 0.0
  %1025 = vmatprep.subr.mxu0 0.0
  %1026 = vmatpush1.msra.mxu0 0.0
  %1027 = vmatprep.subr.mxu0 0.0
  %1028 = vmatpush1.msra.mxu0 0.0
  %1029 = vmatprep.subr.mxu0 0.0
  %1030 = vmatpush1.msra.mxu0 0.0
  %1031 = vmatprep.subr.mxu0 0.0
  %1032 = vmatpush1.msra.mxu0 0.0
  %1033 = vmatprep.mubr.f32.mxu0 0.0
  %1034 = vmatmul.mubr.f32.gmra.mrb[0].mxu0 %v964
  %v1035 = vpop.f32.mrb[0].mxu0
  %v1036 = vadd.f32 0.0, %v1035
  %v1037 = vpop.f32.mrb[0].mxu0
  %1038 = vmatprep.mubr.f32.mxu0 0.0
  %1039 = vmatmul.mubr.f32.gmra.mrb[0].mxu0 %v967
  %v1040 = vpop.f32.mrb[0].mxu0
  %v1041 = vadd.f32 0.0, %v1040
  %v1042 = vpop.f32.mrb[0].mxu0
  %1043 = vdwg.mxu0
  %v1044 = vadd.f32 %v755, %v1036
  %v1045 = vadd.f32 %v760, %v1041
  %1046 = vrot.lane.b32.xlu0 %v197, 104
  %v1047 = vpop.permute.xlu0 %1046
  %1048 = vrot.lane.b32.xlu0 %v198, 104
  %v1049 = vpop.permute.xlu0 %1048
  %1050 = vrot.lane.b32.xlu0 %v185, 72
  %v1051 = vpop.permute.xlu0 %1050
  %1052 = vrot.lane.b32.xlu0 %v190, 72
  %v1053 = vpop.permute.xlu0 %1052
  %v1054 = vsel %vm205, %v1047, 0
  %v1056 = vsel %vm205, %v1049, 0
  %v1058 = vsel %vm205, %v1051, 0
  %v1060 = vsel %vm205, %v1053, 0
  %1062 = vmatprep.subr.mxu0 0.0
  %1063 = vmatpush1.xpose.msra.mxu0 %v1058
  %1064 = vmatprep.subr.mxu0 0.0
  %1065 = vmatpush1.xpose.msra.mxu0 %v1060
  %1066 = vmatprep.subr.mxu0 0.0
  %1067 = vmatpush1.xpose.msra.mxu0 0.0
  %1068 = vmatprep.subr.mxu0 0.0
  %1069 = vmatpush1.xpose.msra.mxu0 0.0
  %1070 = vmatprep.subr.mxu0 0.0
  %1071 = vmatpush1.xpose.msra.mxu0 0.0
  %1072 = vmatprep.subr.mxu0 0.0
  %1073 = vmatpush1.xpose.msra.mxu0 0.0
  %1074 = vmatprep.subr.mxu0 0.0
  %1075 = vmatpush1.xpose.msra.mxu0 0.0
  %1076 = vmatprep.subr.mxu0 0.0
  %1077 = vmatpush1.xpose.msra.mxu0 0.0
  %1078 = vmatprep.subr.mxu0 0.0
  %1079 = vmatpush1.xpose.msra.mxu0 0.0
  %1080 = vmatprep.subr.mxu0 0.0
  %1081 = vmatpush1.xpose.msra.mxu0 0.0
  %1082 = vmatprep.subr.mxu0 0.0
  %1083 = vmatpush1.xpose.msra.mxu0 0.0
  %1084 = vmatprep.subr.mxu0 0.0
  %1085 = vmatpush1.xpose.msra.mxu0 0.0
  %1086 = vmatprep.subr.mxu0 0.0
  %1087 = vmatpush1.xpose.msra.mxu0 0.0
  %1088 = vmatprep.subr.mxu0 0.0
  %1089 = vmatpush1.xpose.msra.mxu0 0.0
  %1090 = vmatprep.subr.mxu0 0.0
  %1091 = vmatpush1.xpose.msra.mxu0 0.0
  %1092 = vmatprep.subr.mxu0 0.0
  %1093 = vmatpush1.xpose.msra.mxu0 0.0
  %1094 = vmatprep.subr.mxu0 0.0
  %1095 = vmatpush1.xpose.msra.mxu0 0.0
  %1096 = vmatprep.subr.mxu0 0.0
  %1097 = vmatpush1.xpose.msra.mxu0 0.0
  %1098 = vmatprep.subr.mxu0 0.0
  %1099 = vmatpush1.xpose.msra.mxu0 0.0
  %1100 = vmatprep.subr.mxu0 0.0
  %1101 = vmatpush1.xpose.msra.mxu0 0.0
  %1102 = vmatprep.subr.mxu0 0.0
  %1103 = vmatpush1.xpose.msra.mxu0 0.0
  %1104 = vmatprep.subr.mxu0 0.0
  %1105 = vmatpush1.xpose.msra.mxu0 0.0
  %1106 = vmatprep.subr.mxu0 0.0
  %1107 = vmatpush1.xpose.msra.mxu0 0.0
  %1108 = vmatprep.subr.mxu0 0.0
  %1109 = vmatpush1.xpose.msra.mxu0 0.0
  %1110 = vmatprep.subr.mxu0 0.0
  %1111 = vmatpush1.xpose.msra.mxu0 0.0
  %1112 = vmatprep.subr.mxu0 0.0
  %1113 = vmatpush1.xpose.msra.mxu0 0.0
  %1114 = vmatprep.subr.mxu0 0.0
  %1115 = vmatpush1.xpose.msra.mxu0 0.0
  %1116 = vmatprep.subr.mxu0 0.0
  %1117 = vmatpush1.xpose.msra.mxu0 0.0
  %1118 = vmatprep.subr.mxu0 0.0
  %1119 = vmatpush1.xpose.msra.mxu0 0.0
  %1120 = vmatprep.subr.mxu0 0.0
  %1121 = vmatpush1.xpose.msra.mxu0 0.0
  %1122 = vmatprep.subr.mxu0 0.0
  %1123 = vmatpush1.xpose.msra.mxu0 0.0
  %1124 = vmatprep.subr.mxu0 0.0
  %1125 = vmatpush1.xpose.msra.mxu0 0.0
  %1126 = vmatprep.mubr.f32.mxu0 0.0
  %1127 = vmatmul.mubr.f32.gmra.mrb[0].mxu0 %v1054
  %v1128 = vpop.f32.mrb[0].mxu0
  %v1129 = vadd.f32 %v56, %v1128
  %v1130 = vpop.f32.mrb[0].mxu0
  %1131 = vmatprep.mubr.f32.mxu0 0.0
  %1132 = vmatmul.mubr.f32.gmra.mrb[0].mxu0 %v1056
  %v1133 = vpop.f32.mrb[0].mxu0
  %v1134 = vadd.f32 %v57, %v1133
  %v1135 = vpop.f32.mrb[0].mxu0
  %1136 = vdwg.mxu0
  %v1137 = vsel %vm291, %v1129, -inf
  %1138 = vmax.xlane.f32.xlu0 %v1137
  %v1139 = vpop.xlane.xlu0 %1138
  %v1140 = vsel %vm291, %v1134, -inf
  %1141 = vmax.xlane.f32.xlu0 %v1140
  %v1142 = vpop.xlane.xlu0 %1141
  %v1143 = vsub.f32 %v1129, %v1139
  %v1144 = vsub.f32 %v1134, %v1142
  %v1145 = vmul.f32 %v1143, 1.442695
  %v1146 = vpow.pop %v1145
  %v1147 = vmul.f32 %v1144, 1.442695
  %v1148 = vpow.pop %v1147
  %v1149 = vsel %vm291, %v1146, 0.0
  %1150 = vadd.xlane.f32.xlu0 %v1149
  %v1151 = vpop.xlane.xlu0 %1150
  %v1152 = vsel %vm291, %v1148, 0.0
  %1153 = vadd.xlane.f32.xlu0 %v1152
  %v1154 = vpop.xlane.xlu0 %1153
  %v1155 = vrcp.pop %v1151
  %v1156 = vrcp.pop %v1154
  %v1157 = vmul.f32 %v1146, %v1155
  %v1158 = vmul.f32 %v1148, %v1156
  %1159 = vrot.lane.b32.xlu0 %v185, 40
  %v1160 = vpop.permute.xlu0 %1159
  %1161 = vrot.lane.b32.xlu0 %v190, 40
  %v1162 = vpop.permute.xlu0 %1161
  %v1166 = vsel %vm291, %v1157, 0
  %v1169 = vsel %vm291, %v1158, 0
  %1171 = vmatprep.subr.mxu0 0.0
  %1172 = vmatpush1.msra.mxu0 %v1160
  %1173 = vmatprep.subr.mxu0 0.0
  %1174 = vmatpush1.msra.mxu0 %v1162
  %1175 = vmatprep.subr.mxu0 0.0
  %1176 = vmatpush1.msra.mxu0 0.0
  %1177 = vmatprep.subr.mxu0 0.0
  %1178 = vmatpush1.msra.mxu0 0.0
  %1179 = vmatprep.subr.mxu0 0.0
  %1180 = vmatpush1.msra.mxu0 0.0
  %1181 = vmatprep.subr.mxu0 0.0
  %1182 = vmatpush1.msra.mxu0 0.0
  %1183 = vmatprep.subr.mxu0 0.0
  %1184 = vmatpush1.msra.mxu0 0.0
  %1185 = vmatprep.subr.mxu0 0.0
  %1186 = vmatpush1.msra.mxu0 0.0
  %1187 = vmatprep.subr.mxu0 0.0
  %1188 = vmatpush1.msra.mxu0 0.0
  %1189 = vmatprep.subr.mxu0 0.0
  %1190 = vmatpush1.msra.mxu0 0.0
  %1191 = vmatprep.subr.mxu0 0.0
  %1192 = vmatpush1.msra.mxu0 0.0
  %1193 = vmatprep.subr.mxu0 0.0
  %1194 = vmatpush1.msra.mxu0 0.0
  %1195 = vmatprep.subr.mxu0 0.0
  %1196 = vmatpush1.msra.mxu0 0.0
  %1197 = vmatprep.subr.mxu0 0.0
  %1198 = vmatpush1.msra.mxu0 0.0
  %1199 = vmatprep.subr.mxu0 0.0
  %1200 = vmatpush1.msra.mxu0 0.0
  %1201 = vmatprep.subr.mxu0 0.0
  %1202 = vmatpush1.msra.mxu0 0.0
  %1203 = vmatprep.subr.mxu0 0.0
  %1204 = vmatpush1.msra.mxu0 0.0
  %1205 = vmatprep.subr.mxu0 0.0
  %1206 = vmatpush1.msra.mxu0 0.0
  %1207 = vmatprep.subr.mxu0 0.0
  %1208 = vmatpush1.msra.mxu0 0.0
  %1209 = vmatprep.subr.mxu0 0.0
  %1210 = vmatpush1.msra.mxu0 0.0
  %1211 = vmatprep.subr.mxu0 0.0
  %1212 = vmatpush1.msra.mxu0 0.0
  %1213 = vmatprep.subr.mxu0 0.0
  %1214 = vmatpush1.msra.mxu0 0.0
  %1215 = vmatprep.subr.mxu0 0.0
  %1216 = vmatpush1.msra.mxu0 0.0
  %1217 = vmatprep.subr.mxu0 0.0
  %1218 = vmatpush1.msra.mxu0 0.0
  %1219 = vmatprep.subr.mxu0 0.0
  %1220 = vmatpush1.msra.mxu0 0.0
  %1221 = vmatprep.subr.mxu0 0.0
  %1222 = vmatpush1.msra.mxu0 0.0
  %1223 = vmatprep.subr.mxu0 0.0
  %1224 = vmatpush1.msra.mxu0 0.0
  %1225 = vmatprep.subr.mxu0 0.0
  %1226 = vmatpush1.msra.mxu0 0.0
  %1227 = vmatprep.subr.mxu0 0.0
  %1228 = vmatpush1.msra.mxu0 0.0
  %1229 = vmatprep.subr.mxu0 0.0
  %1230 = vmatpush1.msra.mxu0 0.0
  %1231 = vmatprep.subr.mxu0 0.0
  %1232 = vmatpush1.msra.mxu0 0.0
  %1233 = vmatprep.subr.mxu0 0.0
  %1234 = vmatpush1.msra.mxu0 0.0
  %1235 = vmatprep.mubr.f32.mxu0 0.0
  %1236 = vmatmul.mubr.f32.gmra.mrb[0].mxu0 %v1166
  %v1237 = vpop.f32.mrb[0].mxu0
  %v1238 = vadd.f32 0.0, %v1237
  %v1239 = vpop.f32.mrb[0].mxu0
  %1240 = vmatprep.mubr.f32.mxu0 0.0
  %1241 = vmatmul.mubr.f32.gmra.mrb[0].mxu0 %v1169
  %v1242 = vpop.f32.mrb[0].mxu0
  %v1243 = vadd.f32 0.0, %v1242
  %v1244 = vpop.f32.mrb[0].mxu0
  %1245 = vdwg.mxu0
  %v1247 = vsel %vm205, %v1238, 0
  %v1250 = vsel %vm205, %v1243, 0
  %1252 = vmatprep.subr.mxu0 0.0
  %1253 = vmatpush1.msra.mxu0 %v196
  %1254 = vmatprep.subr.mxu0 0.0
  %1255 = vmatpush1.msra.mxu0 0.0
  %1256 = vmatprep.subr.mxu0 0.0
  %1257 = vmatpush1.msra.mxu0 0.0
  %1258 = vmatprep.subr.mxu0 0.0
  %1259 = vmatpush1.msra.mxu0 0.0
  %1260 = vmatprep.subr.mxu0 0.0
  %1261 = vmatpush1.msra.mxu0 0.0
  %1262 = vmatprep.subr.mxu0 0.0
  %1263 = vmatpush1.msra.mxu0 0.0
  %1264 = vmatprep.subr.mxu0 0.0
  %1265 = vmatpush1.msra.mxu0 0.0
  %1266 = vmatprep.subr.mxu0 0.0
  %1267 = vmatpush1.msra.mxu0 0.0
  %1268 = vmatprep.subr.mxu0 0.0
  %1269 = vmatpush1.msra.mxu0 0.0
  %1270 = vmatprep.subr.mxu0 0.0
  %1271 = vmatpush1.msra.mxu0 0.0
  %1272 = vmatprep.subr.mxu0 0.0
  %1273 = vmatpush1.msra.mxu0 0.0
  %1274 = vmatprep.subr.mxu0 0.0
  %1275 = vmatpush1.msra.mxu0 0.0
  %1276 = vmatprep.subr.mxu0 0.0
  %1277 = vmatpush1.msra.mxu0 0.0
  %1278 = vmatprep.subr.mxu0 0.0
  %1279 = vmatpush1.msra.mxu0 0.0
  %1280 = vmatprep.subr.mxu0 0.0
  %1281 = vmatpush1.msra.mxu0 0.0
  %1282 = vmatprep.subr.mxu0 0.0
  %1283 = vmatpush1.msra.mxu0 0.0
  %1284 = vmatprep.subr.mxu0 0.0
  %1285 = vmatpush1.msra.mxu0 0.0
  %1286 = vmatprep.subr.mxu0 0.0
  %1287 = vmatpush1.msra.mxu0 0.0
  %1288 = vmatprep.subr.mxu0 0.0
  %1289 = vmatpush1.msra.mxu0 0.0
  %1290 = vmatprep.subr.mxu0 0.0
  %1291 = vmatpush1.msra.mxu0 0.0
  %1292 = vmatprep.subr.mxu0 0.0
  %1293 = vmatpush1.msra.mxu0 0.0
  %1294 = vmatprep.subr.mxu0 0.0
  %1295 = vmatpush1.msra.mxu0 0.0
  %1296 = vmatprep.subr.mxu0 0.0
  %1297 = vmatpush1.msra.mxu0 0.0
  %1298 = vmatprep.subr.mxu0 0.0
  %1299 = vmatpush1.msra.mxu0 0.0
  %1300 = vmatprep.subr.mxu0 0.0
  %1301 = vmatpush1.msra.mxu0 0.0
  %1302 = vmatprep.subr.mxu0 0.0
  %1303 = vmatpush1.msra.mxu0 0.0
  %1304 = vmatprep.subr.mxu0 0.0
  %1305 = vmatpush1.msra.mxu0 0.0
  %1306 = vmatprep.subr.mxu0 0.0
  %1307 = vmatpush1.msra.mxu0 0.0
  %1308 = vmatprep.subr.mxu0 0.0
  %1309 = vmatpush1.msra.mxu0 0.0
  %1310 = vmatprep.subr.mxu0 0.0
  %1311 = vmatpush1.msra.mxu0 0.0
  %1312 = vmatprep.subr.mxu0 0.0
  %1313 = vmatpush1.msra.mxu0 0.0
  %1314 = vmatprep.subr.mxu0 0.0
  %1315 = vmatpush1.msra.mxu0 0.0
  %1316 = vmatprep.mubr.f32.mxu0 0.0
  %1317 = vmatmul.mubr.f32.gmra.mrb[0].mxu0 %v1247
  %v1318 = vpop.f32.mrb[0].mxu0
  %v1319 = vadd.f32 0.0, %v1318
  %v1320 = vpop.f32.mrb[0].mxu0
  %1321 = vmatprep.mubr.f32.mxu0 0.0
  %1322 = vmatmul.mubr.f32.gmra.mrb[0].mxu0 %v1250
  %v1323 = vpop.f32.mrb[0].mxu0
  %v1324 = vadd.f32 0.0, %v1323
  %v1325 = vpop.f32.mrb[0].mxu0
  %1326 = vdwg.mxu0
  %v1327 = vadd.f32 %v1044, %v1319
  %v1328 = vadd.f32 %v1045, %v1324
  %v1329 = vld [vmem:[%s6] sm:$0x1]
  %v1331 = vlaneseq
  %v1332 = vshrl.u32 %v1331, 7
  %v1333 = vsub.s32 0, %v1332
  %v1334 = vrot.slane %v1329, %v1333
  %v1336 = vadd.f32 %v1327, %v1334
  %v1337 = vadd.f32 %v1328, %v1334
  %v1338 = vadd.f32 %v99, %v1336
  %v1339 = vadd.f32 %v100, %v1337
  %v1340 = vld [vmem:[%s7] sm:$0x3]
  %v1341 = vsel %vm61, %v1338, 0.0
  %1342 = vadd.xlane.f32.xlu0 %v1341
  %v1343 = vpop.xlane.xlu0 %1342
  %v1344 = vsel %vm61, %v1339, 0.0
  %1345 = vadd.xlane.f32.xlu0 %v1344
  %v1346 = vpop.xlane.xlu0 %1345
  %v1347 = vmul.f32 %v1343, %v68
  %v1348 = vmul.f32 %v1346, %v68
  %v1349 = vsub.f32 %v1338, %v1347
  %v1350 = vsub.f32 %v1339, %v1348
  %v1351 = vmul.f32 %v1349, %v1349
  %v1352 = vmul.f32 %v1350, %v1350
  %v1353 = vsel %vm61, %v1351, 0.0
  %1354 = vadd.xlane.f32.xlu0 %v1353
  %v1355 = vpop.xlane.xlu0 %1354
  %v1356 = vsel %vm61, %v1352, 0.0
  %1357 = vadd.xlane.f32.xlu0 %v1356
  %v1358 = vpop.xlane.xlu0 %1357
  %v1359 = vmul.f32 %v1355, %v68
  %v1360 = vmul.f32 %v1358, %v68
  %v1361 = vadd.f32 %v1359, 1e-12
  %v1362 = vadd.f32 %v1360, 1e-12
  %v1363 = vrsqrt.pop %v1361
  %v1364 = vrsqrt.pop %v1362
  %v1365 = vmul.f32 %v1349, %v1363
  %v1366 = vmul.f32 %v1350, %v1364
  %v1367 = vlaneseq
  %v1368 = vshrl.u32 %v1367, 7
  %v1369 = vsub.s32 0, %v1368
  %v1370 = vrot.slane %v1340, %v1369
  %v1371 = vmul.f32 %v1365, %v1370
  %v1372 = vmul.f32 %v1366, %v1370
  %v1373 = vlaneseq
  %v1374 = vshrl.u32 %v1373, 7
  %v1375 = vsub.s32 1, %v1374
  %v1376 = vrot.slane %v1340, %v1375
  %v1377 = vadd.f32 %v1371, %v1376
  %v1378 = vadd.f32 %v1372, %v1376
  %v1379 = vld [vmem:[%s8] sm:$0xff]
  %v1380 = vld [vmem:[%s8 + $0x8] sm:$0xff]
  %v1381 = vld [vmem:[%s8 + $0x10] sm:$0xff]
  %v1382 = vld [vmem:[%s8 + $0x18] sm:$0xff]
  %v1383 = vld [vmem:[%s9] sm:$0x1]
  %v1385 = vlaneseq
  %v1386 = vshrl.u32 %v1385, 7
  %v1387 = vsub.s32 0, %v1386
  %v1388 = vrot.slane %v1383, %v1387
  %v1391 = vsel %vm61, %v1377, 0
  %v1394 = vsel %vm61, %v1378, 0
  %1396 = vmatprep.subr.mxu0 0.0
  %1397 = vmatpush1.msra.mxu0 %v1379
  %1398 = vmatprep.subr.mxu0 0.0
  %1399 = vmatpush1.msra.mxu0 %v1380
  %1400 = vmatprep.subr.mxu0 0.0
  %1401 = vmatpush1.msra.mxu0 %v1381
  %1402 = vmatprep.subr.mxu0 0.0
  %1403 = vmatpush1.msra.mxu0 %v1382
  %1404 = vmatprep.subr.mxu0 0.0
  %1405 = vmatpush1.msra.mxu0 0.0
  %1406 = vmatprep.subr.mxu0 0.0
  %1407 = vmatpush1.msra.mxu0 0.0
  %1408 = vmatprep.subr.mxu0 0.0
  %1409 = vmatpush1.msra.mxu0 0.0
  %1410 = vmatprep.subr.mxu0 0.0
  %1411 = vmatpush1.msra.mxu0 0.0
  %1412 = vmatprep.subr.mxu0 0.0
  %1413 = vmatpush1.msra.mxu0 0.0
  %1414 = vmatprep.subr.mxu0 0.0
  %1415 = vmatpush1.msra.mxu0 0.0
  %1416 = vmatprep.subr.mxu0 0.0
  %1417 = vmatpush1.msra.mxu0 0.0
  %1418 = vmatprep.subr.mxu0 0.0
  %1419 = vmatpush1.msra.mxu0 0.0
  %1420 = vmatprep.subr.mxu0 0.0
  %1421 = vmatpush1.msra.mxu0 0.0
  %1422 = vmatprep.subr.mxu0 0.0
  %1423 = vmatpush1.msra.mxu0 0.0
  %1424 = vmatprep.subr.mxu0 0.0
  %1425 = vmatpush1.msra.mxu0 0.0
  %1426 = vmatprep.subr.mxu0 0.0
  %1427 = vmatpush1.msra.mxu0 0.0
  %1428 = vmatprep.subr.mxu0 0.0
  %1429 = vmatpush1.msra.mxu0 0.0
  %1430 = vmatprep.subr.mxu0 0.0
  %1431 = vmatpush1.msra.mxu0 0.0
  %1432 = vmatprep.subr.mxu0 0.0
  %1433 = vmatpush1.msra.mxu0 0.0
  %1434 = vmatprep.subr.mxu0 0.0
  %1435 = vmatpush1.msra.mxu0 0.0
  %1436 = vmatprep.subr.mxu0 0.0
  %1437 = vmatpush1.msra.mxu0 0.0
  %1438 = vmatprep.subr.mxu0 0.0
  %1439 = vmatpush1.msra.mxu0 0.0
  %1440 = vmatprep.subr.mxu0 0.0
  %1441 = vmatpush1.msra.mxu0 0.0
  %1442 = vmatprep.subr.mxu0 0.0
  %1443 = vmatpush1.msra.mxu0 0.0
  %1444 = vmatprep.subr.mxu0 0.0
  %1445 = vmatpush1.msra.mxu0 0.0
  %1446 = vmatprep.subr.mxu0 0.0
  %1447 = vmatpush1.msra.mxu0 0.0
  %1448 = vmatprep.subr.mxu0 0.0
  %1449 = vmatpush1.msra.mxu0 0.0
  %1450 = vmatprep.subr.mxu0 0.0
  %1451 = vmatpush1.msra.mxu0 0.0
  %1452 = vmatprep.subr.mxu0 0.0
  %1453 = vmatpush1.msra.mxu0 0.0
  %1454 = vmatprep.subr.mxu0 0.0
  %1455 = vmatpush1.msra.mxu0 0.0
  %1456 = vmatprep.subr.mxu0 0.0
  %1457 = vmatpush1.msra.mxu0 0.0
  %1458 = vmatprep.subr.mxu0 0.0
  %1459 = vmatpush1.msra.mxu0 0.0
  %1460 = vmatprep.mubr.f32.mxu0 0.0
  %1461 = vmatmul.mubr.f32.gmra.mrb[0].mxu0 %v1391
  %v1462 = vpop.f32.mrb[0].mxu0
  %v1463 = vadd.f32 %v1388, %v1462
  %v1464 = vpop.f32.mrb[0].mxu0
  %1465 = vmatprep.mubr.f32.mxu0 0.0
  %1466 = vmatmul.mubr.f32.gmra.mrb[0].mxu0 %v1394
  %v1467 = vpop.f32.mrb[0].mxu0
  %v1468 = vadd.f32 %v1388, %v1467
  %v1469 = vpop.f32.mrb[0].mxu0
  %1470 = vdwg.mxu0
  %v1471 = vmul.f32 %v1463, %v1463
  %v1472 = vmul.f32 %v1468, %v1468
  %v1473 = vmul.f32 %v1463, %v1471
  %v1474 = vmul.f32 %v1468, %v1472
  %v1475 = vmul.f32 %v1473, 0.044715
  %v1476 = vmul.f32 %v1474, 0.044715
  %v1477 = vadd.f32 %v1463, %v1475
  %v1478 = vadd.f32 %v1468, %v1476
  %v1479 = vmul.f32 %v1477, 0.7978846
  %v1480 = vmul.f32 %v1478, 0.7978846
  %v1481 = vtanh.pop %v1479
  %v1482 = vtanh.pop %v1480
  %v1483 = vadd.f32 %v1481, 1.0
  %v1484 = vadd.f32 %v1482, 1.0
  %v1485 = vmul.f32 %v1483, 0.5
  %v1486 = vmul.f32 %v1484, 0.5
  %v1487 = vmul.f32 %v1463, %v1485
  %v1488 = vmul.f32 %v1468, %v1486
  %v1489 = vld [vmem:[%s10] sm:$0xff]
  %v1490 = vld [vmem:[%s10 + $0x8] sm:$0xff]
  %v1491 = vld [vmem:[%s10 + $0x10] sm:$0xff]
  %v1492 = vld [vmem:[%s10 + $0x18] sm:$0xff]
  %v1493 = vld [vmem:[%s10 + $0x20] sm:$0xff]
  %v1494 = vld [vmem:[%s10 + $0x28] sm:$0xff]
  %v1495 = vld [vmem:[%s10 + $0x30] sm:$0xff]
  %v1496 = vld [vmem:[%s10 + $0x38] sm:$0xff]
  %v1497 = vld [vmem:[%s11] sm:$0x1]
  %v1499 = vlaneseq
  %v1500 = vshrl.u32 %v1499, 7
  %v1501 = vsub.s32 0, %v1500
  %v1502 = vrot.slane %v1497, %v1501
  %vm1504 = vcmask 523264
  %v1506 = vsel %vm1504, %v1487, 0
  %v1509 = vsel %vm1504, %v1488, 0
  %1511 = vmatprep.subr.mxu0 0.0
  %1512 = vmatpush1.msra.mxu0 %v1489
  %1513 = vmatprep.subr.mxu0 0.0
  %1514 = vmatpush1.msra.mxu0 %v1490
  %1515 = vmatprep.subr.mxu0 0.0
  %1516 = vmatpush1.msra.mxu0 %v1491
  %1517 = vmatprep.subr.mxu0 0.0
  %1518 = vmatpush1.msra.mxu0 %v1492
  %1519 = vmatprep.subr.mxu0 0.0
  %1520 = vmatpush1.msra.mxu0 %v1493
  %1521 = vmatprep.subr.mxu0 0.0
  %1522 = vmatpush1.msra.mxu0 %v1494
  %1523 = vmatprep.subr.mxu0 0.0
  %1524 = vmatpush1.msra.mxu0 %v1495
  %1525 = vmatprep.subr.mxu0 0.0
  %1526 = vmatpush1.msra.mxu0 %v1496
  %1527 = vmatprep.subr.mxu0 0.0
  %1528 = vmatpush1.msra.mxu0 0.0
  %1529 = vmatprep.subr.mxu0 0.0
  %1530 = vmatpush1.msra.mxu0 0.0
  %1531 = vmatprep.subr.mxu0 0.0
  %1532 = vmatpush1.msra.mxu0 0.0
  %1533 = vmatprep.subr.mxu0 0.0
  %1534 = vmatpush1.msra.mxu0 0.0
  %1535 = vmatprep.subr.mxu0 0.0
  %1536 = vmatpush1.msra.mxu0 0.0
  %1537 = vmatprep.subr.mxu0 0.0
  %1538 = vmatpush1.msra.mxu0 0.0
  %1539 = vmatprep.subr.mxu0 0.0
  %1540 = vmatpush1.msra.mxu0 0.0
  %1541 = vmatprep.subr.mxu0 0.0
  %1542 = vmatpush1.msra.mxu0 0.0
  %1543 = vmatprep.subr.mxu0 0.0
  %1544 = vmatpush1.msra.mxu0 0.0
  %1545 = vmatprep.subr.mxu0 0.0
  %1546 = vmatpush1.msra.mxu0 0.0
  %1547 = vmatprep.subr.mxu0 0.0
  %1548 = vmatpush1.msra.mxu0 0.0
  %1549 = vmatprep.subr.mxu0 0.0
  %1550 = vmatpush1.msra.mxu0 0.0
  %1551 = vmatprep.subr.mxu0 0.0
  %1552 = vmatpush1.msra.mxu0 0.0
  %1553 = vmatprep.subr.mxu0 0.0
  %1554 = vmatpush1.msra.mxu0 0.0
  %1555 = vmatprep.subr.mxu0 0.0
  %1556 = vmatpush1.msra.mxu0 0.0
  %1557 = vmatprep.subr.mxu0 0.0
  %1558 = vmatpush1.msra.mxu0 0.0
  %1559 = vmatprep.subr.mxu0 0.0
  %1560 = vmatpush1.msra.mxu0 0.0
  %1561 = vmatprep.subr.mxu0 0.0
  %1562 = vmatpush1.msra.mxu0 0.0
  %1563 = vmatprep.subr.mxu0 0.0
  %1564 = vmatpush1.msra.mxu0 0.0
  %1565 = vmatprep.subr.mxu0 0.0
  %1566 = vmatpush1.msra.mxu0 0.0
  %1567 = vmatprep.subr.mxu0 0.0
  %1568 = vmatpush1.msra.mxu0 0.0
  %1569 = vmatprep.subr.mxu0 0.0
  %1570 = vmatpush1.msra.mxu0 0.0
  %1571 = vmatprep.subr.mxu0 0.0
  %1572 = vmatpush1.msra.mxu0 0.0
  %1573 = vmatprep.subr.mxu0 0.0
  %1574 = vmatpush1.msra.mxu0 0.0
  %1575 = vmatprep.mubr.f32.mxu0 0.0
  %1576 = vmatmul.mubr.f32.gmra.mrb[0].mxu0 %v1506
  %v1577 = vpop.f32.mrb[0].mxu0
  %v1578 = vadd.f32 %v1502, %v1577
  %v1579 = vpop.f32.mrb[0].mxu0
  %1580 = vmatprep.mubr.f32.mxu0 0.0
  %1581 = vmatmul.mubr.f32.gmra.mrb[0].mxu0 %v1509
  %v1582 = vpop.f32.mrb[0].mxu0
  %v1583 = vadd.f32 %v1502, %v1582
  %v1584 = vpop.f32.mrb[0].mxu0
  %1585 = vdwg.mxu0
  %v1586 = vadd.f32 %v1377, %v1578
  %v1587 = vadd.f32 %v1378, %v1583
  %v1588 = vld [vmem:[%s12] sm:$0x3]
  %v1589 = vsel %vm61, %v1586, 0.0
  %1590 = vadd.xlane.f32.xlu0 %v1589
  %v1591 = vpop.xlane.xlu0 %1590
  %v1592 = vsel %vm61, %v1587, 0.0
  %1593 = vadd.xlane.f32.xlu0 %v1592
  %v1594 = vpop.xlane.xlu0 %1593
  %v1595 = vmul.f32 %v1591, %v68
  %v1596 = vmul.f32 %v1594, %v68
  %v1597 = vsub.f32 %v1586, %v1595
  %v1598 = vsub.f32 %v1587, %v1596
  %v1599 = vmul.f32 %v1597, %v1597
  %v1600 = vmul.f32 %v1598, %v1598
  %v1601 = vsel %vm61, %v1599, 0.0
  %1602 = vadd.xlane.f32.xlu0 %v1601
  %v1603 = vpop.xlane.xlu0 %1602
  %v1604 = vsel %vm61, %v1600, 0.0
  %1605 = vadd.xlane.f32.xlu0 %v1604
  %v1606 = vpop.xlane.xlu0 %1605
  %v1607 = vmul.f32 %v1603, %v68
  %v1608 = vmul.f32 %v1606, %v68
  %v1609 = vadd.f32 %v1607, 1e-12
  %v1610 = vadd.f32 %v1608, 1e-12
  %v1611 = vrsqrt.pop %v1609
  %v1612 = vrsqrt.pop %v1610
  %v1613 = vmul.f32 %v1597, %v1611
  %v1614 = vmul.f32 %v1598, %v1612
  %v1615 = vlaneseq
  %v1616 = vshrl.u32 %v1615, 7
  %v1617 = vsub.s32 0, %v1616
  %v1618 = vrot.slane %v1588, %v1617
  %v1619 = vmul.f32 %v1613, %v1618
  %v1620 = vmul.f32 %v1614, %v1618
  %v1621 = vlaneseq
  %v1622 = vshrl.u32 %v1621, 7
  %v1623 = vsub.s32 1, %v1622
  %v1624 = vrot.slane %v1588, %v1623
  %v1625 = vadd.f32 %v1619, %v1624
  %v1626 = vadd.f32 %v1620, %v1624
  %s1627 = scalar_lea.vmem %s3, 32
  %v1628 = vld [vmem:[%s1627] sm:$0xff]
  %v1629 = vld [vmem:[%s1627 + $0x8] sm:$0xff]
  %v1630 = vld [vmem:[%s1627 + $0x10] sm:$0xff]
  %v1631 = vld [vmem:[%s1627 + $0x18] sm:$0xff]
  %s1632 = scalar_lea.vmem %s4, 1
  %v1633 = vld [vmem:[%s1632] sm:$0x1]
  %v1635 = vlaneseq
  %v1636 = vshrl.u32 %v1635, 7
  %v1637 = vsub.s32 0, %v1636
  %v1638 = vrot.slane %v1633, %v1637
  %v1641 = vsel %vm61, %v1625, 0
  %v1644 = vsel %vm61, %v1626, 0
  %1646 = vmatprep.subr.mxu0 0.0
  %1647 = vmatpush1.msra.mxu0 %v1628
  %1648 = vmatprep.subr.mxu0 0.0
  %1649 = vmatpush1.msra.mxu0 %v1629
  %1650 = vmatprep.subr.mxu0 0.0
  %1651 = vmatpush1.msra.mxu0 %v1630
  %1652 = vmatprep.subr.mxu0 0.0
  %1653 = vmatpush1.msra.mxu0 %v1631
  %1654 = vmatprep.subr.mxu0 0.0
  %1655 = vmatpush1.msra.mxu0 0.0
  %1656 = vmatprep.subr.mxu0 0.0
  %1657 = vmatpush1.msra.mxu0 0.0
  %1658 = vmatprep.subr.mxu0 0.0
  %1659 = vmatpush1.msra.mxu0 0.0
  %1660 = vmatprep.subr.mxu0 0.0
  %1661 = vmatpush1.msra.mxu0 0.0
  %1662 = vmatprep.subr.mxu0 0.0
  %1663 = vmatpush1.msra.mxu0 0.0
  %1664 = vmatprep.subr.mxu0 0.0
  %1665 = vmatpush1.msra.mxu0 0.0
  %1666 = vmatprep.subr.mxu0 0.0
  %1667 = vmatpush1.msra.mxu0 0.0
  %1668 = vmatprep.subr.mxu0 0.0
  %1669 = vmatpush1.msra.mxu0 0.0
  %1670 = vmatprep.subr.mxu0 0.0
  %1671 = vmatpush1.msra.mxu0 0.0
  %1672 = vmatprep.subr.mxu0 0.0
  %1673 = vmatpush1.msra.mxu0 0.0
  %1674 = vmatprep.subr.mxu0 0.0
  %1675 = vmatpush1.msra.mxu0 0.0
  %1676 = vmatprep.subr.mxu0 0.0
  %1677 = vmatpush1.msra.mxu0 0.0
  %1678 = vmatprep.subr.mxu0 0.0
  %1679 = vmatpush1.msra.mxu0 0.0
  %1680 = vmatprep.subr.mxu0 0.0
  %1681 = vmatpush1.msra.mxu0 0.0
  %1682 = vmatprep.subr.mxu0 0.0
  %1683 = vmatpush1.msra.mxu0 0.0
  %1684 = vmatprep.subr.mxu0 0.0
  %1685 = vmatpush1.msra.mxu0 0.0
  %1686 = vmatprep.subr.mxu0 0.0
  %1687 = vmatpush1.msra.mxu0 0.0
  %1688 = vmatprep.subr.mxu0 0.0
  %1689 = vmatpush1.msra.mxu0 0.0
  %1690 = vmatprep.subr.mxu0 0.0
  %1691 = vmatpush1.msra.mxu0 0.0
  %1692 = vmatprep.subr.mxu0 0.0
  %1693 = vmatpush1.msra.mxu0 0.0
  %1694 = vmatprep.subr.mxu0 0.0
  %1695 = vmatpush1.msra.mxu0 0.0
  %1696 = vmatprep.subr.mxu0 0.0
  %1697 = vmatpush1.msra.mxu0 0.0
  %1698 = vmatprep.subr.mxu0 0.0
  %1699 = vmatpush1.msra.mxu0 0.0
  %1700 = vmatprep.subr.mxu0 0.0
  %1701 = vmatpush1.msra.mxu0 0.0
  %1702 = vmatprep.subr.mxu0 0.0
  %1703 = vmatpush1.msra.mxu0 0.0
  %1704 = vmatprep.subr.mxu0 0.0
  %1705 = vmatpush1.msra.mxu0 0.0
  %1706 = vmatprep.subr.mxu0 0.0
  %1707 = vmatpush1.msra.mxu0 0.0
  %1708 = vmatprep.subr.mxu0 0.0
  %1709 = vmatpush1.msra.mxu0 0.0
  %1710 = vmatprep.mubr.f32.mxu0 0.0
  %1711 = vmatmul.mubr.f32.gmra.mrb[0].mxu0 %v1641
  %v1712 = vpop.f32.mrb[0].mxu0
  %v1713 = vadd.f32 %v1638, %v1712
  %v1714 = vpop.f32.mrb[0].mxu0
  %1715 = vmatprep.mubr.f32.mxu0 0.0
  %1716 = vmatmul.mubr.f32.gmra.mrb[0].mxu0 %v1644
  %v1717 = vpop.f32.mrb[0].mxu0
  %v1718 = vadd.f32 %v1638, %v1717
  %v1719 = vpop.f32.mrb[0].mxu0
  %1720 = vdwg.mxu0
  %s1721 = scalar_lea.vmem %s5, 32
  %v1722 = vld [vmem:[%s1721] sm:$0xff]
  %v1723 = vld [vmem:[%s1721 + $0x8] sm:$0xff]
  %v1724 = vld [vmem:[%s1721 + $0x10] sm:$0xff]
  %v1725 = vld [vmem:[%s1721 + $0x18] sm:$0xff]
  %v1726 = vmul.f32 %v1713, 0.35355338
  %v1727 = vmul.f32 %v1718, 0.35355338
  %1730 = vrot.lane.b32.xlu0 %v1713, 96
  %v1731 = vpop.permute.xlu0 %1730
  %1732 = vrot.lane.b32.xlu0 %v1718, 96
  %v1733 = vpop.permute.xlu0 %1732
  %v1735 = vsel %vm205, %v1726, 0
  %v1738 = vsel %vm205, %v1727, 0
  %v1740 = vsel %vm205, %v1731, 0
  %v1742 = vsel %vm205, %v1733, 0
  %1744 = vmatprep.subr.mxu0 0.0
  %1745 = vmatpush1.xpose.msra.mxu0 %v1740
  %1746 = vmatprep.subr.mxu0 0.0
  %1747 = vmatpush1.xpose.msra.mxu0 %v1742
  %1748 = vmatprep.subr.mxu0 0.0
  %1749 = vmatpush1.xpose.msra.mxu0 0.0
  %1750 = vmatprep.subr.mxu0 0.0
  %1751 = vmatpush1.xpose.msra.mxu0 0.0
  %1752 = vmatprep.subr.mxu0 0.0
  %1753 = vmatpush1.xpose.msra.mxu0 0.0
  %1754 = vmatprep.subr.mxu0 0.0
  %1755 = vmatpush1.xpose.msra.mxu0 0.0
  %1756 = vmatprep.subr.mxu0 0.0
  %1757 = vmatpush1.xpose.msra.mxu0 0.0
  %1758 = vmatprep.subr.mxu0 0.0
  %1759 = vmatpush1.xpose.msra.mxu0 0.0
  %1760 = vmatprep.subr.mxu0 0.0
  %1761 = vmatpush1.xpose.msra.mxu0 0.0
  %1762 = vmatprep.subr.mxu0 0.0
  %1763 = vmatpush1.xpose.msra.mxu0 0.0
  %1764 = vmatprep.subr.mxu0 0.0
  %1765 = vmatpush1.xpose.msra.mxu0 0.0
  %1766 = vmatprep.subr.mxu0 0.0
  %1767 = vmatpush1.xpose.msra.mxu0 0.0
  %1768 = vmatprep.subr.mxu0 0.0
  %1769 = vmatpush1.xpose.msra.mxu0 0.0
  %1770 = vmatprep.subr.mxu0 0.0
  %1771 = vmatpush1.xpose.msra.mxu0 0.0
  %1772 = vmatprep.subr.mxu0 0.0
  %1773 = vmatpush1.xpose.msra.mxu0 0.0
  %1774 = vmatprep.subr.mxu0 0.0
  %1775 = vmatpush1.xpose.msra.mxu0 0.0
  %1776 = vmatprep.subr.mxu0 0.0
  %1777 = vmatpush1.xpose.msra.mxu0 0.0
  %1778 = vmatprep.subr.mxu0 0.0
  %1779 = vmatpush1.xpose.msra.mxu0 0.0
  %1780 = vmatprep.subr.mxu0 0.0
  %1781 = vmatpush1.xpose.msra.mxu0 0.0
  %1782 = vmatprep.subr.mxu0 0.0
  %1783 = vmatpush1.xpose.msra.mxu0 0.0
  %1784 = vmatprep.subr.mxu0 0.0
  %1785 = vmatpush1.xpose.msra.mxu0 0.0
  %1786 = vmatprep.subr.mxu0 0.0
  %1787 = vmatpush1.xpose.msra.mxu0 0.0
  %1788 = vmatprep.subr.mxu0 0.0
  %1789 = vmatpush1.xpose.msra.mxu0 0.0
  %1790 = vmatprep.subr.mxu0 0.0
  %1791 = vmatpush1.xpose.msra.mxu0 0.0
  %1792 = vmatprep.subr.mxu0 0.0
  %1793 = vmatpush1.xpose.msra.mxu0 0.0
  %1794 = vmatprep.subr.mxu0 0.0
  %1795 = vmatpush1.xpose.msra.mxu0 0.0
  %1796 = vmatprep.subr.mxu0 0.0
  %1797 = vmatpush1.xpose.msra.mxu0 0.0
  %1798 = vmatprep.subr.mxu0 0.0
  %1799 = vmatpush1.xpose.msra.mxu0 0.0
  %1800 = vmatprep.subr.mxu0 0.0
  %1801 = vmatpush1.xpose.msra.mxu0 0.0
  %1802 = vmatprep.subr.mxu0 0.0
  %1803 = vmatpush1.xpose.msra.mxu0 0.0
  %1804 = vmatprep.subr.mxu0 0.0
  %1805 = vmatpush1.xpose.msra.mxu0 0.0
  %1806 = vmatprep.subr.mxu0 0.0
  %1807 = vmatpush1.xpose.msra.mxu0 0.0
  %1808 = vmatprep.mubr.f32.mxu0 0.0
  %1809 = vmatmul.mubr.f32.gmra.mrb[0].mxu0 %v1735
  %v1810 = vpop.f32.mrb[0].mxu0
  %v1811 = vadd.f32 %v56, %v1810
  %v1812 = vpop.f32.mrb[0].mxu0
  %1813 = vmatprep.mubr.f32.mxu0 0.0
  %1814 = vmatmul.mubr.f32.gmra.mrb[0].mxu0 %v1738
  %v1815 = vpop.f32.mrb[0].mxu0
  %v1816 = vadd.f32 %v57, %v1815
  %v1817 = vpop.f32.mrb[0].mxu0
  %1818 = vdwg.mxu0
  %v1819 = vsel %vm291, %v1811, -inf
  %1820 = vmax.xlane.f32.xlu0 %v1819
  %v1821 = vpop.xlane.xlu0 %1820
  %v1822 = vsel %vm291, %v1816, -inf
  %1823 = vmax.xlane.f32.xlu0 %v1822
  %v1824 = vpop.xlane.xlu0 %1823
  %v1825 = vsub.f32 %v1811, %v1821
  %v1826 = vsub.f32 %v1816, %v1824
  %v1827 = vmul.f32 %v1825, 1.442695
  %v1828 = vpow.pop %v1827
  %v1829 = vmul.f32 %v1826, 1.442695
  %v1830 = vpow.pop %v1829
  %v1831 = vsel %vm291, %v1828, 0.0
  %1832 = vadd.xlane.f32.xlu0 %v1831
  %v1833 = vpop.xlane.xlu0 %1832
  %v1834 = vsel %vm291, %v1830, 0.0
  %1835 = vadd.xlane.f32.xlu0 %v1834
  %v1836 = vpop.xlane.xlu0 %1835
  %v1837 = vrcp.pop %v1833
  %v1838 = vrcp.pop %v1836
  %v1839 = vmul.f32 %v1828, %v1837
  %v1840 = vmul.f32 %v1830, %v1838
  %1841 = vrot.lane.b32.xlu0 %v1713, 64
  %v1842 = vpop.permute.xlu0 %1841
  %1843 = vrot.lane.b32.xlu0 %v1718, 64
  %v1844 = vpop.permute.xlu0 %1843
  %v1848 = vsel %vm291, %v1839, 0
  %v1851 = vsel %vm291, %v1840, 0
  %1853 = vmatprep.subr.mxu0 0.0
  %1854 = vmatpush1.msra.mxu0 %v1842
  %1855 = vmatprep.subr.mxu0 0.0
  %1856 = vmatpush1.msra.mxu0 %v1844
  %1857 = vmatprep.subr.mxu0 0.0
  %1858 = vmatpush1.msra.mxu0 0.0
  %1859 = vmatprep.subr.mxu0 0.0
  %1860 = vmatpush1.msra.mxu0 0.0
  %1861 = vmatprep.subr.mxu0 0.0
  %1862 = vmatpush1.msra.mxu0 0.0
  %1863 = vmatprep.subr.mxu0 0.0
  %1864 = vmatpush1.msra.mxu0 0.0
  %1865 = vmatprep.subr.mxu0 0.0
  %1866 = vmatpush1.msra.mxu0 0.0
  %1867 = vmatprep.subr.mxu0 0.0
  %1868 = vmatpush1.msra.mxu0 0.0
  %1869 = vmatprep.subr.mxu0 0.0
  %1870 = vmatpush1.msra.mxu0 0.0
  %1871 = vmatprep.subr.mxu0 0.0
  %1872 = vmatpush1.msra.mxu0 0.0
  %1873 = vmatprep.subr.mxu0 0.0
  %1874 = vmatpush1.msra.mxu0 0.0
  %1875 = vmatprep.subr.mxu0 0.0
  %1876 = vmatpush1.msra.mxu0 0.0
  %1877 = vmatprep.subr.mxu0 0.0
  %1878 = vmatpush1.msra.mxu0 0.0
  %1879 = vmatprep.subr.mxu0 0.0
  %1880 = vmatpush1.msra.mxu0 0.0
  %1881 = vmatprep.subr.mxu0 0.0
  %1882 = vmatpush1.msra.mxu0 0.0
  %1883 = vmatprep.subr.mxu0 0.0
  %1884 = vmatpush1.msra.mxu0 0.0
  %1885 = vmatprep.subr.mxu0 0.0
  %1886 = vmatpush1.msra.mxu0 0.0
  %1887 = vmatprep.subr.mxu0 0.0
  %1888 = vmatpush1.msra.mxu0 0.0
  %1889 = vmatprep.subr.mxu0 0.0
  %1890 = vmatpush1.msra.mxu0 0.0
  %1891 = vmatprep.subr.mxu0 0.0
  %1892 = vmatpush1.msra.mxu0 0.0
  %1893 = vmatprep.subr.mxu0 0.0
  %1894 = vmatpush1.msra.mxu0 0.0
  %1895 = vmatprep.subr.mxu0 0.0
  %1896 = vmatpush1.msra.mxu0 0.0
  %1897 = vmatprep.subr.mxu0 0.0
  %1898 = vmatpush1.msra.mxu0 0.0
  %1899 = vmatprep.subr.mxu0 0.0
  %1900 = vmatpush1.msra.mxu0 0.0
  %1901 = vmatprep.subr.mxu0 0.0
  %1902 = vmatpush1.msra.mxu0 0.0
  %1903 = vmatprep.subr.mxu0 0.0
  %1904 = vmatpush1.msra.mxu0 0.0
  %1905 = vmatprep.subr.mxu0 0.0
  %1906 = vmatpush1.msra.mxu0 0.0
  %1907 = vmatprep.subr.mxu0 0.0
  %1908 = vmatpush1.msra.mxu0 0.0
  %1909 = vmatprep.subr.mxu0 0.0
  %1910 = vmatpush1.msra.mxu0 0.0
  %1911 = vmatprep.subr.mxu0 0.0
  %1912 = vmatpush1.msra.mxu0 0.0
  %1913 = vmatprep.subr.mxu0 0.0
  %1914 = vmatpush1.msra.mxu0 0.0
  %1915 = vmatprep.subr.mxu0 0.0
  %1916 = vmatpush1.msra.mxu0 0.0
  %1917 = vmatprep.mubr.f32.mxu0 0.0
  %1918 = vmatmul.mubr.f32.gmra.mrb[0].mxu0 %v1848
  %v1919 = vpop.f32.mrb[0].mxu0
  %v1920 = vadd.f32 0.0, %v1919
  %v1921 = vpop.f32.mrb[0].mxu0
  %1922 = vmatprep.mubr.f32.mxu0 0.0
  %1923 = vmatmul.mubr.f32.gmra.mrb[0].mxu0 %v1851
  %v1924 = vpop.f32.mrb[0].mxu0
  %v1925 = vadd.f32 0.0, %v1924
  %v1926 = vpop.f32.mrb[0].mxu0
  %1927 = vdwg.mxu0
  %1928 = vrot.lane.b32.xlu0 %v1726, 120
  %v1929 = vpop.permute.xlu0 %1928
  %1930 = vrot.lane.b32.xlu0 %v1727, 120
  %v1931 = vpop.permute.xlu0 %1930
  %1932 = vrot.lane.b32.xlu0 %v1713, 88
  %v1933 = vpop.permute.xlu0 %1932
  %1934 = vrot.lane.b32.xlu0 %v1718, 88
  %v1935 = vpop.permute.xlu0 %1934
  %v1936 = vsel %vm205, %v1929, 0
  %v1938 = vsel %vm205, %v1931, 0
  %v1940 = vsel %vm205, %v1933, 0
  %v1942 = vsel %vm205, %v1935, 0
  %1944 = vmatprep.subr.mxu0 0.0
  %1945 = vmatpush1.xpose.msra.mxu0 %v1940
  %1946 = vmatprep.subr.mxu0 0.0
  %1947 = vmatpush1.xpose.msra.mxu0 %v1942
  %1948 = vmatprep.subr.mxu0 0.0
  %1949 = vmatpush1.xpose.msra.mxu0 0.0
  %1950 = vmatprep.subr.mxu0 0.0
  %1951 = vmatpush1.xpose.msra.mxu0 0.0
  %1952 = vmatprep.subr.mxu0 0.0
  %1953 = vmatpush1.xpose.msra.mxu0 0.0
  %1954 = vmatprep.subr.mxu0 0.0
  %1955 = vmatpush1.xpose.msra.mxu0 0.0
  %1956 = vmatprep.subr.mxu0 0.0
  %1957 = vmatpush1.xpose.msra.mxu0 0.0
  %1958 = vmatprep.subr.mxu0 0.0
  %1959 = vmatpush1.xpose.msra.mxu0 0.0
  %1960 = vmatprep.subr.mxu0 0.0
  %1961 = vmatpush1.xpose.msra.mxu0 0.0
  %1962 = vmatprep.subr.mxu0 0.0
  %1963 = vmatpush1.xpose.msra.mxu0 0.0
  %1964 = vmatprep.subr.mxu0 0.0
  %1965 = vmatpush1.xpose.msra.mxu0 0.0
  %1966 = vmatprep.subr.mxu0 0.0
  %1967 = vmatpush1.xpose.msra.mxu0 0.0
  %1968 = vmatprep.subr.mxu0 0.0
  %1969 = vmatpush1.xpose.msra.mxu0 0.0
  %1970 = vmatprep.subr.mxu0 0.0
  %1971 = vmatpush1.xpose.msra.mxu0 0.0
  %1972 = vmatprep.subr.mxu0 0.0
  %1973 = vmatpush1.xpose.msra.mxu0 0.0
  %1974 = vmatprep.subr.mxu0 0.0
  %1975 = vmatpush1.xpose.msra.mxu0 0.0
  %1976 = vmatprep.subr.mxu0 0.0
  %1977 = vmatpush1.xpose.msra.mxu0 0.0
  %1978 = vmatprep.subr.mxu0 0.0
  %1979 = vmatpush1.xpose.msra.mxu0 0.0
  %1980 = vmatprep.subr.mxu0 0.0
  %1981 = vmatpush1.xpose.msra.mxu0 0.0
  %1982 = vmatprep.subr.mxu0 0.0
  %1983 = vmatpush1.xpose.msra.mxu0 0.0
  %1984 = vmatprep.subr.mxu0 0.0
  %1985 = vmatpush1.xpose.msra.mxu0 0.0
  %1986 = vmatprep.subr.mxu0 0.0
  %1987 = vmatpush1.xpose.msra.mxu0 0.0
  %1988 = vmatprep.subr.mxu0 0.0
  %1989 = vmatpush1.xpose.msra.mxu0 0.0
  %1990 = vmatprep.subr.mxu0 0.0
  %1991 = vmatpush1.xpose.msra.mxu0 0.0
  %1992 = vmatprep.subr.mxu0 0.0
  %1993 = vmatpush1.xpose.msra.mxu0 0.0
  %1994 = vmatprep.subr.mxu0 0.0
  %1995 = vmatpush1.xpose.msra.mxu0 0.0
  %1996 = vmatprep.subr.mxu0 0.0
  %1997 = vmatpush1.xpose.msra.mxu0 0.0
  %1998 = vmatprep.subr.mxu0 0.0
  %1999 = vmatpush1.xpose.msra.mxu0 0.0
  %2000 = vmatprep.subr.mxu0 0.0
  %2001 = vmatpush1.xpose.msra.mxu0 0.0
  %2002 = vmatprep.subr.mxu0 0.0
  %2003 = vmatpush1.xpose.msra.mxu0 0.0
  %2004 = vmatprep.subr.mxu0 0.0
  %2005 = vmatpush1.xpose.msra.mxu0 0.0
  %2006 = vmatprep.subr.mxu0 0.0
  %2007 = vmatpush1.xpose.msra.mxu0 0.0
  %2008 = vmatprep.mubr.f32.mxu0 0.0
  %2009 = vmatmul.mubr.f32.gmra.mrb[0].mxu0 %v1936
  %v2010 = vpop.f32.mrb[0].mxu0
  %v2011 = vadd.f32 %v56, %v2010
  %v2012 = vpop.f32.mrb[0].mxu0
  %2013 = vmatprep.mubr.f32.mxu0 0.0
  %2014 = vmatmul.mubr.f32.gmra.mrb[0].mxu0 %v1938
  %v2015 = vpop.f32.mrb[0].mxu0
  %v2016 = vadd.f32 %v57, %v2015
  %v2017 = vpop.f32.mrb[0].mxu0
  %2018 = vdwg.mxu0
  %v2019 = vsel %vm291, %v2011, -inf
  %2020 = vmax.xlane.f32.xlu0 %v2019
  %v2021 = vpop.xlane.xlu0 %2020
  %v2022 = vsel %vm291, %v2016, -inf
  %2023 = vmax.xlane.f32.xlu0 %v2022
  %v2024 = vpop.xlane.xlu0 %2023
  %v2025 = vsub.f32 %v2011, %v2021
  %v2026 = vsub.f32 %v2016, %v2024
  %v2027 = vmul.f32 %v2025, 1.442695
  %v2028 = vpow.pop %v2027
  %v2029 = vmul.f32 %v2026, 1.442695
  %v2030 = vpow.pop %v2029
  %v2031 = vsel %vm291, %v2028, 0.0
  %2032 = vadd.xlane.f32.xlu0 %v2031
  %v2033 = vpop.xlane.xlu0 %2032
  %v2034 = vsel %vm291, %v2030, 0.0
  %2035 = vadd.xlane.f32.xlu0 %v2034
  %v2036 = vpop.xlane.xlu0 %2035
  %v2037 = vrcp.pop %v2033
  %v2038 = vrcp.pop %v2036
  %v2039 = vmul.f32 %v2028, %v2037
  %v2040 = vmul.f32 %v2030, %v2038
  %2041 = vrot.lane.b32.xlu0 %v1713, 56
  %v2042 = vpop.permute.xlu0 %2041
  %2043 = vrot.lane.b32.xlu0 %v1718, 56
  %v2044 = vpop.permute.xlu0 %2043
  %v2048 = vsel %vm291, %v2039, 0
  %v2051 = vsel %vm291, %v2040, 0
  %2053 = vmatprep.subr.mxu0 0.0
  %2054 = vmatpush1.msra.mxu0 %v2042
  %2055 = vmatprep.subr.mxu0 0.0
  %2056 = vmatpush1.msra.mxu0 %v2044
  %2057 = vmatprep.subr.mxu0 0.0
  %2058 = vmatpush1.msra.mxu0 0.0
  %2059 = vmatprep.subr.mxu0 0.0
  %2060 = vmatpush1.msra.mxu0 0.0
  %2061 = vmatprep.subr.mxu0 0.0
  %2062 = vmatpush1.msra.mxu0 0.0
  %2063 = vmatprep.subr.mxu0 0.0
  %2064 = vmatpush1.msra.mxu0 0.0
  %2065 = vmatprep.subr.mxu0 0.0
  %2066 = vmatpush1.msra.mxu0 0.0
  %2067 = vmatprep.subr.mxu0 0.0
  %2068 = vmatpush1.msra.mxu0 0.0
  %2069 = vmatprep.subr.mxu0 0.0
  %2070 = vmatpush1.msra.mxu0 0.0
  %2071 = vmatprep.subr.mxu0 0.0
  %2072 = vmatpush1.msra.mxu0 0.0
  %2073 = vmatprep.subr.mxu0 0.0
  %2074 = vmatpush1.msra.mxu0 0.0
  %2075 = vmatprep.subr.mxu0 0.0
  %2076 = vmatpush1.msra.mxu0 0.0
  %2077 = vmatprep.subr.mxu0 0.0
  %2078 = vmatpush1.msra.mxu0 0.0
  %2079 = vmatprep.subr.mxu0 0.0
  %2080 = vmatpush1.msra.mxu0 0.0
  %2081 = vmatprep.subr.mxu0 0.0
  %2082 = vmatpush1.msra.mxu0 0.0
  %2083 = vmatprep.subr.mxu0 0.0
  %2084 = vmatpush1.msra.mxu0 0.0
  %2085 = vmatprep.subr.mxu0 0.0
  %2086 = vmatpush1.msra.mxu0 0.0
  %2087 = vmatprep.subr.mxu0 0.0
  %2088 = vmatpush1.msra.mxu0 0.0
  %2089 = vmatprep.subr.mxu0 0.0
  %2090 = vmatpush1.msra.mxu0 0.0
  %2091 = vmatprep.subr.mxu0 0.0
  %2092 = vmatpush1.msra.mxu0 0.0
  %2093 = vmatprep.subr.mxu0 0.0
  %2094 = vmatpush1.msra.mxu0 0.0
  %2095 = vmatprep.subr.mxu0 0.0
  %2096 = vmatpush1.msra.mxu0 0.0
  %2097 = vmatprep.subr.mxu0 0.0
  %2098 = vmatpush1.msra.mxu0 0.0
  %2099 = vmatprep.subr.mxu0 0.0
  %2100 = vmatpush1.msra.mxu0 0.0
  %2101 = vmatprep.subr.mxu0 0.0
  %2102 = vmatpush1.msra.mxu0 0.0
  %2103 = vmatprep.subr.mxu0 0.0
  %2104 = vmatpush1.msra.mxu0 0.0
  %2105 = vmatprep.subr.mxu0 0.0
  %2106 = vmatpush1.msra.mxu0 0.0
  %2107 = vmatprep.subr.mxu0 0.0
  %2108 = vmatpush1.msra.mxu0 0.0
  %2109 = vmatprep.subr.mxu0 0.0
  %2110 = vmatpush1.msra.mxu0 0.0
  %2111 = vmatprep.subr.mxu0 0.0
  %2112 = vmatpush1.msra.mxu0 0.0
  %2113 = vmatprep.subr.mxu0 0.0
  %2114 = vmatpush1.msra.mxu0 0.0
  %2115 = vmatprep.subr.mxu0 0.0
  %2116 = vmatpush1.msra.mxu0 0.0
  %2117 = vmatprep.mubr.f32.mxu0 0.0
  %2118 = vmatmul.mubr.f32.gmra.mrb[0].mxu0 %v2048
  %v2119 = vpop.f32.mrb[0].mxu0
  %v2120 = vadd.f32 0.0, %v2119
  %v2121 = vpop.f32.mrb[0].mxu0
  %2122 = vmatprep.mubr.f32.mxu0 0.0
  %2123 = vmatmul.mubr.f32.gmra.mrb[0].mxu0 %v2051
  %v2124 = vpop.f32.mrb[0].mxu0
  %v2125 = vadd.f32 0.0, %v2124
  %v2126 = vpop.f32.mrb[0].mxu0
  %2127 = vdwg.mxu0
  %v2129 = vsel %vm205, %v2120, 0
  %v2132 = vsel %vm205, %v2125, 0
  %2134 = vmatprep.subr.mxu0 0.0
  %2135 = vmatpush1.msra.mxu0 %v1723
  %2136 = vmatprep.subr.mxu0 0.0
  %2137 = vmatpush1.msra.mxu0 0.0
  %2138 = vmatprep.subr.mxu0 0.0
  %2139 = vmatpush1.msra.mxu0 0.0
  %2140 = vmatprep.subr.mxu0 0.0
  %2141 = vmatpush1.msra.mxu0 0.0
  %2142 = vmatprep.subr.mxu0 0.0
  %2143 = vmatpush1.msra.mxu0 0.0
  %2144 = vmatprep.subr.mxu0 0.0
  %2145 = vmatpush1.msra.mxu0 0.0
  %2146 = vmatprep.subr.mxu0 0.0
  %2147 = vmatpush1.msra.mxu0 0.0
  %2148 = vmatprep.subr.mxu0 0.0
  %2149 = vmatpush1.msra.mxu0 0.0
  %2150 = vmatprep.subr.mxu0 0.0
  %2151 = vmatpush1.msra.mxu0 0.0
  %2152 = vmatprep.subr.mxu0 0.0
  %2153 = vmatpush1.msra.mxu0 0.0
  %2154 = vmatprep.subr.mxu0 0.0
  %2155 = vmatpush1.msra.mxu0 0.0
  %2156 = vmatprep.subr.mxu0 0.0
  %2157 = vmatpush1.msra.mxu0 0.0
  %2158 = vmatprep.subr.mxu0 0.0
  %2159 = vmatpush1.msra.mxu0 0.0
  %2160 = vmatprep.subr.mxu0 0.0
  %2161 = vmatpush1.msra.mxu0 0.0
  %2162 = vmatprep.subr.mxu0 0.0
  %2163 = vmatpush1.msra.mxu0 0.0
  %2164 = vmatprep.subr.mxu0 0.0
  %2165 = vmatpush1.msra.mxu0 0.0
  %2166 = vmatprep.subr.mxu0 0.0
  %2167 = vmatpush1.msra.mxu0 0.0
  %2168 = vmatprep.subr.mxu0 0.0
  %2169 = vmatpush1.msra.mxu0 0.0
  %2170 = vmatprep.subr.mxu0 0.0
  %2171 = vmatpush1.msra.mxu0 0.0
  %2172 = vmatprep.subr.mxu0 0.0
  %2173 = vmatpush1.msra.mxu0 0.0
  %2174 = vmatprep.subr.mxu0 0.0
  %2175 = vmatpush1.msra.mxu0 0.0
  %2176 = vmatprep.subr.mxu0 0.0
  %2177 = vmatpush1.msra.mxu0 0.0
  %2178 = vmatprep.subr.mxu0 0.0
  %2179 = vmatpush1.msra.mxu0 0.0
  %2180 = vmatprep.subr.mxu0 0.0
  %2181 = vmatpush1.msra.mxu0 0.0
  %2182 = vmatprep.subr.mxu0 0.0
  %2183 = vmatpush1.msra.mxu0 0.0
  %2184 = vmatprep.subr.mxu0 0.0
  %2185 = vmatpush1.msra.mxu0 0.0
  %2186 = vmatprep.subr.mxu0 0.0
  %2187 = vmatpush1.msra.mxu0 0.0
  %2188 = vmatprep.subr.mxu0 0.0
  %2189 = vmatpush1.msra.mxu0 0.0
  %2190 = vmatprep.subr.mxu0 0.0
  %2191 = vmatpush1.msra.mxu0 0.0
  %2192 = vmatprep.subr.mxu0 0.0
  %2193 = vmatpush1.msra.mxu0 0.0
  %2194 = vmatprep.subr.mxu0 0.0
  %2195 = vmatpush1.msra.mxu0 0.0
  %2196 = vmatprep.subr.mxu0 0.0
  %2197 = vmatpush1.msra.mxu0 0.0
  %2198 = vmatprep.mubr.f32.mxu0 0.0
  %2199 = vmatmul.mubr.f32.gmra.mrb[0].mxu0 %v2129
  %v2200 = vpop.f32.mrb[0].mxu0
  %v2201 = vadd.f32 0.0, %v2200
  %v2202 = vpop.f32.mrb[0].mxu0
  %2203 = vmatprep.mubr.f32.mxu0 0.0
  %2204 = vmatmul.mubr.f32.gmra.mrb[0].mxu0 %v2132
  %v2205 = vpop.f32.mrb[0].mxu0
  %v2206 = vadd.f32 0.0, %v2205
  %v2207 = vpop.f32.mrb[0].mxu0
  %2208 = vdwg.mxu0
  %v2210 = vsel %vm205, %v1920, 0
  %v2213 = vsel %vm205, %v1925, 0
  %2215 = vmatprep.subr.mxu0 0.0
  %2216 = vmatpush1.msra.mxu0 %v1722
  %2217 = vmatprep.subr.mxu0 0.0
  %2218 = vmatpush1.msra.mxu0 0.0
  %2219 = vmatprep.subr.mxu0 0.0
  %2220 = vmatpush1.msra.mxu0 0.0
  %2221 = vmatprep.subr.mxu0 0.0
  %2222 = vmatpush1.msra.mxu0 0.0
  %2223 = vmatprep.subr.mxu0 0.0
  %2224 = vmatpush1.msra.mxu0 0.0
  %2225 = vmatprep.subr.mxu0 0.0
  %2226 = vmatpush1.msra.mxu0 0.0
  %2227 = vmatprep.subr.mxu0 0.0
  %2228 = vmatpush1.msra.mxu0 0.0
  %2229 = vmatprep.subr.mxu0 0.0
  %2230 = vmatpush1.msra.mxu0 0.0
  %2231 = vmatprep.subr.mxu0 0.0
  %2232 = vmatpush1.msra.mxu0 0.0
  %2233 = vmatprep.subr.mxu0 0.0
  %2234 = vmatpush1.msra.mxu0 0.0
  %2235 = vmatprep.subr.mxu0 0.0
  %2236 = vmatpush1.msra.mxu0 0.0
  %2237 = vmatprep.subr.mxu0 0.0
  %2238 = vmatpush1.msra.mxu0 0.0
  %2239 = vmatprep.subr.mxu0 0.0
  %2240 = vmatpush1.msra.mxu0 0.0
  %2241 = vmatprep.subr.mxu0 0.0
  %2242 = vmatpush1.msra.mxu0 0.0
  %2243 = vmatprep.subr.mxu0 0.0
  %2244 = vmatpush1.msra.mxu0 0.0
  %2245 = vmatprep.subr.mxu0 0.0
  %2246 = vmatpush1.msra.mxu0 0.0
  %2247 = vmatprep.subr.mxu0 0.0
  %2248 = vmatpush1.msra.mxu0 0.0
  %2249 = vmatprep.subr.mxu0 0.0
  %2250 = vmatpush1.msra.mxu0 0.0
  %2251 = vmatprep.subr.mxu0 0.0
  %2252 = vmatpush1.msra.mxu0 0.0
  %2253 = vmatprep.subr.mxu0 0.0
  %2254 = vmatpush1.msra.mxu0 0.0
  %2255 = vmatprep.subr.mxu0 0.0
  %2256 = vmatpush1.msra.mxu0 0.0
  %2257 = vmatprep.subr.mxu0 0.0
  %2258 = vmatpush1.msra.mxu0 0.0
  %2259 = vmatprep.subr.mxu0 0.0
  %2260 = vmatpush1.msra.mxu0 0.0
  %2261 = vmatprep.subr.mxu0 0.0
  %2262 = vmatpush1.msra.mxu0 0.0
  %2263 = vmatprep.subr.mxu0 0.0
  %2264 = vmatpush1.msra.mxu0 0.0
  %2265 = vmatprep.subr.mxu0 0.0
  %2266 = vmatpush1.msra.mxu0 0.0
  %2267 = vmatprep.subr.mxu0 0.0
  %2268 = vmatpush1.msra.mxu0 0.0
  %2269 = vmatprep.subr.mxu0 0.0
  %2270 = vmatpush1.msra.mxu0 0.0
  %2271 = vmatprep.subr.mxu0 0.0
  %2272 = vmatpush1.msra.mxu0 0.0
  %2273 = vmatprep.subr.mxu0 0.0
  %2274 = vmatpush1.msra.mxu0 0.0
  %2275 = vmatprep.subr.mxu0 0.0
  %2276 = vmatpush1.msra.mxu0 0.0
  %2277 = vmatprep.subr.mxu0 0.0
  %2278 = vmatpush1.msra.mxu0 0.0
  %2279 = vmatprep.mubr.f32.mxu0 0.0
  %2280 = vmatmul.mubr.f32.gmra.mrb[0].mxu0 %v2210
  %v2281 = vpop.f32.mrb[0].mxu0
  %v2282 = vadd.f32 %v2201, %v2281
  %v2283 = vpop.f32.mrb[0].mxu0
  %2284 = vmatprep.mubr.f32.mxu0 0.0
  %2285 = vmatmul.mubr.f32.gmra.mrb[0].mxu0 %v2213
  %v2286 = vpop.f32.mrb[0].mxu0
  %v2287 = vadd.f32 %v2206, %v2286
  %v2288 = vpop.f32.mrb[0].mxu0
  %2289 = vdwg.mxu0
  %2290 = vrot.lane.b32.xlu0 %v1726, 112
  %v2291 = vpop.permute.xlu0 %2290
  %2292 = vrot.lane.b32.xlu0 %v1727, 112
  %v2293 = vpop.permute.xlu0 %2292
  %2294 = vrot.lane.b32.xlu0 %v1713, 80
  %v2295 = vpop.permute.xlu0 %2294
  %2296 = vrot.lane.b32.xlu0 %v1718, 80
  %v2297 = vpop.permute.xlu0 %2296
  %v2298 = vsel %vm205, %v2291, 0
  %v2300 = vsel %vm205, %v2293, 0
  %v2302 = vsel %vm205, %v2295, 0
  %v2304 = vsel %vm205, %v2297, 0
  %2306 = vmatprep.subr.mxu0 0.0
  %2307 = vmatpush1.xpose.msra.mxu0 %v2302
  %2308 = vmatprep.subr.mxu0 0.0
  %2309 = vmatpush1.xpose.msra.mxu0 %v2304
  %2310 = vmatprep.subr.mxu0 0.0
  %2311 = vmatpush1.xpose.msra.mxu0 0.0
  %2312 = vmatprep.subr.mxu0 0.0
  %2313 = vmatpush1.xpose.msra.mxu0 0.0
  %2314 = vmatprep.subr.mxu0 0.0
  %2315 = vmatpush1.xpose.msra.mxu0 0.0
  %2316 = vmatprep.subr.mxu0 0.0
  %2317 = vmatpush1.xpose.msra.mxu0 0.0
  %2318 = vmatprep.subr.mxu0 0.0
  %2319 = vmatpush1.xpose.msra.mxu0 0.0
  %2320 = vmatprep.subr.mxu0 0.0
  %2321 = vmatpush1.xpose.msra.mxu0 0.0
  %2322 = vmatprep.subr.mxu0 0.0
  %2323 = vmatpush1.xpose.msra.mxu0 0.0
  %2324 = vmatprep.subr.mxu0 0.0
  %2325 = vmatpush1.xpose.msra.mxu0 0.0
  %2326 = vmatprep.subr.mxu0 0.0
  %2327 = vmatpush1.xpose.msra.mxu0 0.0
  %2328 = vmatprep.subr.mxu0 0.0
  %2329 = vmatpush1.xpose.msra.mxu0 0.0
  %2330 = vmatprep.subr.mxu0 0.0
  %2331 = vmatpush1.xpose.msra.mxu0 0.0
  %2332 = vmatprep.subr.mxu0 0.0
  %2333 = vmatpush1.xpose.msra.mxu0 0.0
  %2334 = vmatprep.subr.mxu0 0.0
  %2335 = vmatpush1.xpose.msra.mxu0 0.0
  %2336 = vmatprep.subr.mxu0 0.0
  %2337 = vmatpush1.xpose.msra.mxu0 0.0
  %2338 = vmatprep.subr.mxu0 0.0
  %2339 = vmatpush1.xpose.msra.mxu0 0.0
  %2340 = vmatprep.subr.mxu0 0.0
  %2341 = vmatpush1.xpose.msra.mxu0 0.0
  %2342 = vmatprep.subr.mxu0 0.0
  %2343 = vmatpush1.xpose.msra.mxu0 0.0
  %2344 = vmatprep.subr.mxu0 0.0
  %2345 = vmatpush1.xpose.msra.mxu0 0.0
  %2346 = vmatprep.subr.mxu0 0.0
  %2347 = vmatpush1.xpose.msra.mxu0 0.0
  %2348 = vmatprep.subr.mxu0 0.0
  %2349 = vmatpush1.xpose.msra.mxu0 0.0
  %2350 = vmatprep.subr.mxu0 0.0
  %2351 = vmatpush1.xpose.msra.mxu0 0.0
  %2352 = vmatprep.subr.mxu0 0.0
  %2353 = vmatpush1.xpose.msra.mxu0 0.0
  %2354 = vmatprep.subr.mxu0 0.0
  %2355 = vmatpush1.xpose.msra.mxu0 0.0
  %2356 = vmatprep.subr.mxu0 0.0
  %2357 = vmatpush1.xpose.msra.mxu0 0.0
  %2358 = vmatprep.subr.mxu0 0.0
  %2359 = vmatpush1.xpose.msra.mxu0 0.0
  %2360 = vmatprep.subr.mxu0 0.0
  %2361 = vmatpush1.xpose.msra.mxu0 0.0
  %2362 = vmatprep.subr.mxu0 0.0
  %2363 = vmatpush1.xpose.msra.mxu0 0.0
  %2364 = vmatprep.subr.mxu0 0.0
  %2365 = vmatpush1.xpose.msra.mxu0 0.0
  %2366 = vmatprep.subr.mxu0 0.0
  %2367 = vmatpush1.xpose.msra.mxu0 0.0
  %2368 = vmatprep.subr.mxu0 0.0
  %2369 = vmatpush1.xpose.msra.mxu0 0.0
  %2370 = vmatprep.mubr.f32.mxu0 0.0
  %2371 = vmatmul.mubr.f32.gmra.mrb[0].mxu0 %v2298
  %v2372 = vpop.f32.mrb[0].mxu0
  %v2373 = vadd.f32 %v56, %v2372
  %v2374 = vpop.f32.mrb[0].mxu0
  %2375 = vmatprep.mubr.f32.mxu0 0.0
  %2376 = vmatmul.mubr.f32.gmra.mrb[0].mxu0 %v2300
  %v2377 = vpop.f32.mrb[0].mxu0
  %v2378 = vadd.f32 %v57, %v2377
  %v2379 = vpop.f32.mrb[0].mxu0
  %2380 = vdwg.mxu0
  %v2381 = vsel %vm291, %v2373, -inf
  %2382 = vmax.xlane.f32.xlu0 %v2381
  %v2383 = vpop.xlane.xlu0 %2382
  %v2384 = vsel %vm291, %v2378, -inf
  %2385 = vmax.xlane.f32.xlu0 %v2384
  %v2386 = vpop.xlane.xlu0 %2385
  %v2387 = vsub.f32 %v2373, %v2383
  %v2388 = vsub.f32 %v2378, %v2386
  %v2389 = vmul.f32 %v2387, 1.442695
  %v2390 = vpow.pop %v2389
  %v2391 = vmul.f32 %v2388, 1.442695
  %v2392 = vpow.pop %v2391
  %v2393 = vsel %vm291, %v2390, 0.0
  %2394 = vadd.xlane.f32.xlu0 %v2393
  %v2395 = vpop.xlane.xlu0 %2394
  %v2396 = vsel %vm291, %v2392, 0.0
  %2397 = vadd.xlane.f32.xlu0 %v2396
  %v2398 = vpop.xlane.xlu0 %2397
  %v2399 = vrcp.pop %v2395
  %v2400 = vrcp.pop %v2398
  %v2401 = vmul.f32 %v2390, %v2399
  %v2402 = vmul.f32 %v2392, %v2400
  %2403 = vrot.lane.b32.xlu0 %v1713, 48
  %v2404 = vpop.permute.xlu0 %2403
  %2405 = vrot.lane.b32.xlu0 %v1718, 48
  %v2406 = vpop.permute.xlu0 %2405
  %v2410 = vsel %vm291, %v2401, 0
  %v2413 = vsel %vm291, %v2402, 0
  %2415 = vmatprep.subr.mxu0 0.0
  %2416 = vmatpush1.msra.mxu0 %v2404
  %2417 = vmatprep.subr.mxu0 0.0
  %2418 = vmatpush1.msra.mxu0 %v2406
  %2419 = vmatprep.subr.mxu0 0.0
  %2420 = vmatpush1.msra.mxu0 0.0
  %2421 = vmatprep.subr.mxu0 0.0
  %2422 = vmatpush1.msra.mxu0 0.0
  %2423 = vmatprep.subr.mxu0 0.0
  %2424 = vmatpush1.msra.mxu0 0.0
  %2425 = vmatprep.subr.mxu0 0.0
  %2426 = vmatpush1.msra.mxu0 0.0
  %2427 = vmatprep.subr.mxu0 0.0
  %2428 = vmatpush1.msra.mxu0 0.0
  %2429 = vmatprep.subr.mxu0 0.0
  %2430 = vmatpush1.msra.mxu0 0.0
  %2431 = vmatprep.subr.mxu0 0.0
  %2432 = vmatpush1.msra.mxu0 0.0
  %2433 = vmatprep.subr.mxu0 0.0
  %2434 = vmatpush1.msra.mxu0 0.0
  %2435 = vmatprep.subr.mxu0 0.0
  %2436 = vmatpush1.msra.mxu0 0.0
  %2437 = vmatprep.subr.mxu0 0.0
  %2438 = vmatpush1.msra.mxu0 0.0
  %2439 = vmatprep.subr.mxu0 0.0
  %2440 = vmatpush1.msra.mxu0 0.0
  %2441 = vmatprep.subr.mxu0 0.0
  %2442 = vmatpush1.msra.mxu0 0.0
  %2443 = vmatprep.subr.mxu0 0.0
  %2444 = vmatpush1.msra.mxu0 0.0
  %2445 = vmatprep.subr.mxu0 0.0
  %2446 = vmatpush1.msra.mxu0 0.0
  %2447 = vmatprep.subr.mxu0 0.0
  %2448 = vmatpush1.msra.mxu0 0.0
  %2449 = vmatprep.subr.mxu0 0.0
  %2450 = vmatpush1.msra.mxu0 0.0
  %2451 = vmatprep.subr.mxu0 0.0
  %2452 = vmatpush1.msra.mxu0 0.0
  %2453 = vmatprep.subr.mxu0 0.0
  %2454 = vmatpush1.msra.mxu0 0.0
  %2455 = vmatprep.subr.mxu0 0.0
  %2456 = vmatpush1.msra.mxu0 0.0
  %2457 = vmatprep.subr.mxu0 0.0
  %2458 = vmatpush1.msra.mxu0 0.0
  %2459 = vmatprep.subr.mxu0 0.0
  %2460 = vmatpush1.msra.mxu0 0.0
  %2461 = vmatprep.subr.mxu0 0.0
  %2462 = vmatpush1.msra.mxu0 0.0
  %2463 = vmatprep.subr.mxu0 0.0
  %2464 = vmatpush1.msra.mxu0 0.0
  %2465 = vmatprep.subr.mxu0 0.0
  %2466 = vmatpush1.msra.mxu0 0.0
  %2467 = vmatprep.subr.mxu0 0.0
  %2468 = vmatpush1.msra.mxu0 0.0
  %2469 = vmatprep.subr.mxu0 0.0
  %2470 = vmatpush1.msra.mxu0 0.0
  %2471 = vmatprep.subr.mxu0 0.0
  %2472 = vmatpush1.msra.mxu0 0.0
  %2473 = vmatprep.subr.mxu0 0.0
  %2474 = vmatpush1.msra.mxu0 0.0
  %2475 = vmatprep.subr.mxu0 0.0
  %2476 = vmatpush1.msra.mxu0 0.0
  %2477 = vmatprep.subr.mxu0 0.0
  %2478 = vmatpush1.msra.mxu0 0.0
  %2479 = vmatprep.mubr.f32.mxu0 0.0
  %2480 = vmatmul.mubr.f32.gmra.mrb[0].mxu0 %v2410
  %v2481 = vpop.f32.mrb[0].mxu0
  %v2482 = vadd.f32 0.0, %v2481
  %v2483 = vpop.f32.mrb[0].mxu0
  %2484 = vmatprep.mubr.f32.mxu0 0.0
  %2485 = vmatmul.mubr.f32.gmra.mrb[0].mxu0 %v2413
  %v2486 = vpop.f32.mrb[0].mxu0
  %v2487 = vadd.f32 0.0, %v2486
  %v2488 = vpop.f32.mrb[0].mxu0
  %2489 = vdwg.mxu0
  %v2491 = vsel %vm205, %v2482, 0
  %v2494 = vsel %vm205, %v2487, 0
  %2496 = vmatprep.subr.mxu0 0.0
  %2497 = vmatpush1.msra.mxu0 %v1724
  %2498 = vmatprep.subr.mxu0 0.0
  %2499 = vmatpush1.msra.mxu0 0.0
  %2500 = vmatprep.subr.mxu0 0.0
  %2501 = vmatpush1.msra.mxu0 0.0
  %2502 = vmatprep.subr.mxu0 0.0
  %2503 = vmatpush1.msra.mxu0 0.0
  %2504 = vmatprep.subr.mxu0 0.0
  %2505 = vmatpush1.msra.mxu0 0.0
  %2506 = vmatprep.subr.mxu0 0.0
  %2507 = vmatpush1.msra.mxu0 0.0
  %2508 = vmatprep.subr.mxu0 0.0
  %2509 = vmatpush1.msra.mxu0 0.0
  %2510 = vmatprep.subr.mxu0 0.0
  %2511 = vmatpush1.msra.mxu0 0.0
  %2512 = vmatprep.subr.mxu0 0.0
  %2513 = vmatpush1.msra.mxu0 0.0
  %2514 = vmatprep.subr.mxu0 0.0
  %2515 = vmatpush1.msra.mxu0 0.0
  %2516 = vmatprep.subr.mxu0 0.0
  %2517 = vmatpush1.msra.mxu0 0.0
  %2518 = vmatprep.subr.mxu0 0.0
  %2519 = vmatpush1.msra.mxu0 0.0
  %2520 = vmatprep.subr.mxu0 0.0
  %2521 = vmatpush1.msra.mxu0 0.0
  %2522 = vmatprep.subr.mxu0 0.0
  %2523 = vmatpush1.msra.mxu0 0.0
  %2524 = vmatprep.subr.mxu0 0.0
  %2525 = vmatpush1.msra.mxu0 0.0
  %2526 = vmatprep.subr.mxu0 0.0
  %2527 = vmatpush1.msra.mxu0 0.0
  %2528 = vmatprep.subr.mxu0 0.0
  %2529 = vmatpush1.msra.mxu0 0.0
  %2530 = vmatprep.subr.mxu0 0.0
  %2531 = vmatpush1.msra.mxu0 0.0
  %2532 = vmatprep.subr.mxu0 0.0
  %2533 = vmatpush1.msra.mxu0 0.0
  %2534 = vmatprep.subr.mxu0 0.0
  %2535 = vmatpush1.msra.mxu0 0.0
  %2536 = vmatprep.subr.mxu0 0.0
  %2537 = vmatpush1.msra.mxu0 0.0
  %2538 = vmatprep.subr.mxu0 0.0
  %2539 = vmatpush1.msra.mxu0 0.0
  %2540 = vmatprep.subr.mxu0 0.0
  %2541 = vmatpush1.msra.mxu0 0.0
  %2542 = vmatprep.subr.mxu0 0.0
  %2543 = vmatpush1.msra.mxu0 0.0
  %2544 = vmatprep.subr.mxu0 0.0
  %2545 = vmatpush1.msra.mxu0 0.0
  %2546 = vmatprep.subr.mxu0 0.0
  %2547 = vmatpush1.msra.mxu0 0.0
  %2548 = vmatprep.subr.mxu0 0.0
  %2549 = vmatpush1.msra.mxu0 0.0
  %2550 = vmatprep.subr.mxu0 0.0
  %2551 = vmatpush1.msra.mxu0 0.0
  %2552 = vmatprep.subr.mxu0 0.0
  %2553 = vmatpush1.msra.mxu0 0.0
  %2554 = vmatprep.subr.mxu0 0.0
  %2555 = vmatpush1.msra.mxu0 0.0
  %2556 = vmatprep.subr.mxu0 0.0
  %2557 = vmatpush1.msra.mxu0 0.0
  %2558 = vmatprep.subr.mxu0 0.0
  %2559 = vmatpush1.msra.mxu0 0.0
  %2560 = vmatprep.mubr.f32.mxu0 0.0
  %2561 = vmatmul.mubr.f32.gmra.mrb[0].mxu0 %v2491
  %v2562 = vpop.f32.mrb[0].mxu0
  %v2563 = vadd.f32 0.0, %v2562
  %v2564 = vpop.f32.mrb[0].mxu0
  %2565 = vmatprep.mubr.f32.mxu0 0.0
  %2566 = vmatmul.mubr.f32.gmra.mrb[0].mxu0 %v2494
  %v2567 = vpop.f32.mrb[0].mxu0
  %v2568 = vadd.f32 0.0, %v2567
  %v2569 = vpop.f32.mrb[0].mxu0
  %2570 = vdwg.mxu0
  %v2571 = vadd.f32 %v2282, %v2563
  %v2572 = vadd.f32 %v2287, %v2568
  %2573 = vrot.lane.b32.xlu0 %v1726, 104
  %v2574 = vpop.permute.xlu0 %2573
  %2575 = vrot.lane.b32.xlu0 %v1727, 104
  %v2576 = vpop.permute.xlu0 %2575
  %2577 = vrot.lane.b32.xlu0 %v1713, 72
  %v2578 = vpop.permute.xlu0 %2577
  %2579 = vrot.lane.b32.xlu0 %v1718, 72
  %v2580 = vpop.permute.xlu0 %2579
  %v2581 = vsel %vm205, %v2574, 0
  %v2583 = vsel %vm205, %v2576, 0
  %v2585 = vsel %vm205, %v2578, 0
  %v2587 = vsel %vm205, %v2580, 0
  %2589 = vmatprep.subr.mxu0 0.0
  %2590 = vmatpush1.xpose.msra.mxu0 %v2585
  %2591 = vmatprep.subr.mxu0 0.0
  %2592 = vmatpush1.xpose.msra.mxu0 %v2587
  %2593 = vmatprep.subr.mxu0 0.0
  %2594 = vmatpush1.xpose.msra.mxu0 0.0
  %2595 = vmatprep.subr.mxu0 0.0
  %2596 = vmatpush1.xpose.msra.mxu0 0.0
  %2597 = vmatprep.subr.mxu0 0.0
  %2598 = vmatpush1.xpose.msra.mxu0 0.0
  %2599 = vmatprep.subr.mxu0 0.0
  %2600 = vmatpush1.xpose.msra.mxu0 0.0
  %2601 = vmatprep.subr.mxu0 0.0
  %2602 = vmatpush1.xpose.msra.mxu0 0.0
  %2603 = vmatprep.subr.mxu0 0.0
  %2604 = vmatpush1.xpose.msra.mxu0 0.0
  %2605 = vmatprep.subr.mxu0 0.0
  %2606 = vmatpush1.xpose.msra.mxu0 0.0
  %2607 = vmatprep.subr.mxu0 0.0
  %2608 = vmatpush1.xpose.msra.mxu0 0.0
  %2609 = vmatprep.subr.mxu0 0.0
  %2610 = vmatpush1.xpose.msra.mxu0 0.0
  %2611 = vmatprep.subr.mxu0 0.0
  %2612 = vmatpush1.xpose.msra.mxu0 0.0
  %2613 = vmatprep.subr.mxu0 0.0
  %2614 = vmatpush1.xpose.msra.mxu0 0.0
  %2615 = vmatprep.subr.mxu0 0.0
  %2616 = vmatpush1.xpose.msra.mxu0 0.0
  %2617 = vmatprep.subr.mxu0 0.0
  %2618 = vmatpush1.xpose.msra.mxu0 0.0
  %2619 = vmatprep.subr.mxu0 0.0
  %2620 = vmatpush1.xpose.msra.mxu0 0.0
  %2621 = vmatprep.subr.mxu0 0.0
  %2622 = vmatpush1.xpose.msra.mxu0 0.0
  %2623 = vmatprep.subr.mxu0 0.0
  %2624 = vmatpush1.xpose.msra.mxu0 0.0
  %2625 = vmatprep.subr.mxu0 0.0
  %2626 = vmatpush1.xpose.msra.mxu0 0.0
  %2627 = vmatprep.subr.mxu0 0.0
  %2628 = vmatpush1.xpose.msra.mxu0 0.0
  %2629 = vmatprep.subr.mxu0 0.0
  %2630 = vmatpush1.xpose.msra.mxu0 0.0
  %2631 = vmatprep.subr.mxu0 0.0
  %2632 = vmatpush1.xpose.msra.mxu0 0.0
  %2633 = vmatprep.subr.mxu0 0.0
  %2634 = vmatpush1.xpose.msra.mxu0 0.0
  %2635 = vmatprep.subr.mxu0 0.0
  %2636 = vmatpush1.xpose.msra.mxu0 0.0
  %2637 = vmatprep.subr.mxu0 0.0
  %2638 = vmatpush1.xpose.msra.mxu0 0.0
  %2639 = vmatprep.subr.mxu0 0.0
  %2640 = vmatpush1.xpose.msra.mxu0 0.0
  %2641 = vmatprep.subr.mxu0 0.0
  %2642 = vmatpush1.xpose.msra.mxu0 0.0
  %2643 = vmatprep.subr.mxu0 0.0
  %2644 = vmatpush1.xpose.msra.mxu0 0.0
  %2645 = vmatprep.subr.mxu0 0.0
  %2646 = vmatpush1.xpose.msra.mxu0 0.0
  %2647 = vmatprep.subr.mxu0 0.0
  %2648 = vmatpush1.xpose.msra.mxu0 0.0
  %2649 = vmatprep.subr.mxu0 0.0
  %2650 = vmatpush1.xpose.msra.mxu0 0.0
  %2651 = vmatprep.subr.mxu0 0.0
  %2652 = vmatpush1.xpose.msra.mxu0 0.0
  %2653 = vmatprep.mubr.f32.mxu0 0.0
  %2654 = vmatmul.mubr.f32.gmra.mrb[0].mxu0 %v2581
  %v2655 = vpop.f32.mrb[0].mxu0
  %v2656 = vadd.f32 %v56, %v2655
  %v2657 = vpop.f32.mrb[0].mxu0
  %2658 = vmatprep.mubr.f32.mxu0 0.0
  %2659 = vmatmul.mubr.f32.gmra.mrb[0].mxu0 %v2583
  %v2660 = vpop.f32.mrb[0].mxu0
  %v2661 = vadd.f32 %v57, %v2660
  %v2662 = vpop.f32.mrb[0].mxu0
  %2663 = vdwg.mxu0
  %v2664 = vsel %vm291, %v2656, -inf
  %2665 = vmax.xlane.f32.xlu0 %v2664
  %v2666 = vpop.xlane.xlu0 %2665
  %v2667 = vsel %vm291, %v2661, -inf
  %2668 = vmax.xlane.f32.xlu0 %v2667
  %v2669 = vpop.xlane.xlu0 %2668
  %v2670 = vsub.f32 %v2656, %v2666
  %v2671 = vsub.f32 %v2661, %v2669
  %v2672 = vmul.f32 %v2670, 1.442695
  %v2673 = vpow.pop %v2672
  %v2674 = vmul.f32 %v2671, 1.442695
  %v2675 = vpow.pop %v2674
  %v2676 = vsel %vm291, %v2673, 0.0
  %2677 = vadd.xlane.f32.xlu0 %v2676
  %v2678 = vpop.xlane.xlu0 %2677
  %v2679 = vsel %vm291, %v2675, 0.0
  %2680 = vadd.xlane.f32.xlu0 %v2679
  %v2681 = vpop.xlane.xlu0 %2680
  %v2682 = vrcp.pop %v2678
  %v2683 = vrcp.pop %v2681
  %v2684 = vmul.f32 %v2673, %v2682
  %v2685 = vmul.f32 %v2675, %v2683
  %2686 = vrot.lane.b32.xlu0 %v1713, 40
  %v2687 = vpop.permute.xlu0 %2686
  %2688 = vrot.lane.b32.xlu0 %v1718, 40
  %v2689 = vpop.permute.xlu0 %2688
  %v2693 = vsel %vm291, %v2684, 0
  %v2696 = vsel %vm291, %v2685, 0
  %2698 = vmatprep.subr.mxu0 0.0
  %2699 = vmatpush1.msra.mxu0 %v2687
  %2700 = vmatprep.subr.mxu0 0.0
  %2701 = vmatpush1.msra.mxu0 %v2689
  %2702 = vmatprep.subr.mxu0 0.0
  %2703 = vmatpush1.msra.mxu0 0.0
  %2704 = vmatprep.subr.mxu0 0.0
  %2705 = vmatpush1.msra.mxu0 0.0
  %2706 = vmatprep.subr.mxu0 0.0
  %2707 = vmatpush1.msra.mxu0 0.0
  %2708 = vmatprep.subr.mxu0 0.0
  %2709 = vmatpush1.msra.mxu0 0.0
  %2710 = vmatprep.subr.mxu0 0.0
  %2711 = vmatpush1.msra.mxu0 0.0
  %2712 = vmatprep.subr.mxu0 0.0
  %2713 = vmatpush1.msra.mxu0 0.0
  %2714 = vmatprep.subr.mxu0 0.0
  %2715 = vmatpush1.msra.mxu0 0.0
  %2716 = vmatprep.subr.mxu0 0.0
  %2717 = vmatpush1.msra.mxu0 0.0
  %2718 = vmatprep.subr.mxu0 0.0
  %2719 = vmatpush1.msra.mxu0 0.0
  %2720 = vmatprep.subr.mxu0 0.0
  %2721 = vmatpush1.msra.mxu0 0.0
  %2722 = vmatprep.subr.mxu0 0.0
  %2723 = vmatpush1.msra.mxu0 0.0
  %2724 = vmatprep.subr.mxu0 0.0
  %2725 = vmatpush1.msra.mxu0 0.0
  %2726 = vmatprep.subr.mxu0 0.0
  %2727 = vmatpush1.msra.mxu0 0.0
  %2728 = vmatprep.subr.mxu0 0.0
  %2729 = vmatpush1.msra.mxu0 0.0
  %2730 = vmatprep.subr.mxu0 0.0
  %2731 = vmatpush1.msra.mxu0 0.0
  %2732 = vmatprep.subr.mxu0 0.0
  %2733 = vmatpush1.msra.mxu0 0.0
  %2734 = vmatprep.subr.mxu0 0.0
  %2735 = vmatpush1.msra.mxu0 0.0
  %2736 = vmatprep.subr.mxu0 0.0
  %2737 = vmatpush1.msra.mxu0 0.0
  %2738 = vmatprep.subr.mxu0 0.0
  %2739 = vmatpush1.msra.mxu0 0.0
  %2740 = vmatprep.subr.mxu0 0.0
  %2741 = vmatpush1.msra.mxu0 0.0
  %2742 = vmatprep.subr.mxu0 0.0
  %2743 = vmatpush1.msra.mxu0 0.0
  %2744 = vmatprep.subr.mxu0 0.0
  %2745 = vmatpush1.msra.mxu0 0.0
  %2746 = vmatprep.subr.mxu0 0.0
  %2747 = vmatpush1.msra.mxu0 0.0
  %2748 = vmatprep.subr.mxu0 0.0
  %2749 = vmatpush1.msra.mxu0 0.0
  %2750 = vmatprep.subr.mxu0 0.0
  %2751 = vmatpush1.msra.mxu0 0.0
  %2752 = vmatprep.subr.mxu0 0.0
  %2753 = vmatpush1.msra.mxu0 0.0
  %2754 = vmatprep.subr.mxu0 0.0
  %2755 = vmatpush1.msra.mxu0 0.0
  %2756 = vmatprep.subr.mxu0 0.0
  %2757 = vmatpush1.msra.mxu0 0.0
  %2758 = vmatprep.subr.mxu0 0.0
  %2759 = vmatpush1.msra.mxu0 0.0
  %2760 = vmatprep.subr.mxu0 0.0
  %2761 = vmatpush1.msra.mxu0 0.0
  %2762 = vmatprep.mubr.f32.mxu0 0.0
  %2763 = vmatmul.mubr.f32.gmra.mrb[0].mxu0 %v2693
  %v2764 = vpop.f32.mrb[0].mxu0
  %v2765 = vadd.f32 0.0, %v2764
  %v2766 = vpop.f32.mrb[0].mxu0
  %2767 = vmatprep.mubr.f32.mxu0 0.0
  %2768 = vmatmul.mubr.f32.gmra.mrb[0].mxu0 %v2696
  %v2769 = vpop.f32.mrb[0].mxu0
  %v2770 = vadd.f32 0.0, %v2769
  %v2771 = vpop.f32.mrb[0].mxu0
  %2772 = vdwg.mxu0
  %v2774 = vsel %vm205, %v2765, 0
  %v2777 = vsel %vm205, %v2770, 0
  %2779 = vmatprep.subr.mxu0 0.0
  %2780 = vmatpush1.msra.mxu0 %v1725
  %2781 = vmatprep.subr.mxu0 0.0
  %2782 = vmatpush1.msra.mxu0 0.0
  %2783 = vmatprep.subr.mxu0 0.0
  %2784 = vmatpush1.msra.mxu0 0.0
  %2785 = vmatprep.subr.mxu0 0.0
  %2786 = vmatpush1.msra.mxu0 0.0
  %2787 = vmatprep.subr.mxu0 0.0
  %2788 = vmatpush1.msra.mxu0 0.0
  %2789 = vmatprep.subr.mxu0 0.0
  %2790 = vmatpush1.msra.mxu0 0.0
  %2791 = vmatprep.subr.mxu0 0.0
  %2792 = vmatpush1.msra.mxu0 0.0
  %2793 = vmatprep.subr.mxu0 0.0
  %2794 = vmatpush1.msra.mxu0 0.0
  %2795 = vmatprep.subr.mxu0 0.0
  %2796 = vmatpush1.msra.mxu0 0.0
  %2797 = vmatprep.subr.mxu0 0.0
  %2798 = vmatpush1.msra.mxu0 0.0
  %2799 = vmatprep.subr.mxu0 0.0
  %2800 = vmatpush1.msra.mxu0 0.0
  %2801 = vmatprep.subr.mxu0 0.0
  %2802 = vmatpush1.msra.mxu0 0.0
  %2803 = vmatprep.subr.mxu0 0.0
  %2804 = vmatpush1.msra.mxu0 0.0
  %2805 = vmatprep.subr.mxu0 0.0
  %2806 = vmatpush1.msra.mxu0 0.0
  %2807 = vmatprep.subr.mxu0 0.0
  %2808 = vmatpush1.msra.mxu0 0.0
  %2809 = vmatprep.subr.mxu0 0.0
  %2810 = vmatpush1.msra.mxu0 0.0
  %2811 = vmatprep.subr.mxu0 0.0
  %2812 = vmatpush1.msra.mxu0 0.0
  %2813 = vmatprep.subr.mxu0 0.0
  %2814 = vmatpush1.msra.mxu0 0.0
  %2815 = vmatprep.subr.mxu0 0.0
  %2816 = vmatpush1.msra.mxu0 0.0
  %2817 = vmatprep.subr.mxu0 0.0
  %2818 = vmatpush1.msra.mxu0 0.0
  %2819 = vmatprep.subr.mxu0 0.0
  %2820 = vmatpush1.msra.mxu0 0.0
  %2821 = vmatprep.subr.mxu0 0.0
  %2822 = vmatpush1.msra.mxu0 0.0
  %2823 = vmatprep.subr.mxu0 0.0
  %2824 = vmatpush1.msra.mxu0 0.0
  %2825 = vmatprep.subr.mxu0 0.0
  %2826 = vmatpush1.msra.mxu0 0.0
  %2827 = vmatprep.subr.mxu0 0.0
  %2828 = vmatpush1.msra.mxu0 0.0
  %2829 = vmatprep.subr.mxu0 0.0
  %2830 = vmatpush1.msra.mxu0 0.0
  %2831 = vmatprep.subr.mxu0 0.0
  %2832 = vmatpush1.msra.mxu0 0.0
  %2833 = vmatprep.subr.mxu0 0.0
  %2834 = vmatpush1.msra.mxu0 0.0
  %2835 = vmatprep.subr.mxu0 0.0
  %2836 = vmatpush1.msra.mxu0 0.0
  %2837 = vmatprep.subr.mxu0 0.0
  %2838 = vmatpush1.msra.mxu0 0.0
  %2839 = vmatprep.subr.mxu0 0.0
  %2840 = vmatpush1.msra.mxu0 0.0
  %2841 = vmatprep.subr.mxu0 0.0
  %2842 = vmatpush1.msra.mxu0 0.0
  %2843 = vmatprep.mubr.f32.mxu0 0.0
  %2844 = vmatmul.mubr.f32.gmra.mrb[0].mxu0 %v2774
  %v2845 = vpop.f32.mrb[0].mxu0
  %v2846 = vadd.f32 0.0, %v2845
  %v2847 = vpop.f32.mrb[0].mxu0
  %2848 = vmatprep.mubr.f32.mxu0 0.0
  %2849 = vmatmul.mubr.f32.gmra.mrb[0].mxu0 %v2777
  %v2850 = vpop.f32.mrb[0].mxu0
  %v2851 = vadd.f32 0.0, %v2850
  %v2852 = vpop.f32.mrb[0].mxu0
  %2853 = vdwg.mxu0
  %v2854 = vadd.f32 %v2571, %v2846
  %v2855 = vadd.f32 %v2572, %v2851
  %s2856 = scalar_lea.vmem %s6, 1
  %v2857 = vld [vmem:[%s2856] sm:$0x1]
  %v2859 = vlaneseq
  %v2860 = vshrl.u32 %v2859, 7
  %v2861 = vsub.s32 0, %v2860
  %v2862 = vrot.slane %v2857, %v2861
  %v2864 = vadd.f32 %v2854, %v2862
  %v2865 = vadd.f32 %v2855, %v2862
  %v2866 = vadd.f32 %v1625, %v2864
  %v2867 = vadd.f32 %v1626, %v2865
  %s2868 = scalar_lea.vmem %s7, 2
  %v2869 = vld [vmem:[%s2868] sm:$0x3]
  %v2870 = vsel %vm61, %v2866, 0.0
  %2871 = vadd.xlane.f32.xlu0 %v2870
  %v2872 = vpop.xlane.xlu0 %2871
  %v2873 = vsel %vm61, %v2867, 0.0
  %2874 = vadd.xlane.f32.xlu0 %v2873
  %v2875 = vpop.xlane.xlu0 %2874
  %v2876 = vmul.f32 %v2872, %v68
  %v2877 = vmul.f32 %v2875, %v68
  %v2878 = vsub.f32 %v2866, %v2876
  %v2879 = vsub.f32 %v2867, %v2877
  %v2880 = vmul.f32 %v2878, %v2878
  %v2881 = vmul.f32 %v2879, %v2879
  %v2882 = vsel %vm61, %v2880, 0.0
  %2883 = vadd.xlane.f32.xlu0 %v2882
  %v2884 = vpop.xlane.xlu0 %2883
  %v2885 = vsel %vm61, %v2881, 0.0
  %2886 = vadd.xlane.f32.xlu0 %v2885
  %v2887 = vpop.xlane.xlu0 %2886
  %v2888 = vmul.f32 %v2884, %v68
  %v2889 = vmul.f32 %v2887, %v68
  %v2890 = vadd.f32 %v2888, 1e-12
  %v2891 = vadd.f32 %v2889, 1e-12
  %v2892 = vrsqrt.pop %v2890
  %v2893 = vrsqrt.pop %v2891
  %v2894 = vmul.f32 %v2878, %v2892
  %v2895 = vmul.f32 %v2879, %v2893
  %v2896 = vlaneseq
  %v2897 = vshrl.u32 %v2896, 7
  %v2898 = vsub.s32 0, %v2897
  %v2899 = vrot.slane %v2869, %v2898
  %v2900 = vmul.f32 %v2894, %v2899
  %v2901 = vmul.f32 %v2895, %v2899
  %v2902 = vlaneseq
  %v2903 = vshrl.u32 %v2902, 7
  %v2904 = vsub.s32 1, %v2903
  %v2905 = vrot.slane %v2869, %v2904
  %v2906 = vadd.f32 %v2900, %v2905
  %v2907 = vadd.f32 %v2901, %v2905
  %s2908 = scalar_lea.vmem %s8, 32
  %v2909 = vld [vmem:[%s2908] sm:$0xff]
  %v2910 = vld [vmem:[%s2908 + $0x8] sm:$0xff]
  %v2911 = vld [vmem:[%s2908 + $0x10] sm:$0xff]
  %v2912 = vld [vmem:[%s2908 + $0x18] sm:$0xff]
  %s2913 = scalar_lea.vmem %s9, 1
  %v2914 = vld [vmem:[%s2913] sm:$0x1]
  %v2916 = vlaneseq
  %v2917 = vshrl.u32 %v2916, 7
  %v2918 = vsub.s32 0, %v2917
  %v2919 = vrot.slane %v2914, %v2918
  %v2922 = vsel %vm61, %v2906, 0
  %v2925 = vsel %vm61, %v2907, 0
  %2927 = vmatprep.subr.mxu0 0.0
  %2928 = vmatpush1.msra.mxu0 %v2909
  %2929 = vmatprep.subr.mxu0 0.0
  %2930 = vmatpush1.msra.mxu0 %v2910
  %2931 = vmatprep.subr.mxu0 0.0
  %2932 = vmatpush1.msra.mxu0 %v2911
  %2933 = vmatprep.subr.mxu0 0.0
  %2934 = vmatpush1.msra.mxu0 %v2912
  %2935 = vmatprep.subr.mxu0 0.0
  %2936 = vmatpush1.msra.mxu0 0.0
  %2937 = vmatprep.subr.mxu0 0.0
  %2938 = vmatpush1.msra.mxu0 0.0
  %2939 = vmatprep.subr.mxu0 0.0
  %2940 = vmatpush1.msra.mxu0 0.0
  %2941 = vmatprep.subr.mxu0 0.0
  %2942 = vmatpush1.msra.mxu0 0.0
  %2943 = vmatprep.subr.mxu0 0.0
  %2944 = vmatpush1.msra.mxu0 0.0
  %2945 = vmatprep.subr.mxu0 0.0
  %2946 = vmatpush1.msra.mxu0 0.0
  %2947 = vmatprep.subr.mxu0 0.0
  %2948 = vmatpush1.msra.mxu0 0.0
  %2949 = vmatprep.subr.mxu0 0.0
  %2950 = vmatpush1.msra.mxu0 0.0
  %2951 = vmatprep.subr.mxu0 0.0
  %2952 = vmatpush1.msra.mxu0 0.0
  %2953 = vmatprep.subr.mxu0 0.0
  %2954 = vmatpush1.msra.mxu0 0.0
  %2955 = vmatprep.subr.mxu0 0.0
  %2956 = vmatpush1.msra.mxu0 0.0
  %2957 = vmatprep.subr.mxu0 0.0
  %2958 = vmatpush1.msra.mxu0 0.0
  %2959 = vmatprep.subr.mxu0 0.0
  %2960 = vmatpush1.msra.mxu0 0.0
  %2961 = vmatprep.subr.mxu0 0.0
  %2962 = vmatpush1.msra.mxu0 0.0
  %2963 = vmatprep.subr.mxu0 0.0
  %2964 = vmatpush1.msra.mxu0 0.0
  %2965 = vmatprep.subr.mxu0 0.0
  %2966 = vmatpush1.msra.mxu0 0.0
  %2967 = vmatprep.subr.mxu0 0.0
  %2968 = vmatpush1.msra.mxu0 0.0
  %2969 = vmatprep.subr.mxu0 0.0
  %2970 = vmatpush1.msra.mxu0 0.0
  %2971 = vmatprep.subr.mxu0 0.0
  %2972 = vmatpush1.msra.mxu0 0.0
  %2973 = vmatprep.subr.mxu0 0.0
  %2974 = vmatpush1.msra.mxu0 0.0
  %2975 = vmatprep.subr.mxu0 0.0
  %2976 = vmatpush1.msra.mxu0 0.0
  %2977 = vmatprep.subr.mxu0 0.0
  %2978 = vmatpush1.msra.mxu0 0.0
  %2979 = vmatprep.subr.mxu0 0.0
  %2980 = vmatpush1.msra.mxu0 0.0
  %2981 = vmatprep.subr.mxu0 0.0
  %2982 = vmatpush1.msra.mxu0 0.0
  %2983 = vmatprep.subr.mxu0 0.0
  %2984 = vmatpush1.msra.mxu0 0.0
  %2985 = vmatprep.subr.mxu0 0.0
  %2986 = vmatpush1.msra.mxu0 0.0
  %2987 = vmatprep.subr.mxu0 0.0
  %2988 = vmatpush1.msra.mxu0 0.0
  %2989 = vmatprep.subr.mxu0 0.0
  %2990 = vmatpush1.msra.mxu0 0.0
  %2991 = vmatprep.mubr.f32.mxu0 0.0
  %2992 = vmatmul.mubr.f32.gmra.mrb[0].mxu0 %v2922
  %v2993 = vpop.f32.mrb[0].mxu0
  %v2994 = vadd.f32 %v2919, %v2993
  %v2995 = vpop.f32.mrb[0].mxu0
  %2996 = vmatprep.mubr.f32.mxu0 0.0
  %2997 = vmatmul.mubr.f32.gmra.mrb[0].mxu0 %v2925
  %v2998 = vpop.f32.mrb[0].mxu0
  %v2999 = vadd.f32 %v2919, %v2998
  %v3000 = vpop.f32.mrb[0].mxu0
  %3001 = vdwg.mxu0
  %v3002 = vmul.f32 %v2994, %v2994
  %v3003 = vmul.f32 %v2999, %v2999
  %v3004 = vmul.f32 %v2994, %v3002
  %v3005 = vmul.f32 %v2999, %v3003
  %v3006 = vmul.f32 %v3004, 0.044715
  %v3007 = vmul.f32 %v3005, 0.044715
  %v3008 = vadd.f32 %v2994, %v3006
  %v3009 = vadd.f32 %v2999, %v3007
  %v3010 = vmul.f32 %v3008, 0.7978846
  %v3011 = vmul.f32 %v3009, 0.7978846
  %v3012 = vtanh.pop %v3010
  %v3013 = vtanh.pop %v3011
  %v3014 = vadd.f32 %v3012, 1.0
  %v3015 = vadd.f32 %v3013, 1.0
  %v3016 = vmul.f32 %v3014, 0.5
  %v3017 = vmul.f32 %v3015, 0.5
  %v3018 = vmul.f32 %v2994, %v3016
  %v3019 = vmul.f32 %v2999, %v3017
  %s3020 = scalar_lea.vmem %s10, 64
  %v3021 = vld [vmem:[%s3020] sm:$0xff]
  %v3022 = vld [vmem:[%s3020 + $0x8] sm:$0xff]
  %v3023 = vld [vmem:[%s3020 + $0x10] sm:$0xff]
  %v3024 = vld [vmem:[%s3020 + $0x18] sm:$0xff]
  %v3025 = vld [vmem:[%s3020 + $0x20] sm:$0xff]
  %v3026 = vld [vmem:[%s3020 + $0x28] sm:$0xff]
  %v3027 = vld [vmem:[%s3020 + $0x30] sm:$0xff]
  %v3028 = vld [vmem:[%s3020 + $0x38] sm:$0xff]
  %s3029 = scalar_lea.vmem %s11, 1
  %v3030 = vld [vmem:[%s3029] sm:$0x1]
  %v3032 = vlaneseq
  %v3033 = vshrl.u32 %v3032, 7
  %v3034 = vsub.s32 0, %v3033
  %v3035 = vrot.slane %v3030, %v3034
  %v3038 = vsel %vm1504, %v3018, 0
  %v3041 = vsel %vm1504, %v3019, 0
  %3043 = vmatprep.subr.mxu0 0.0
  %3044 = vmatpush1.msra.mxu0 %v3021
  %3045 = vmatprep.subr.mxu0 0.0
  %3046 = vmatpush1.msra.mxu0 %v3022
  %3047 = vmatprep.subr.mxu0 0.0
  %3048 = vmatpush1.msra.mxu0 %v3023
  %3049 = vmatprep.subr.mxu0 0.0
  %3050 = vmatpush1.msra.mxu0 %v3024
  %3051 = vmatprep.subr.mxu0 0.0
  %3052 = vmatpush1.msra.mxu0 %v3025
  %3053 = vmatprep.subr.mxu0 0.0
  %3054 = vmatpush1.msra.mxu0 %v3026
  %3055 = vmatprep.subr.mxu0 0.0
  %3056 = vmatpush1.msra.mxu0 %v3027
  %3057 = vmatprep.subr.mxu0 0.0
  %3058 = vmatpush1.msra.mxu0 %v3028
  %3059 = vmatprep.subr.mxu0 0.0
  %3060 = vmatpush1.msra.mxu0 0.0
  %3061 = vmatprep.subr.mxu0 0.0
  %3062 = vmatpush1.msra.mxu0 0.0
  %3063 = vmatprep.subr.mxu0 0.0
  %3064 = vmatpush1.msra.mxu0 0.0
  %3065 = vmatprep.subr.mxu0 0.0
  %3066 = vmatpush1.msra.mxu0 0.0
  %3067 = vmatprep.subr.mxu0 0.0
  %3068 = vmatpush1.msra.mxu0 0.0
  %3069 = vmatprep.subr.mxu0 0.0
  %3070 = vmatpush1.msra.mxu0 0.0
  %3071 = vmatprep.subr.mxu0 0.0
  %3072 = vmatpush1.msra.mxu0 0.0
  %3073 = vmatprep.subr.mxu0 0.0
  %3074 = vmatpush1.msra.mxu0 0.0
  %3075 = vmatprep.subr.mxu0 0.0
  %3076 = vmatpush1.msra.mxu0 0.0
  %3077 = vmatprep.subr.mxu0 0.0
  %3078 = vmatpush1.msra.mxu0 0.0
  %3079 = vmatprep.subr.mxu0 0.0
  %3080 = vmatpush1.msra.mxu0 0.0
  %3081 = vmatprep.subr.mxu0 0.0
  %3082 = vmatpush1.msra.mxu0 0.0
  %3083 = vmatprep.subr.mxu0 0.0
  %3084 = vmatpush1.msra.mxu0 0.0
  %3085 = vmatprep.subr.mxu0 0.0
  %3086 = vmatpush1.msra.mxu0 0.0
  %3087 = vmatprep.subr.mxu0 0.0
  %3088 = vmatpush1.msra.mxu0 0.0
  %3089 = vmatprep.subr.mxu0 0.0
  %3090 = vmatpush1.msra.mxu0 0.0
  %3091 = vmatprep.subr.mxu0 0.0
  %3092 = vmatpush1.msra.mxu0 0.0
  %3093 = vmatprep.subr.mxu0 0.0
  %3094 = vmatpush1.msra.mxu0 0.0
  %3095 = vmatprep.subr.mxu0 0.0
  %3096 = vmatpush1.msra.mxu0 0.0
  %3097 = vmatprep.subr.mxu0 0.0
  %3098 = vmatpush1.msra.mxu0 0.0
  %3099 = vmatprep.subr.mxu0 0.0
  %3100 = vmatpush1.msra.mxu0 0.0
  %3101 = vmatprep.subr.mxu0 0.0
  %3102 = vmatpush1.msra.mxu0 0.0
  %3103 = vmatprep.subr.mxu0 0.0
  %3104 = vmatpush1.msra.mxu0 0.0
  %3105 = vmatprep.subr.mxu0 0.0
  %3106 = vmatpush1.msra.mxu0 0.0
  %3107 = vmatprep.mubr.f32.mxu0 0.0
  %3108 = vmatmul.mubr.f32.gmra.mrb[0].mxu0 %v3038
  %v3109 = vpop.f32.mrb[0].mxu0
  %v3110 = vadd.f32 %v3035, %v3109
  %v3111 = vpop.f32.mrb[0].mxu0
  %3112 = vmatprep.mubr.f32.mxu0 0.0
  %3113 = vmatmul.mubr.f32.gmra.mrb[0].mxu0 %v3041
  %v3114 = vpop.f32.mrb[0].mxu0
  %v3115 = vadd.f32 %v3035, %v3114
  %v3116 = vpop.f32.mrb[0].mxu0
  %3117 = vdwg.mxu0
  %v3118 = vadd.f32 %v2906, %v3110
  %v3119 = vadd.f32 %v2907, %v3115
  %s3120 = scalar_lea.vmem %s12, 2
  %v3121 = vld [vmem:[%s3120] sm:$0x3]
  %v3122 = vsel %vm61, %v3118, 0.0
  %3123 = vadd.xlane.f32.xlu0 %v3122
  %v3124 = vpop.xlane.xlu0 %3123
  %v3125 = vsel %vm61, %v3119, 0.0
  %3126 = vadd.xlane.f32.xlu0 %v3125
  %v3127 = vpop.xlane.xlu0 %3126
  %v3128 = vmul.f32 %v3124, %v68
  %v3129 = vmul.f32 %v3127, %v68
  %v3130 = vsub.f32 %v3118, %v3128
  %v3131 = vsub.f32 %v3119, %v3129
  %v3132 = vmul.f32 %v3130, %v3130
  %v3133 = vmul.f32 %v3131, %v3131
  %v3134 = vsel %vm61, %v3132, 0.0
  %3135 = vadd.xlane.f32.xlu0 %v3134
  %v3136 = vpop.xlane.xlu0 %3135
  %v3137 = vsel %vm61, %v3133, 0.0
  %3138 = vadd.xlane.f32.xlu0 %v3137
  %v3139 = vpop.xlane.xlu0 %3138
  %v3140 = vmul.f32 %v3136, %v68
  %v3141 = vmul.f32 %v3139, %v68
  %v3142 = vadd.f32 %v3140, 1e-12
  %v3143 = vadd.f32 %v3141, 1e-12
  %v3144 = vrsqrt.pop %v3142
  %v3145 = vrsqrt.pop %v3143
  %v3146 = vmul.f32 %v3130, %v3144
  %v3147 = vmul.f32 %v3131, %v3145
  %v3148 = vlaneseq
  %v3149 = vshrl.u32 %v3148, 7
  %v3150 = vsub.s32 0, %v3149
  %v3151 = vrot.slane %v3121, %v3150
  %v3152 = vmul.f32 %v3146, %v3151
  %v3153 = vmul.f32 %v3147, %v3151
  %v3154 = vlaneseq
  %v3155 = vshrl.u32 %v3154, 7
  %v3156 = vsub.s32 1, %v3155
  %v3157 = vrot.slane %v3121, %v3156
  %v3158 = vadd.f32 %v3152, %v3157
  %v3159 = vadd.f32 %v3153, %v3157
  %v3160 = vld [vmem:[%s13] sm:$0xff]
  %v3161 = vld [vmem:[%s13 + $0x8] sm:$0xff]
  %v3162 = vld [vmem:[%s13 + $0x10] sm:$0xff]
  %v3163 = vld [vmem:[%s13 + $0x18] sm:$0xff]
  %v3164 = vld [vmem:[%s14] sm:$0x1]
  %v3166 = vlaneseq
  %v3167 = vshrl.u32 %v3166, 7
  %v3168 = vsub.s32 0, %v3167
  %v3169 = vrot.slane %v3164, %v3168
  %v3172 = vsel %vm61, %v3158, 0
  %v3175 = vsel %vm61, %v3159, 0
  %3177 = vmatprep.subr.mxu0 0.0
  %3178 = vmatpush1.msra.mxu0 %v3160
  %3179 = vmatprep.subr.mxu0 0.0
  %3180 = vmatpush1.msra.mxu0 %v3161
  %3181 = vmatprep.subr.mxu0 0.0
  %3182 = vmatpush1.msra.mxu0 %v3162
  %3183 = vmatprep.subr.mxu0 0.0
  %3184 = vmatpush1.msra.mxu0 %v3163
  %3185 = vmatprep.subr.mxu0 0.0
  %3186 = vmatpush1.msra.mxu0 0.0
  %3187 = vmatprep.subr.mxu0 0.0
  %3188 = vmatpush1.msra.mxu0 0.0
  %3189 = vmatprep.subr.mxu0 0.0
  %3190 = vmatpush1.msra.mxu0 0.0
  %3191 = vmatprep.subr.mxu0 0.0
  %3192 = vmatpush1.msra.mxu0 0.0
  %3193 = vmatprep.subr.mxu0 0.0
  %3194 = vmatpush1.msra.mxu0 0.0
  %3195 = vmatprep.subr.mxu0 0.0
  %3196 = vmatpush1.msra.mxu0 0.0
  %3197 = vmatprep.subr.mxu0 0.0
  %3198 = vmatpush1.msra.mxu0 0.0
  %3199 = vmatprep.subr.mxu0 0.0
  %3200 = vmatpush1.msra.mxu0 0.0
  %3201 = vmatprep.subr.mxu0 0.0
  %3202 = vmatpush1.msra.mxu0 0.0
  %3203 = vmatprep.subr.mxu0 0.0
  %3204 = vmatpush1.msra.mxu0 0.0
  %3205 = vmatprep.subr.mxu0 0.0
  %3206 = vmatpush1.msra.mxu0 0.0
  %3207 = vmatprep.subr.mxu0 0.0
  %3208 = vmatpush1.msra.mxu0 0.0
  %3209 = vmatprep.subr.mxu0 0.0
  %3210 = vmatpush1.msra.mxu0 0.0
  %3211 = vmatprep.subr.mxu0 0.0
  %3212 = vmatpush1.msra.mxu0 0.0
  %3213 = vmatprep.subr.mxu0 0.0
  %3214 = vmatpush1.msra.mxu0 0.0
  %3215 = vmatprep.subr.mxu0 0.0
  %3216 = vmatpush1.msra.mxu0 0.0
  %3217 = vmatprep.subr.mxu0 0.0
  %3218 = vmatpush1.msra.mxu0 0.0
  %3219 = vmatprep.subr.mxu0 0.0
  %3220 = vmatpush1.msra.mxu0 0.0
  %3221 = vmatprep.subr.mxu0 0.0
  %3222 = vmatpush1.msra.mxu0 0.0
  %3223 = vmatprep.subr.mxu0 0.0
  %3224 = vmatpush1.msra.mxu0 0.0
  %3225 = vmatprep.subr.mxu0 0.0
  %3226 = vmatpush1.msra.mxu0 0.0
  %3227 = vmatprep.subr.mxu0 0.0
  %3228 = vmatpush1.msra.mxu0 0.0
  %3229 = vmatprep.subr.mxu0 0.0
  %3230 = vmatpush1.msra.mxu0 0.0
  %3231 = vmatprep.subr.mxu0 0.0
  %3232 = vmatpush1.msra.mxu0 0.0
  %3233 = vmatprep.subr.mxu0 0.0
  %3234 = vmatpush1.msra.mxu0 0.0
  %3235 = vmatprep.subr.mxu0 0.0
  %3236 = vmatpush1.msra.mxu0 0.0
  %3237 = vmatprep.subr.mxu0 0.0
  %3238 = vmatpush1.msra.mxu0 0.0
  %3239 = vmatprep.subr.mxu0 0.0
  %3240 = vmatpush1.msra.mxu0 0.0
  %3241 = vmatprep.mubr.f32.mxu0 0.0
  %3242 = vmatmul.mubr.f32.gmra.mrb[0].mxu0 %v3172
  %v3243 = vpop.f32.mrb[0].mxu0
  %v3244 = vadd.f32 %v3169, %v3243
  %v3245 = vpop.f32.mrb[0].mxu0
  %3246 = vmatprep.mubr.f32.mxu0 0.0
  %3247 = vmatmul.mubr.f32.gmra.mrb[0].mxu0 %v3175
  %v3248 = vpop.f32.mrb[0].mxu0
  %v3249 = vadd.f32 %v3169, %v3248
  %v3250 = vpop.f32.mrb[0].mxu0
  %3251 = vdwg.mxu0
  %v3252 = vtanh.pop %v3244
  %v3253 = vtanh.pop %v3249
  %v3254 = vld [vmem:[%s15] sm:$0xff]
  %v3255 = vld [vmem:[%s15 + $0x8] sm:$0xff]
  %v3256 = vld [vmem:[%s15 + $0x10] sm:$0xff]
  %v3257 = vld [vmem:[%s15 + $0x18] sm:$0xff]
  %v3258 = vld [vmem:[%s16] sm:$0x1]
  %v3260 = vlaneseq
  %v3261 = vshrl.u32 %v3260, 7
  %v3262 = vsub.s32 0, %v3261
  %v3263 = vrot.slane %v3258, %v3262
  %v3266 = vsel %vm61, %v3252, 0
  %v3269 = vsel %vm61, %v3253, 0
  %3271 = vmatprep.subr.mxu0 0.0
  %3272 = vmatpush1.msra.mxu0 %v3254
  %3273 = vmatprep.subr.mxu0 0.0
  %3274 = vmatpush1.msra.mxu0 %v3255
  %3275 = vmatprep.subr.mxu0 0.0
  %3276 = vmatpush1.msra.mxu0 %v3256
  %3277 = vmatprep.subr.mxu0 0.0
  %3278 = vmatpush1.msra.mxu0 %v3257
  %3279 = vmatprep.subr.mxu0 0.0
  %3280 = vmatpush1.msra.mxu0 0.0
  %3281 = vmatprep.subr.mxu0 0.0
  %3282 = vmatpush1.msra.mxu0 0.0
  %3283 = vmatprep.subr.mxu0 0.0
  %3284 = vmatpush1.msra.mxu0 0.0
  %3285 = vmatprep.subr.mxu0 0.0
  %3286 = vmatpush1.msra.mxu0 0.0
  %3287 = vmatprep.subr.mxu0 0.0
  %3288 = vmatpush1.msra.mxu0 0.0
  %3289 = vmatprep.subr.mxu0 0.0
  %3290 = vmatpush1.msra.mxu0 0.0
  %3291 = vmatprep.subr.mxu0 0.0
  %3292 = vmatpush1.msra.mxu0 0.0
  %3293 = vmatprep.subr.mxu0 0.0
  %3294 = vmatpush1.msra.mxu0 0.0
  %3295 = vmatprep.subr.mxu0 0.0
  %3296 = vmatpush1.msra.mxu0 0.0
  %3297 = vmatprep.subr.mxu0 0.0
  %3298 = vmatpush1.msra.mxu0 0.0
  %3299 = vmatprep.subr.mxu0 0.0
  %3300 = vmatpush1.msra.mxu0 0.0
  %3301 = vmatprep.subr.mxu0 0.0
  %3302 = vmatpush1.msra.mxu0 0.0
  %3303 = vmatprep.subr.mxu0 0.0
  %3304 = vmatpush1.msra.mxu0 0.0
  %3305 = vmatprep.subr.mxu0 0.0
  %3306 = vmatpush1.msra.mxu0 0.0
  %3307 = vmatprep.subr.mxu0 0.0
  %3308 = vmatpush1.msra.mxu0 0.0
  %3309 = vmatprep.subr.mxu0 0.0
  %3310 = vmatpush1.msra.mxu0 0.0
  %3311 = vmatprep.subr.mxu0 0.0
  %3312 = vmatpush1.msra.mxu0 0.0
  %3313 = vmatprep.subr.mxu0 0.0
  %3314 = vmatpush1.msra.mxu0 0.0
  %3315 = vmatprep.subr.mxu0 0.0
  %3316 = vmatpush1.msra.mxu0 0.0
  %3317 = vmatprep.subr.mxu0 0.0
  %3318 = vmatpush1.msra.mxu0 0.0
  %3319 = vmatprep.subr.mxu0 0.0
  %3320 = vmatpush1.msra.mxu0 0.0
  %3321 = vmatprep.subr.mxu0 0.0
  %3322 = vmatpush1.msra.mxu0 0.0
  %3323 = vmatprep.subr.mxu0 0.0
  %3324 = vmatpush1.msra.mxu0 0.0
  %3325 = vmatprep.subr.mxu0 0.0
  %3326 = vmatpush1.msra.mxu0 0.0
  %3327 = vmatprep.subr.mxu0 0.0
  %3328 = vmatpush1.msra.mxu0 0.0
  %3329 = vmatprep.subr.mxu0 0.0
  %3330 = vmatpush1.msra.mxu0 0.0
  %3331 = vmatprep.subr.mxu0 0.0
  %3332 = vmatpush1.msra.mxu0 0.0
  %3333 = vmatprep.subr.mxu0 0.0
  %3334 = vmatpush1.msra.mxu0 0.0
  %3335 = vmatprep.mubr.f32.mxu0 0.0
  %3336 = vmatmul.mubr.f32.gmra.mrb[0].mxu0 %v3266
  %v3337 = vpop.f32.mrb[0].mxu0
  %v3338 = vadd.f32 %v3263, %v3337
  %v3339 = vpop.f32.mrb[0].mxu0
  %3340 = vmatprep.mubr.f32.mxu0 0.0
  %3341 = vmatmul.mubr.f32.gmra.mrb[0].mxu0 %v3269
  %v3342 = vpop.f32.mrb[0].mxu0
  %v3343 = vadd.f32 %v3263, %v3342
  %v3344 = vpop.f32.mrb[0].mxu0
  %3345 = vdwg.mxu0
  %3346 = vst [vmem:[%s17] sm:$0xff] %v3338
  %3347 = vst [vmem:[%s17 + $0x8] sm:$0xff] %v3343
  // Predicated region
  $region70: #{bert_classifier_forward.1} parent=0 // pred_check
    _
  $region71: #{bert_classifier_forward.1} parent=0 // pred_check_branch
    %3349 = sbr.rel (0) target = $region73
  $region72: #{bert_classifier_forward.1} parent=0 // pred_region
    _
  $region73: #{bert_classifier_forward.1} parent=0 // pred_fallthru
    _
  // Predicated region
  $region74: #{bert_classifier_forward.1} parent=0 // pred_check
    _
  $region75: #{bert_classifier_forward.1} parent=0 // pred_check_branch
    %3351 = sbr.rel (0) target = $region77
  $region76: #{bert_classifier_forward.1} parent=0 // pred_region
    _
  $region77: #{bert_classifier_forward.1} parent=0 // pred_fallthru
    _

</llo_original>
